<compile_context>
chip_gen: v5e
topology: v5e:2x2
jax: 0.10.0
libtpu: 0.0.40
codegen_flags: <defaults>
</compile_context>

<pallas_src>
import functools

import jax
import jax.numpy as jnp
from jax.experimental import pallas as pl
from jax.experimental.pallas import tpu as pltpu


TT = 8  # timesteps per grid step (sublane-aligned time tile)


# -------------------------- Pallas kernel -------------------------- #

def _attn_rnn_decoder_kernel(
    gates_ref,   # [B, TT, 3H]  precomputed x-side gate pre-activations (biases fused)
    enc_ref,     # [B, S, C]    encoder outputs
    mask_ref,    # [B, S]       encoder masks
    whh_ref,     # [H, 3H]      fused hidden-side GRU weights (r | z | n)
    bhn_ref,     # [1, H]       hidden-side bias of the 'n' gate (cannot be pre-fused)
    wen_ref,     # [H, C]       Luong 'general' energy weight (pre-transposed)
    wdh_ref,     # [H, H]       attention_dense weight, h part
    wdc_ref,     # [C, H]       attention_dense weight, context part
    bdn_ref,     # [1, H]       attention_dense bias
    out_ref,     # [B, TT, H]   per-step outputs (batch-first, time-blocked)
    hfin_ref,    # [B, H]       final hidden state
    probs_ref,   # [B, S]       attention probs of the last step
    h_scratch,   # VMEM [B, H]  recurrent carry across grid steps
    *, seq_len, steps_per_block,
):
    g = pl.program_id(0)
    nb = pl.num_programs(0)

    @pl.when(g == 0)
    def _():
        # hidden_states=None -> init_hidden -> zeros
        h_scratch[...] = jnp.zeros_like(h_scratch)

    B, H = h_scratch.shape
    S = enc_ref.shape[1]

    # Hoist all constant-over-step loads / broadcasts out of the unrolled loop.
    gates = gates_ref[...]                                   # [B, TT, 3H]
    enc = enc_ref[...]                                       # [B, S, C]
    mask = mask_ref[...]                                     # [B, S]
    whh = whh_ref[...]                                       # [H, 3H]
    wen = wen_ref[...]                                       # [H, C]
    wdh = wdh_ref[...]                                       # [H, H]
    wdc = wdc_ref[...]                                       # [C, H]
    bhn = jnp.broadcast_to(bhn_ref[...], (B, H))             # [B, H]
    bdn = jnp.broadcast_to(bdn_ref[...], (B, H))             # [B, H]

    h = h_scratch[...]                                       # [B, H]
    p_last = jnp.zeros((B, S), jnp.float32)

    needs_mask = (seq_len % steps_per_block) != 0            # static Python bool

    for s in range(steps_per_block):                         # statically unrolled
        gx = gates[:, s, :]                                  # [B, 3H]

        # --- GRU cell (PyTorch semantics, gate order r, z, n); one fused MXU push ---
        gh = jnp.dot(h, whh, preferred_element_type=jnp.float32)       # [B, 3H]
        r = jax.nn.sigmoid(gx[:, :H] + gh[:, :H])
        z = jax.nn.sigmoid(gx[:, H:2 * H] + gh[:, H:2 * H])
        n = jnp.tanh(gx[:, 2 * H:] + r * (gh[:, 2 * H:] + bhn))
        h_new = (1.0 - z) * n + z * h                                  # [B, H]

        # --- Luong attention, alignment_method='general' (MXU dot_generals) ---
        e = jnp.dot(h_new, wen, preferred_element_type=jnp.float32)    # [B, C]
        energy = jnp.einsum('bqc,bsc->bqs', e[:, None, :], enc,
                            preferred_element_type=jnp.float32)[:, 0, :]  # [B, S]

        # softmax * mask, renormalized with +1e-12 — algebraically identical to the
        # reference two-division form, but with a single (EUP) reciprocal:
        #   p_i = u_i*mask_i / (sum_j u_j*mask_j + 1e-12*Z),  u = exp(e - max), Z = sum u
        m = jnp.max(energy, axis=-1, keepdims=True)
        u = jnp.exp(energy - m)
        z_all = jnp.sum(u, axis=-1, keepdims=True)
        um = u * mask
        denom = jnp.sum(um, axis=-1, keepdims=True) + 1e-12 * z_all
        inv = pl.reciprocal(denom, approx=True)
        inv = inv * (2.0 - denom * inv)          # one Newton step -> full f32 precision
        p = um * inv                                                   # [B, S]

        ctx = jnp.einsum('bqs,bsc->bqc', p[:, None, :], enc,
                         preferred_element_type=jnp.float32)[:, 0, :]  # [B, C]

        # --- attention_dense([h ; context]) without the lane-axis concat ---
        out_s = (jnp.dot(h_new, wdh, preferred_element_type=jnp.float32)
                 + jnp.dot(ctx, wdc, preferred_element_type=jnp.float32)
                 + bdn)                                                # [B, H]

        if needs_mask:
            # Only emitted when T is not a multiple of TT (padded tail steps).
            valid = (g * steps_per_block + s) < seq_len
            h_new = jnp.where(valid, h_new, h)
            p = jnp.where(valid, p, p_last)

        out_ref[:, pl.ds(s, 1), :] = out_s[:, None, :].astype(out_ref.dtype)
        h = h_new
        p_last = p

    h_scratch[...] = h

    # Resident outputs: only the final value matters -> skip T-1 redundant stores.
    @pl.when(g == nb - 1)
    def _():
        hfin_ref[...] = h
        probs_ref[...] = p_last


# -------------------------- wrapper -------------------------- #

def prepare_params(p):
    """Fuse the raw per-gate GRU / attention params into the kernel layout."""
    H = p["w_hr_t"].shape[0]
    w_i3 = jnp.concatenate([p["w_ir_t"], p["w_iz_t"], p["w_in_t"]], axis=1)      # [E, 3H]
    b_i3 = jnp.concatenate([p["b_ir"] + p["b_hr"],
                            p["b_iz"] + p["b_hz"],
                            p["b_in"]], axis=1)                                   # [1, 3H]
    w_hh3 = jnp.concatenate([p["w_hr_t"], p["w_hz_t"], p["w_hn_t"]], axis=1)      # [H, 3H]
    return {
        "w_i3": w_i3,
        "b_i3": b_i3,
        "w_hh3": w_hh3,
        "b_hn": p["b_hn"],
        "w_energy_t": p["w_energy_t"],
        "w_dense_h": p["w_dense_t"][:H, :],
        "w_dense_c": p["w_dense_t"][H:, :],
        "b_dense": p["b_dense"],
    }


def attentional_rnn_decoder(input_embeddings, encoder_outputs, encoder_masks, params):
    """input_embeddings: [B, T, E]; encoder_outputs: [B, S, C]; encoder_masks: [B, S].
    Returns (outputs [B, T, H], hidden_states [1, B, H], probs [B, 1, S])."""
    B, T, E = input_embeddings.shape
    _, S, C = encoder_outputs.shape
    fused = prepare_params(params)
    H = fused["w_hh3"].shape[0]

    # Hoisted input-side GRU projections: one large MXU matmul for all T steps,
    # batch-first throughout (no transposes).
    gates_x = (input_embeddings.reshape(B * T, E) @ fused["w_i3"]
               + fused["b_i3"]).reshape(B, T, 3 * H).astype(jnp.float32)

    num_blocks = pl.cdiv(T, TT)
    T_pad = num_blocks * TT
    if T_pad != T:
        gates_x = jnp.pad(gates_x, ((0, 0), (0, T_pad - T), (0, 0)))

    kernel = functools.partial(_attn_rnn_decoder_kernel,
                               seq_len=T, steps_per_block=TT)

    def full(shp):
        return pl.BlockSpec(shp, lambda g, _n=len(shp): (0,) * _n)

    in_specs = [
        pl.BlockSpec((B, TT, 3 * H), lambda g: (0, g, 0)),   # gates, blocked over time
        full((B, S, C)),                                     # encoder outputs
        full((B, S)),                                        # mask
        full((H, 3 * H)),                                    # fused W_hh
        full((1, H)),                                        # b_hn
        full((H, C)),                                        # W_energy
        full((H, H)),                                        # W_dense (h part)
        full((C, H)),                                        # W_dense (context part)
        full((1, H)),                                        # b_dense
    ]
    out_specs = [
        pl.BlockSpec((B, TT, H), lambda g: (0, g, 0)),       # per-step outputs
        full((B, H)),                                        # final hidden
        full((B, S)),                                        # last-step probs
    ]
    out_shapes = (
        jax.ShapeDtypeStruct((B, T_pad, H), jnp.float32),
        jax.ShapeDtypeStruct((B, H), jnp.float32),
        jax.ShapeDtypeStruct((B, S), jnp.float32),
    )

    outs, h_fin, probs = pl.pallas_call(
        kernel,
        out_shape=out_shapes,
        grid_spec=pltpu.PrefetchScalarGridSpec(
            num_scalar_prefetch=0,
            grid=(num_blocks,),
            in_specs=in_specs,
            out_specs=out_specs,
            scratch_shapes=[pltpu.VMEM((B, H), jnp.float32)],
        ),
        compiler_params=pltpu.CompilerParams(
            dimension_semantics=("arbitrary",),   # strict sequential recurrence in time
        ),
    )(
        gates_x, encoder_outputs, encoder_masks,
        fused["w_hh3"], fused["b_hn"], fused["w_energy_t"],
        fused["w_dense_h"], fused["w_dense_c"], fused["b_dense"],
    )

    outputs = outs[:, :T, :]                       # drop padded tail steps (if any)
    hidden_states = h_fin[None, :, :]              # [num_layers=1, B, H]
    return outputs, hidden_states, probs[:, None, :]   # probs: [B, 1, S]


# -------------------------- reference (plain JAX) -------------------------- #

def reference_decoder(input_embeddings, encoder_outputs, encoder_masks, p):
    B, T, E = input_embeddings.shape
    H = p["w_hr_t"].shape[0]
    h = jnp.zeros((B, H), jnp.float32)
    outs = []
    probs = None
    for t in range(T):
        x = input_embeddings[:, t, :]
        r = jax.nn.sigmoid(x @ p["w_ir_t"] + p["b_ir"] + h @ p["w_hr_t"] + p["b_hr"])
        z = jax.nn.sigmoid(x @ p["w_iz_t"] + p["b_iz"] + h @ p["w_hz_t"] + p["b_hz"])
        n = jnp.tanh(x @ p["w_in_t"] + p["b_in"] + r * (h @ p["w_hn_t"] + p["b_hn"]))
        h = (1.0 - z) * n + z * h
        e = h @ p["w_energy_t"]
        energy = jnp.einsum("bc,bsc->bs", e, encoder_outputs)
        probs = jax.nn.softmax(energy, axis=-1) * encoder_masks
        probs = probs / (probs.sum(-1, keepdims=True) + 1e-12)
        ctx = jnp.einsum("bs,bsc->bc", probs, encoder_outputs)
        outs.append(jnp.concatenate([h, ctx], -1) @ p["w_dense_t"] + p["b_dense"])
    return jnp.stack(outs, 1), h[None], probs[:, None, :]


# -------------------------- main -------------------------- #

if __name__ == "__main__":
    B, T, S = 2, 8, 10           # batch, decode length, encoder length
    E, H, C = 32, 32, 48         # embedding_size, hidden_size, context_size

    key = jax.random.PRNGKey(0)
    ks = jax.random.split(key, 20)
    g = lambda k, shape: (0.1 * jax.random.normal(k, shape)).astype(jnp.float32)

    # Deterministic synthetic parameters (pre-transposed to "x @ W" layout).
    params = {
        "w_ir_t": g(ks[0], (E, H)), "w_iz_t": g(ks[1], (E, H)), "w_in_t": g(ks[2], (E, H)),
        "w_hr_t": g(ks[3], (H, H)), "w_hz_t": g(ks[4], (H, H)), "w_hn_t": g(ks[5], (H, H)),
        "b_ir": g(ks[6], (1, H)), "b_iz": g(ks[7], (1, H)), "b_in": g(ks[8], (1, H)),
        "b_hr": g(ks[9], (1, H)), "b_hz": g(ks[10], (1, H)), "b_hn": g(ks[11], (1, H)),
        "w_energy_t": g(ks[12], (H, C)),          # Luong 'general': Linear(H -> C, no bias)
        "w_dense_t": g(ks[13], (H + C, H)),       # attention_dense: Linear(H+C -> H)
        "b_dense": g(ks[14], (1, H)),
    }

    input_embeddings = g(ks[15], (B, T, E))
    encoder_outputs = g(ks[16], (B, S, C))
    encoder_masks = jnp.ones((B, S), jnp.float32)   # forward() default when masks are None

    out, hidden, probs = attentional_rnn_decoder(
        input_embeddings, encoder_outputs, encoder_masks, params)
    jax.block_until_ready((out, hidden, probs))

    ref_out, ref_hidden, ref_probs = reference_decoder(
        input_embeddings, encoder_outputs, encoder_masks, params)

    assert out.shape == (B, T, H) and hidden.shape == (1, B, H) and probs.shape == (B, 1, S)
    assert jnp.allclose(out, ref_out, atol=5e-4, rtol=5e-4)
    assert jnp.allclose(hidden, ref_hidden, atol=5e-4, rtol=5e-4)
    assert jnp.allclose(probs, ref_probs, atol=5e-4, rtol=5e-4)

    print("KERNEL_OK")
</pallas_src>

<mosaic_0001>
module attributes {stable_mosaic.version = 11 : i64} {
  func.func @_attn_rnn_decoder_kernel(%arg0: i32, %arg1: memref<2x8x96xf32, #tpu.memory_space<vmem>>, %arg2: memref<2x10x48xf32, #tpu.memory_space<vmem>>, %arg3: memref<2x10xf32, #tpu.memory_space<vmem>>, %arg4: memref<32x96xf32, #tpu.memory_space<vmem>>, %arg5: memref<1x32xf32, #tpu.memory_space<vmem>>, %arg6: memref<32x48xf32, #tpu.memory_space<vmem>>, %arg7: memref<32x32xf32, #tpu.memory_space<vmem>>, %arg8: memref<48x32xf32, #tpu.memory_space<vmem>>, %arg9: memref<1x32xf32, #tpu.memory_space<vmem>>, %arg10: memref<2x8x32xf32, #tpu.memory_space<vmem>>, %arg11: memref<2x32xf32, #tpu.memory_space<vmem>>, %arg12: memref<2x10xf32, #tpu.memory_space<vmem>>, %arg13: memref<2x32xf32, #tpu.memory_space<vmem>>) attributes {dimension_semantics = [#tpu.dimension_semantics<arbitrary>], iteration_bounds = array<i64: 1>, scalar_prefetch = 0 : i64, scratch_operands = 1 : i64, tpu.core_type = #tpu.core_type<tc>, window_params = [{transform_indices = @transform_0, window_bounds = array<i64: 2, 8, 96>}, {pipeline_mode = #tpu.pipeline_mode<synchronous>, transform_indices = @transform_1, window_bounds = array<i64: 2, 10, 48>}, {pipeline_mode = #tpu.pipeline_mode<synchronous>, transform_indices = @transform_2, window_bounds = array<i64: 2, 10>}, {pipeline_mode = #tpu.pipeline_mode<synchronous>, transform_indices = @transform_3, window_bounds = array<i64: 32, 96>}, {pipeline_mode = #tpu.pipeline_mode<synchronous>, transform_indices = @transform_4, window_bounds = array<i64: 1, 32>}, {pipeline_mode = #tpu.pipeline_mode<synchronous>, transform_indices = @transform_5, window_bounds = array<i64: 32, 48>}, {pipeline_mode = #tpu.pipeline_mode<synchronous>, transform_indices = @transform_6, window_bounds = array<i64: 32, 32>}, {pipeline_mode = #tpu.pipeline_mode<synchronous>, transform_indices = @transform_7, window_bounds = array<i64: 48, 32>}, {pipeline_mode = #tpu.pipeline_mode<synchronous>, transform_indices = @transform_8, window_bounds = array<i64: 1, 32>}, {transform_indices = @transform_9, window_bounds = array<i64: 2, 8, 32>}, {pipeline_mode = #tpu.pipeline_mode<synchronous>, transform_indices = @transform_10, window_bounds = array<i64: 2, 32>}, {pipeline_mode = #tpu.pipeline_mode<synchronous>, transform_indices = @transform_11, window_bounds = array<i64: 2, 10>}]} {
    %c0_i32 = arith.constant 0 : i32
    %0 = arith.cmpi eq, %arg0, %c0_i32 : i32
    %1 = arith.extui %0 : i1 to i32
    %c0_i32_0 = arith.constant 0 : i32
    %2 = arith.cmpi ne, %1, %c0_i32_0 : i32
    scf.if %2 {
      %cst_154 = arith.constant 0.000000e+00 : f32
      %525 = vector.broadcast %cst_154 : f32 to vector<2x32xf32>
      %c0_155 = arith.constant 0 : index
      %c0_156 = arith.constant 0 : index
      %526 = vector.load %arg13[%c0_155, %c0_156] : memref<2x32xf32, #tpu.memory_space<vmem>>, vector<2x32xf32>
      tpu.vector_store %arg13[%c0_155, %c0_156], %525 {strides = array<i32>} : memref<2x32xf32, #tpu.memory_space<vmem>>, vector<2x32xf32>,
    } else {
    }
    %c0 = arith.constant 0 : index
    %c0_1 = arith.constant 0 : index
    %c0_2 = arith.constant 0 : index
    %3 = vector.load %arg1[%c0, %c0_1, %c0_2] : memref<2x8x96xf32, #tpu.memory_space<vmem>>, vector<2x8x96xf32>
    %c0_3 = arith.constant 0 : index
    %c0_4 = arith.constant 0 : index
    %c0_5 = arith.constant 0 : index
    %4 = vector.load %arg2[%c0_3, %c0_4, %c0_5] : memref<2x10x48xf32, #tpu.memory_space<vmem>>, vector<2x10x48xf32>
    %c0_6 = arith.constant 0 : index
    %c0_7 = arith.constant 0 : index
    %5 = vector.load %arg3[%c0_6, %c0_7] : memref<2x10xf32, #tpu.memory_space<vmem>>, vector<2x10xf32>
    %c0_8 = arith.constant 0 : index
    %c0_9 = arith.constant 0 : index
    %6 = vector.load %arg4[%c0_8, %c0_9] : memref<32x96xf32, #tpu.memory_space<vmem>>, vector<32x96xf32>
    %c0_10 = arith.constant 0 : index
    %c0_11 = arith.constant 0 : index
    %7 = vector.load %arg6[%c0_10, %c0_11] : memref<32x48xf32, #tpu.memory_space<vmem>>, vector<32x48xf32>
    %c0_12 = arith.constant 0 : index
    %c0_13 = arith.constant 0 : index
    %8 = vector.load %arg7[%c0_12, %c0_13] : memref<32x32xf32, #tpu.memory_space<vmem>>, vector<32x32xf32>
    %c0_14 = arith.constant 0 : index
    %c0_15 = arith.constant 0 : index
    %9 = vector.load %arg8[%c0_14, %c0_15] : memref<48x32xf32, #tpu.memory_space<vmem>>, vector<48x32xf32>
    %c0_16 = arith.constant 0 : index
    %c0_17 = arith.constant 0 : index
    %10 = vector.load %arg5[%c0_16, %c0_17] : memref<1x32xf32, #tpu.memory_space<vmem>>, vector<1x32xf32>
    %11 = vector.shape_cast %10 : vector<1x32xf32> to vector<1x32xf32>
    %12 = vector.broadcast %11 : vector<1x32xf32> to vector<2x32xf32>
    %c0_18 = arith.constant 0 : index
    %c0_19 = arith.constant 0 : index
    %13 = vector.load %arg9[%c0_18, %c0_19] : memref<1x32xf32, #tpu.memory_space<vmem>>, vector<1x32xf32>
    %14 = vector.shape_cast %13 : vector<1x32xf32> to vector<1x32xf32>
    %15 = vector.broadcast %14 : vector<1x32xf32> to vector<2x32xf32>
    %c0_20 = arith.constant 0 : index
    %c0_21 = arith.constant 0 : index
    %16 = vector.load %arg13[%c0_20, %c0_21] : memref<2x32xf32, #tpu.memory_space<vmem>>, vector<2x32xf32>
    %17 = vector.extract_strided_slice %3 {offsets = [0, 0, 0], sizes = [2, 1, 96], strides = [1, 1, 1]} : vector<2x8x96xf32> to vector<2x1x96xf32>
    %18 = vector.shape_cast %17 : vector<2x1x96xf32> to vector<2x96xf32>
    %cst = arith.constant dense<0.000000e+00> : vector<2x96xf32>
    %19 = tpu.matmul %16, %6, %cst {dimension_numbers = #tpu.dot_dimension_numbers<[1], [0], [0], [1], [0, 0, 1, 1], [], []>} : vector<2x32xf32>, vector<32x96xf32>, vector<2x96xf32> -> vector<2x96xf32>
    %20 = vector.extract_strided_slice %18 {offsets = [0, 0], sizes = [2, 32], strides = [1, 1]} : vector<2x96xf32> to vector<2x32xf32>
    %21 = vector.extract_strided_slice %19 {offsets = [0, 0], sizes = [2, 32], strides = [1, 1]} : vector<2x96xf32> to vector<2x32xf32>
    %22 = arith.addf %20, %21 : vector<2x32xf32>
    %23 = arith.negf %22 : vector<2x32xf32>
    %24 = math.exp %23 : vector<2x32xf32>
    %cst_22 = arith.constant 1.000000e+00 : f32
    %25 = vector.broadcast %cst_22 : f32 to vector<2x32xf32>
    %26 = arith.addf %25, %24 : vector<2x32xf32>
    %27 = arith.divf %25, %26 : vector<2x32xf32>
    %28 = vector.extract_strided_slice %18 {offsets = [0, 32], sizes = [2, 32], strides = [1, 1]} : vector<2x96xf32> to vector<2x32xf32>
    %29 = vector.extract_strided_slice %19 {offsets = [0, 32], sizes = [2, 32], strides = [1, 1]} : vector<2x96xf32> to vector<2x32xf32>
    %30 = arith.addf %28, %29 : vector<2x32xf32>
    %31 = arith.negf %30 : vector<2x32xf32>
    %32 = math.exp %31 : vector<2x32xf32>
    %cst_23 = arith.constant 1.000000e+00 : f32
    %33 = vector.broadcast %cst_23 : f32 to vector<2x32xf32>
    %34 = arith.addf %33, %32 : vector<2x32xf32>
    %35 = arith.divf %33, %34 : vector<2x32xf32>
    %36 = vector.extract_strided_slice %18 {offsets = [0, 64], sizes = [2, 32], strides = [1, 1]} : vector<2x96xf32> to vector<2x32xf32>
    %37 = vector.extract_strided_slice %19 {offsets = [0, 64], sizes = [2, 32], strides = [1, 1]} : vector<2x96xf32> to vector<2x32xf32>
    %38 = arith.addf %37, %12 : vector<2x32xf32>
    %39 = arith.mulf %27, %38 : vector<2x32xf32>
    %40 = arith.addf %36, %39 : vector<2x32xf32>
    %41 = math.tanh %40 : vector<2x32xf32>
    %cst_24 = arith.constant 1.000000e+00 : f32
    %42 = vector.broadcast %cst_24 : f32 to vector<2x32xf32>
    %43 = arith.subf %42, %35 : vector<2x32xf32>
    %44 = arith.mulf %43, %41 : vector<2x32xf32>
    %45 = arith.mulf %35, %16 : vector<2x32xf32>
    %46 = arith.addf %44, %45 : vector<2x32xf32>
    %cst_25 = arith.constant dense<0.000000e+00> : vector<2x48xf32>
    %47 = tpu.matmul %46, %7, %cst_25 {dimension_numbers = #tpu.dot_dimension_numbers<[1], [0], [0], [1], [0, 0, 1, 1], [], []>} : vector<2x32xf32>, vector<32x48xf32>, vector<2x48xf32> -> vector<2x48xf32>
    %48 = vector.shape_cast %47 : vector<2x48xf32> to vector<2x1x48xf32>
    "tpu.trace_start"() <{level = 10 : i32, message = "bqc,bsc->bqs"}> : () -> ()
    %cst_26 = arith.constant dense<0.000000e+00> : vector<2x1x10xf32>
    %49 = tpu.matmul %48, %4, %cst_26 {dimension_numbers = #tpu.dot_dimension_numbers<[2], [2], [1], [1], [0, 0, 0, 1, 1, 1], [0], [0]>} : vector<2x1x48xf32>, vector<2x10x48xf32>, vector<2x1x10xf32> -> vector<2x1x10xf32>
    "tpu.trace_stop"() : () -> ()
    %50 = vector.shape_cast %49 : vector<2x1x10xf32> to vector<2x10xf32>
    %cst_27 = arith.constant dense<0xFF800000> : vector<2xf32>
    %51 = vector.multi_reduction <maximumf>, %50, %cst_27 [1] : vector<2x10xf32> to vector<2xf32>
    %52 = vector.shape_cast %51 : vector<2xf32> to vector<2x1xf32>
    %53 = vector.broadcast %52 : vector<2x1xf32> to vector<2x10xf32>
    %54 = arith.subf %50, %53 : vector<2x10xf32>
    %55 = math.exp %54 : vector<2x10xf32>
    %cst_28 = arith.constant dense<0.000000e+00> : vector<2xf32>
    %56 = vector.multi_reduction <add>, %55, %cst_28 [1] : vector<2x10xf32> to vector<2xf32>
    %57 = vector.shape_cast %56 : vector<2xf32> to vector<2x1xf32>
    %58 = arith.mulf %55, %5 : vector<2x10xf32>
    %cst_29 = arith.constant dense<0.000000e+00> : vector<2xf32>
    %59 = vector.multi_reduction <add>, %58, %cst_29 [1] : vector<2x10xf32> to vector<2xf32>
    %60 = vector.shape_cast %59 : vector<2xf32> to vector<2x1xf32>
    %cst_30 = arith.constant 9.99999996E-13 : f32
    %61 = vector.broadcast %cst_30 : f32 to vector<2x1xf32>
    %62 = arith.mulf %61, %57 : vector<2x1xf32>
    %63 = arith.addf %60, %62 : vector<2x1xf32>
    %64 = tpu.reciprocal %63 {approx = true} : vector<2x1xf32> -> vector<2x1xf32>
    %65 = arith.mulf %63, %64 : vector<2x1xf32>
    %cst_31 = arith.constant 2.000000e+00 : f32
    %66 = vector.broadcast %cst_31 : f32 to vector<2x1xf32>
    %67 = arith.subf %66, %65 : vector<2x1xf32>
    %68 = arith.mulf %64, %67 : vector<2x1xf32>
    %69 = vector.broadcast %68 : vector<2x1xf32> to vector<2x10xf32>
    %70 = arith.mulf %58, %69 : vector<2x10xf32>
    %71 = vector.shape_cast %70 : vector<2x10xf32> to vector<2x1x10xf32>
    "tpu.trace_start"() <{level = 10 : i32, message = "bqs,bsc->bqc"}> : () -> ()
    %cst_32 = arith.constant dense<0.000000e+00> : vector<2x1x48xf32>
    %72 = tpu.matmul %71, %4, %cst_32 {dimension_numbers = #tpu.dot_dimension_numbers<[2], [1], [1], [2], [0, 0, 0, 1, 1, 2], [0], [0]>} : vector<2x1x10xf32>, vector<2x10x48xf32>, vector<2x1x48xf32> -> vector<2x1x48xf32>
    "tpu.trace_stop"() : () -> ()
    %73 = vector.shape_cast %72 : vector<2x1x48xf32> to vector<2x48xf32>
    %cst_33 = arith.constant dense<0.000000e+00> : vector<2x32xf32>
    %74 = tpu.matmul %46, %8, %cst_33 {dimension_numbers = #tpu.dot_dimension_numbers<[1], [0], [0], [1], [0, 0, 1, 1], [], []>} : vector<2x32xf32>, vector<32x32xf32>, vector<2x32xf32> -> vector<2x32xf32>
    %cst_34 = arith.constant dense<0.000000e+00> : vector<2x32xf32>
    %75 = tpu.matmul %73, %9, %cst_34 {dimension_numbers = #tpu.dot_dimension_numbers<[1], [0], [0], [1], [0, 0, 1, 1], [], []>} : vector<2x48xf32>, vector<48x32xf32>, vector<2x32xf32> -> vector<2x32xf32>
    %76 = arith.addf %74, %75 : vector<2x32xf32>
    %77 = arith.addf %76, %15 : vector<2x32xf32>
    %78 = vector.shape_cast %77 : vector<2x32xf32> to vector<2x1x32xf32>
    %c0_35 = arith.constant 0 : index
    %c0_36 = arith.constant 0 : index
    %c0_37 = arith.constant 0 : index
    %79 = vector.load %arg10[%c0_35, %c0_36, %c0_37] : memref<2x8x32xf32, #tpu.memory_space<vmem>>, vector<2x1x32xf32>
    tpu.vector_store %arg10[%c0_35, %c0_36, %c0_37], %78 {strides = array<i32>} : memref<2x8x32xf32, #tpu.memory_space<vmem>>, vector<2x1x32xf32>,
    %80 = vector.extract_strided_slice %3 {offsets = [0, 1, 0], sizes = [2, 1, 96], strides = [1, 1, 1]} : vector<2x8x96xf32> to vector<2x1x96xf32>
    %81 = vector.shape_cast %80 : vector<2x1x96xf32> to vector<2x96xf32>
    %cst_38 = arith.constant dense<0.000000e+00> : vector<2x96xf32>
    %82 = tpu.matmul %46, %6, %cst_38 {dimension_numbers = #tpu.dot_dimension_numbers<[1], [0], [0], [1], [0, 0, 1, 1], [], []>} : vector<2x32xf32>, vector<32x96xf32>, vector<2x96xf32> -> vector<2x96xf32>
    %83 = vector.extract_strided_slice %81 {offsets = [0, 0], sizes = [2, 32], strides = [1, 1]} : vector<2x96xf32> to vector<2x32xf32>
    %84 = vector.extract_strided_slice %82 {offsets = [0, 0], sizes = [2, 32], strides = [1, 1]} : vector<2x96xf32> to vector<2x32xf32>
    %85 = arith.addf %83, %84 : vector<2x32xf32>
    %86 = arith.negf %85 : vector<2x32xf32>
    %87 = math.exp %86 : vector<2x32xf32>
    %cst_39 = arith.constant 1.000000e+00 : f32
    %88 = vector.broadcast %cst_39 : f32 to vector<2x32xf32>
    %89 = arith.addf %88, %87 : vector<2x32xf32>
    %90 = arith.divf %88, %89 : vector<2x32xf32>
    %91 = vector.extract_strided_slice %81 {offsets = [0, 32], sizes = [2, 32], strides = [1, 1]} : vector<2x96xf32> to vector<2x32xf32>
    %92 = vector.extract_strided_slice %82 {offsets = [0, 32], sizes = [2, 32], strides = [1, 1]} : vector<2x96xf32> to vector<2x32xf32>
    %93 = arith.addf %91, %92 : vector<2x32xf32>
    %94 = arith.negf %93 : vector<2x32xf32>
    %95 = math.exp %94 : vector<2x32xf32>
    %cst_40 = arith.constant 1.000000e+00 : f32
    %96 = vector.broadcast %cst_40 : f32 to vector<2x32xf32>
    %97 = arith.addf %96, %95 : vector<2x32xf32>
    %98 = arith.divf %96, %97 : vector<2x32xf32>
    %99 = vector.extract_strided_slice %81 {offsets = [0, 64], sizes = [2, 32], strides = [1, 1]} : vector<2x96xf32> to vector<2x32xf32>
    %100 = vector.extract_strided_slice %82 {offsets = [0, 64], sizes = [2, 32], strides = [1, 1]} : vector<2x96xf32> to vector<2x32xf32>
    %101 = arith.addf %100, %12 : vector<2x32xf32>
    %102 = arith.mulf %90, %101 : vector<2x32xf32>
    %103 = arith.addf %99, %102 : vector<2x32xf32>
    %104 = math.tanh %103 : vector<2x32xf32>
    %cst_41 = arith.constant 1.000000e+00 : f32
    %105 = vector.broadcast %cst_41 : f32 to vector<2x32xf32>
    %106 = arith.subf %105, %98 : vector<2x32xf32>
    %107 = arith.mulf %106, %104 : vector<2x32xf32>
    %108 = arith.mulf %98, %46 : vector<2x32xf32>
    %109 = arith.addf %107, %108 : vector<2x32xf32>
    %cst_42 = arith.constant dense<0.000000e+00> : vector<2x48xf32>
    %110 = tpu.matmul %109, %7, %cst_42 {dimension_numbers = #tpu.dot_dimension_numbers<[1], [0], [0], [1], [0, 0, 1, 1], [], []>} : vector<2x32xf32>, vector<32x48xf32>, vector<2x48xf32> -> vector<2x48xf32>
    %111 = vector.shape_cast %110 : vector<2x48xf32> to vector<2x1x48xf32>
    "tpu.trace_start"() <{level = 10 : i32, message = "bqc,bsc->bqs"}> : () -> ()
    %cst_43 = arith.constant dense<0.000000e+00> : vector<2x1x10xf32>
    %112 = tpu.matmul %111, %4, %cst_43 {dimension_numbers = #tpu.dot_dimension_numbers<[2], [2], [1], [1], [0, 0, 0, 1, 1, 1], [0], [0]>} : vector<2x1x48xf32>, vector<2x10x48xf32>, vector<2x1x10xf32> -> vector<2x1x10xf32>
    "tpu.trace_stop"() : () -> ()
    %113 = vector.shape_cast %112 : vector<2x1x10xf32> to vector<2x10xf32>
    %cst_44 = arith.constant dense<0xFF800000> : vector<2xf32>
    %114 = vector.multi_reduction <maximumf>, %113, %cst_44 [1] : vector<2x10xf32> to vector<2xf32>
    %115 = vector.shape_cast %114 : vector<2xf32> to vector<2x1xf32>
    %116 = vector.broadcast %115 : vector<2x1xf32> to vector<2x10xf32>
    %117 = arith.subf %113, %116 : vector<2x10xf32>
    %118 = math.exp %117 : vector<2x10xf32>
    %cst_45 = arith.constant dense<0.000000e+00> : vector<2xf32>
    %119 = vector.multi_reduction <add>, %118, %cst_45 [1] : vector<2x10xf32> to vector<2xf32>
    %120 = vector.shape_cast %119 : vector<2xf32> to vector<2x1xf32>
    %121 = arith.mulf %118, %5 : vector<2x10xf32>
    %cst_46 = arith.constant dense<0.000000e+00> : vector<2xf32>
    %122 = vector.multi_reduction <add>, %121, %cst_46 [1] : vector<2x10xf32> to vector<2xf32>
    %123 = vector.shape_cast %122 : vector<2xf32> to vector<2x1xf32>
    %cst_47 = arith.constant 9.99999996E-13 : f32
    %124 = vector.broadcast %cst_47 : f32 to vector<2x1xf32>
    %125 = arith.mulf %124, %120 : vector<2x1xf32>
    %126 = arith.addf %123, %125 : vector<2x1xf32>
    %127 = tpu.reciprocal %126 {approx = true} : vector<2x1xf32> -> vector<2x1xf32>
    %128 = arith.mulf %126, %127 : vector<2x1xf32>
    %cst_48 = arith.constant 2.000000e+00 : f32
    %129 = vector.broadcast %cst_48 : f32 to vector<2x1xf32>
    %130 = arith.subf %129, %128 : vector<2x1xf32>
    %131 = arith.mulf %127, %130 : vector<2x1xf32>
    %132 = vector.broadcast %131 : vector<2x1xf32> to vector<2x10xf32>
    %133 = arith.mulf %121, %132 : vector<2x10xf32>
    %134 = vector.shape_cast %133 : vector<2x10xf32> to vector<2x1x10xf32>
    "tpu.trace_start"() <{level = 10 : i32, message = "bqs,bsc->bqc"}> : () -> ()
    %cst_49 = arith.constant dense<0.000000e+00> : vector<2x1x48xf32>
    %135 = tpu.matmul %134, %4, %cst_49 {dimension_numbers = #tpu.dot_dimension_numbers<[2], [1], [1], [2], [0, 0, 0, 1, 1, 2], [0], [0]>} : vector<2x1x10xf32>, vector<2x10x48xf32>, vector<2x1x48xf32> -> vector<2x1x48xf32>
    "tpu.trace_stop"() : () -> ()
    %136 = vector.shape_cast %135 : vector<2x1x48xf32> to vector<2x48xf32>
    %cst_50 = arith.constant dense<0.000000e+00> : vector<2x32xf32>
    %137 = tpu.matmul %109, %8, %cst_50 {dimension_numbers = #tpu.dot_dimension_numbers<[1], [0], [0], [1], [0, 0, 1, 1], [], []>} : vector<2x32xf32>, vector<32x32xf32>, vector<2x32xf32> -> vector<2x32xf32>
    %cst_51 = arith.constant dense<0.000000e+00> : vector<2x32xf32>
    %138 = tpu.matmul %136, %9, %cst_51 {dimension_numbers = #tpu.dot_dimension_numbers<[1], [0], [0], [1], [0, 0, 1, 1], [], []>} : vector<2x48xf32>, vector<48x32xf32>, vector<2x32xf32> -> vector<2x32xf32>
    %139 = arith.addf %137, %138 : vector<2x32xf32>
    %140 = arith.addf %139, %15 : vector<2x32xf32>
    %141 = vector.shape_cast %140 : vector<2x32xf32> to vector<2x1x32xf32>
    %c0_52 = arith.constant 0 : index
    %c1 = arith.constant 1 : index
    %c0_53 = arith.constant 0 : index
    %142 = vector.load %arg10[%c0_52, %c1, %c0_53] : memref<2x8x32xf32, #tpu.memory_space<vmem>>, vector<2x1x32xf32>
    tpu.vector_store %arg10[%c0_52, %c1, %c0_53], %141 {strides = array<i32>} : memref<2x8x32xf32, #tpu.memory_space<vmem>>, vector<2x1x32xf32>,
    %143 = vector.extract_strided_slice %3 {offsets = [0, 2, 0], sizes = [2, 1, 96], strides = [1, 1, 1]} : vector<2x8x96xf32> to vector<2x1x96xf32>
    %144 = vector.shape_cast %143 : vector<2x1x96xf32> to vector<2x96xf32>
    %cst_54 = arith.constant dense<0.000000e+00> : vector<2x96xf32>
    %145 = tpu.matmul %109, %6, %cst_54 {dimension_numbers = #tpu.dot_dimension_numbers<[1], [0], [0], [1], [0, 0, 1, 1], [], []>} : vector<2x32xf32>, vector<32x96xf32>, vector<2x96xf32> -> vector<2x96xf32>
    %146 = vector.extract_strided_slice %144 {offsets = [0, 0], sizes = [2, 32], strides = [1, 1]} : vector<2x96xf32> to vector<2x32xf32>
    %147 = vector.extract_strided_slice %145 {offsets = [0, 0], sizes = [2, 32], strides = [1, 1]} : vector<2x96xf32> to vector<2x32xf32>
    %148 = arith.addf %146, %147 : vector<2x32xf32>
    %149 = arith.negf %148 : vector<2x32xf32>
    %150 = math.exp %149 : vector<2x32xf32>
    %cst_55 = arith.constant 1.000000e+00 : f32
    %151 = vector.broadcast %cst_55 : f32 to vector<2x32xf32>
    %152 = arith.addf %151, %150 : vector<2x32xf32>
    %153 = arith.divf %151, %152 : vector<2x32xf32>
    %154 = vector.extract_strided_slice %144 {offsets = [0, 32], sizes = [2, 32], strides = [1, 1]} : vector<2x96xf32> to vector<2x32xf32>
    %155 = vector.extract_strided_slice %145 {offsets = [0, 32], sizes = [2, 32], strides = [1, 1]} : vector<2x96xf32> to vector<2x32xf32>
    %156 = arith.addf %154, %155 : vector<2x32xf32>
    %157 = arith.negf %156 : vector<2x32xf32>
    %158 = math.exp %157 : vector<2x32xf32>
    %cst_56 = arith.constant 1.000000e+00 : f32
    %159 = vector.broadcast %cst_56 : f32 to vector<2x32xf32>
    %160 = arith.addf %159, %158 : vector<2x32xf32>
    %161 = arith.divf %159, %160 : vector<2x32xf32>
    %162 = vector.extract_strided_slice %144 {offsets = [0, 64], sizes = [2, 32], strides = [1, 1]} : vector<2x96xf32> to vector<2x32xf32>
    %163 = vector.extract_strided_slice %145 {offsets = [0, 64], sizes = [2, 32], strides = [1, 1]} : vector<2x96xf32> to vector<2x32xf32>
    %164 = arith.addf %163, %12 : vector<2x32xf32>
    %165 = arith.mulf %153, %164 : vector<2x32xf32>
    %166 = arith.addf %162, %165 : vector<2x32xf32>
    %167 = math.tanh %166 : vector<2x32xf32>
    %cst_57 = arith.constant 1.000000e+00 : f32
    %168 = vector.broadcast %cst_57 : f32 to vector<2x32xf32>
    %169 = arith.subf %168, %161 : vector<2x32xf32>
    %170 = arith.mulf %169, %167 : vector<2x32xf32>
    %171 = arith.mulf %161, %109 : vector<2x32xf32>
    %172 = arith.addf %170, %171 : vector<2x32xf32>
    %cst_58 = arith.constant dense<0.000000e+00> : vector<2x48xf32>
    %173 = tpu.matmul %172, %7, %cst_58 {dimension_numbers = #tpu.dot_dimension_numbers<[1], [0], [0], [1], [0, 0, 1, 1], [], []>} : vector<2x32xf32>, vector<32x48xf32>, vector<2x48xf32> -> vector<2x48xf32>
    %174 = vector.shape_cast %173 : vector<2x48xf32> to vector<2x1x48xf32>
    "tpu.trace_start"() <{level = 10 : i32, message = "bqc,bsc->bqs"}> : () -> ()
    %cst_59 = arith.constant dense<0.000000e+00> : vector<2x1x10xf32>
    %175 = tpu.matmul %174, %4, %cst_59 {dimension_numbers = #tpu.dot_dimension_numbers<[2], [2], [1], [1], [0, 0, 0, 1, 1, 1], [0], [0]>} : vector<2x1x48xf32>, vector<2x10x48xf32>, vector<2x1x10xf32> -> vector<2x1x10xf32>
    "tpu.trace_stop"() : () -> ()
    %176 = vector.shape_cast %175 : vector<2x1x10xf32> to vector<2x10xf32>
    %cst_60 = arith.constant dense<0xFF800000> : vector<2xf32>
    %177 = vector.multi_reduction <maximumf>, %176, %cst_60 [1] : vector<2x10xf32> to vector<2xf32>
    %178 = vector.shape_cast %177 : vector<2xf32> to vector<2x1xf32>
    %179 = vector.broadcast %178 : vector<2x1xf32> to vector<2x10xf32>
    %180 = arith.subf %176, %179 : vector<2x10xf32>
    %181 = math.exp %180 : vector<2x10xf32>
    %cst_61 = arith.constant dense<0.000000e+00> : vector<2xf32>
    %182 = vector.multi_reduction <add>, %181, %cst_61 [1] : vector<2x10xf32> to vector<2xf32>
    %183 = vector.shape_cast %182 : vector<2xf32> to vector<2x1xf32>
    %184 = arith.mulf %181, %5 : vector<2x10xf32>
    %cst_62 = arith.constant dense<0.000000e+00> : vector<2xf32>
    %185 = vector.multi_reduction <add>, %184, %cst_62 [1] : vector<2x10xf32> to vector<2xf32>
    %186 = vector.shape_cast %185 : vector<2xf32> to vector<2x1xf32>
    %cst_63 = arith.constant 9.99999996E-13 : f32
    %187 = vector.broadcast %cst_63 : f32 to vector<2x1xf32>
    %188 = arith.mulf %187, %183 : vector<2x1xf32>
    %189 = arith.addf %186, %188 : vector<2x1xf32>
    %190 = tpu.reciprocal %189 {approx = true} : vector<2x1xf32> -> vector<2x1xf32>
    %191 = arith.mulf %189, %190 : vector<2x1xf32>
    %cst_64 = arith.constant 2.000000e+00 : f32
    %192 = vector.broadcast %cst_64 : f32 to vector<2x1xf32>
    %193 = arith.subf %192, %191 : vector<2x1xf32>
    %194 = arith.mulf %190, %193 : vector<2x1xf32>
    %195 = vector.broadcast %194 : vector<2x1xf32> to vector<2x10xf32>
    %196 = arith.mulf %184, %195 : vector<2x10xf32>
    %197 = vector.shape_cast %196 : vector<2x10xf32> to vector<2x1x10xf32>
    "tpu.trace_start"() <{level = 10 : i32, message = "bqs,bsc->bqc"}> : () -> ()
    %cst_65 = arith.constant dense<0.000000e+00> : vector<2x1x48xf32>
    %198 = tpu.matmul %197, %4, %cst_65 {dimension_numbers = #tpu.dot_dimension_numbers<[2], [1], [1], [2], [0, 0, 0, 1, 1, 2], [0], [0]>} : vector<2x1x10xf32>, vector<2x10x48xf32>, vector<2x1x48xf32> -> vector<2x1x48xf32>
    "tpu.trace_stop"() : () -> ()
    %199 = vector.shape_cast %198 : vector<2x1x48xf32> to vector<2x48xf32>
    %cst_66 = arith.constant dense<0.000000e+00> : vector<2x32xf32>
    %200 = tpu.matmul %172, %8, %cst_66 {dimension_numbers = #tpu.dot_dimension_numbers<[1], [0], [0], [1], [0, 0, 1, 1], [], []>} : vector<2x32xf32>, vector<32x32xf32>, vector<2x32xf32> -> vector<2x32xf32>
    %cst_67 = arith.constant dense<0.000000e+00> : vector<2x32xf32>
    %201 = tpu.matmul %199, %9, %cst_67 {dimension_numbers = #tpu.dot_dimension_numbers<[1], [0], [0], [1], [0, 0, 1, 1], [], []>} : vector<2x48xf32>, vector<48x32xf32>, vector<2x32xf32> -> vector<2x32xf32>
    %202 = arith.addf %200, %201 : vector<2x32xf32>
    %203 = arith.addf %202, %15 : vector<2x32xf32>
    %204 = vector.shape_cast %203 : vector<2x32xf32> to vector<2x1x32xf32>
    %c0_68 = arith.constant 0 : index
    %c2 = arith.constant 2 : index
    %c0_69 = arith.constant 0 : index
    %205 = vector.load %arg10[%c0_68, %c2, %c0_69] : memref<2x8x32xf32, #tpu.memory_space<vmem>>, vector<2x1x32xf32>
    tpu.vector_store %arg10[%c0_68, %c2, %c0_69], %204 {strides = array<i32>} : memref<2x8x32xf32, #tpu.memory_space<vmem>>, vector<2x1x32xf32>,
    %206 = vector.extract_strided_slice %3 {offsets = [0, 3, 0], sizes = [2, 1, 96], strides = [1, 1, 1]} : vector<2x8x96xf32> to vector<2x1x96xf32>
    %207 = vector.shape_cast %206 : vector<2x1x96xf32> to vector<2x96xf32>
    %cst_70 = arith.constant dense<0.000000e+00> : vector<2x96xf32>
    %208 = tpu.matmul %172, %6, %cst_70 {dimension_numbers = #tpu.dot_dimension_numbers<[1], [0], [0], [1], [0, 0, 1, 1], [], []>} : vector<2x32xf32>, vector<32x96xf32>, vector<2x96xf32> -> vector<2x96xf32>
    %209 = vector.extract_strided_slice %207 {offsets = [0, 0], sizes = [2, 32], strides = [1, 1]} : vector<2x96xf32> to vector<2x32xf32>
    %210 = vector.extract_strided_slice %208 {offsets = [0, 0], sizes = [2, 32], strides = [1, 1]} : vector<2x96xf32> to vector<2x32xf32>
    %211 = arith.addf %209, %210 : vector<2x32xf32>
    %212 = arith.negf %211 : vector<2x32xf32>
    %213 = math.exp %212 : vector<2x32xf32>
    %cst_71 = arith.constant 1.000000e+00 : f32
    %214 = vector.broadcast %cst_71 : f32 to vector<2x32xf32>
    %215 = arith.addf %214, %213 : vector<2x32xf32>
    %216 = arith.divf %214, %215 : vector<2x32xf32>
    %217 = vector.extract_strided_slice %207 {offsets = [0, 32], sizes = [2, 32], strides = [1, 1]} : vector<2x96xf32> to vector<2x32xf32>
    %218 = vector.extract_strided_slice %208 {offsets = [0, 32], sizes = [2, 32], strides = [1, 1]} : vector<2x96xf32> to vector<2x32xf32>
    %219 = arith.addf %217, %218 : vector<2x32xf32>
    %220 = arith.negf %219 : vector<2x32xf32>
    %221 = math.exp %220 : vector<2x32xf32>
    %cst_72 = arith.constant 1.000000e+00 : f32
    %222 = vector.broadcast %cst_72 : f32 to vector<2x32xf32>
    %223 = arith.addf %222, %221 : vector<2x32xf32>
    %224 = arith.divf %222, %223 : vector<2x32xf32>
    %225 = vector.extract_strided_slice %207 {offsets = [0, 64], sizes = [2, 32], strides = [1, 1]} : vector<2x96xf32> to vector<2x32xf32>
    %226 = vector.extract_strided_slice %208 {offsets = [0, 64], sizes = [2, 32], strides = [1, 1]} : vector<2x96xf32> to vector<2x32xf32>
    %227 = arith.addf %226, %12 : vector<2x32xf32>
    %228 = arith.mulf %216, %227 : vector<2x32xf32>
    %229 = arith.addf %225, %228 : vector<2x32xf32>
    %230 = math.tanh %229 : vector<2x32xf32>
    %cst_73 = arith.constant 1.000000e+00 : f32
    %231 = vector.broadcast %cst_73 : f32 to vector<2x32xf32>
    %232 = arith.subf %231, %224 : vector<2x32xf32>
    %233 = arith.mulf %232, %230 : vector<2x32xf32>
    %234 = arith.mulf %224, %172 : vector<2x32xf32>
    %235 = arith.addf %233, %234 : vector<2x32xf32>
    %cst_74 = arith.constant dense<0.000000e+00> : vector<2x48xf32>
    %236 = tpu.matmul %235, %7, %cst_74 {dimension_numbers = #tpu.dot_dimension_numbers<[1], [0], [0], [1], [0, 0, 1, 1], [], []>} : vector<2x32xf32>, vector<32x48xf32>, vector<2x48xf32> -> vector<2x48xf32>
    %237 = vector.shape_cast %236 : vector<2x48xf32> to vector<2x1x48xf32>
    "tpu.trace_start"() <{level = 10 : i32, message = "bqc,bsc->bqs"}> : () -> ()
    %cst_75 = arith.constant dense<0.000000e+00> : vector<2x1x10xf32>
    %238 = tpu.matmul %237, %4, %cst_75 {dimension_numbers = #tpu.dot_dimension_numbers<[2], [2], [1], [1], [0, 0, 0, 1, 1, 1], [0], [0]>} : vector<2x1x48xf32>, vector<2x10x48xf32>, vector<2x1x10xf32> -> vector<2x1x10xf32>
    "tpu.trace_stop"() : () -> ()
    %239 = vector.shape_cast %238 : vector<2x1x10xf32> to vector<2x10xf32>
    %cst_76 = arith.constant dense<0xFF800000> : vector<2xf32>
    %240 = vector.multi_reduction <maximumf>, %239, %cst_76 [1] : vector<2x10xf32> to vector<2xf32>
    %241 = vector.shape_cast %240 : vector<2xf32> to vector<2x1xf32>
    %242 = vector.broadcast %241 : vector<2x1xf32> to vector<2x10xf32>
    %243 = arith.subf %239, %242 : vector<2x10xf32>
    %244 = math.exp %243 : vector<2x10xf32>
    %cst_77 = arith.constant dense<0.000000e+00> : vector<2xf32>
    %245 = vector.multi_reduction <add>, %244, %cst_77 [1] : vector<2x10xf32> to vector<2xf32>
    %246 = vector.shape_cast %245 : vector<2xf32> to vector<2x1xf32>
    %247 = arith.mulf %244, %5 : vector<2x10xf32>
    %cst_78 = arith.constant dense<0.000000e+00> : vector<2xf32>
    %248 = vector.multi_reduction <add>, %247, %cst_78 [1] : vector<2x10xf32> to vector<2xf32>
    %249 = vector.shape_cast %248 : vector<2xf32> to vector<2x1xf32>
    %cst_79 = arith.constant 9.99999996E-13 : f32
    %250 = vector.broadcast %cst_79 : f32 to vector<2x1xf32>
    %251 = arith.mulf %250, %246 : vector<2x1xf32>
    %252 = arith.addf %249, %251 : vector<2x1xf32>
    %253 = tpu.reciprocal %252 {approx = true} : vector<2x1xf32> -> vector<2x1xf32>
    %254 = arith.mulf %252, %253 : vector<2x1xf32>
    %cst_80 = arith.constant 2.000000e+00 : f32
    %255 = vector.broadcast %cst_80 : f32 to vector<2x1xf32>
    %256 = arith.subf %255, %254 : vector<2x1xf32>
    %257 = arith.mulf %253, %256 : vector<2x1xf32>
    %258 = vector.broadcast %257 : vector<2x1xf32> to vector<2x10xf32>
    %259 = arith.mulf %247, %258 : vector<2x10xf32>
    %260 = vector.shape_cast %259 : vector<2x10xf32> to vector<2x1x10xf32>
    "tpu.trace_start"() <{level = 10 : i32, message = "bqs,bsc->bqc"}> : () -> ()
    %cst_81 = arith.constant dense<0.000000e+00> : vector<2x1x48xf32>
    %261 = tpu.matmul %260, %4, %cst_81 {dimension_numbers = #tpu.dot_dimension_numbers<[2], [1], [1], [2], [0, 0, 0, 1, 1, 2], [0], [0]>} : vector<2x1x10xf32>, vector<2x10x48xf32>, vector<2x1x48xf32> -> vector<2x1x48xf32>
    "tpu.trace_stop"() : () -> ()
    %262 = vector.shape_cast %261 : vector<2x1x48xf32> to vector<2x48xf32>
    %cst_82 = arith.constant dense<0.000000e+00> : vector<2x32xf32>
    %263 = tpu.matmul %235, %8, %cst_82 {dimension_numbers = #tpu.dot_dimension_numbers<[1], [0], [0], [1], [0, 0, 1, 1], [], []>} : vector<2x32xf32>, vector<32x32xf32>, vector<2x32xf32> -> vector<2x32xf32>
    %cst_83 = arith.constant dense<0.000000e+00> : vector<2x32xf32>
    %264 = tpu.matmul %262, %9, %cst_83 {dimension_numbers = #tpu.dot_dimension_numbers<[1], [0], [0], [1], [0, 0, 1, 1], [], []>} : vector<2x48xf32>, vector<48x32xf32>, vector<2x32xf32> -> vector<2x32xf32>
    %265 = arith.addf %263, %264 : vector<2x32xf32>
    %266 = arith.addf %265, %15 : vector<2x32xf32>
    %267 = vector.shape_cast %266 : vector<2x32xf32> to vector<2x1x32xf32>
    %c0_84 = arith.constant 0 : index
    %c3 = arith.constant 3 : index
    %c0_85 = arith.constant 0 : index
    %268 = vector.load %arg10[%c0_84, %c3, %c0_85] : memref<2x8x32xf32, #tpu.memory_space<vmem>>, vector<2x1x32xf32>
    tpu.vector_store %arg10[%c0_84, %c3, %c0_85], %267 {strides = array<i32>} : memref<2x8x32xf32, #tpu.memory_space<vmem>>, vector<2x1x32xf32>,
    %269 = vector.extract_strided_slice %3 {offsets = [0, 4, 0], sizes = [2, 1, 96], strides = [1, 1, 1]} : vector<2x8x96xf32> to vector<2x1x96xf32>
    %270 = vector.shape_cast %269 : vector<2x1x96xf32> to vector<2x96xf32>
    %cst_86 = arith.constant dense<0.000000e+00> : vector<2x96xf32>
    %271 = tpu.matmul %235, %6, %cst_86 {dimension_numbers = #tpu.dot_dimension_numbers<[1], [0], [0], [1], [0, 0, 1, 1], [], []>} : vector<2x32xf32>, vector<32x96xf32>, vector<2x96xf32> -> vector<2x96xf32>
    %272 = vector.extract_strided_slice %270 {offsets = [0, 0], sizes = [2, 32], strides = [1, 1]} : vector<2x96xf32> to vector<2x32xf32>
    %273 = vector.extract_strided_slice %271 {offsets = [0, 0], sizes = [2, 32], strides = [1, 1]} : vector<2x96xf32> to vector<2x32xf32>
    %274 = arith.addf %272, %273 : vector<2x32xf32>
    %275 = arith.negf %274 : vector<2x32xf32>
    %276 = math.exp %275 : vector<2x32xf32>
    %cst_87 = arith.constant 1.000000e+00 : f32
    %277 = vector.broadcast %cst_87 : f32 to vector<2x32xf32>
    %278 = arith.addf %277, %276 : vector<2x32xf32>
    %279 = arith.divf %277, %278 : vector<2x32xf32>
    %280 = vector.extract_strided_slice %270 {offsets = [0, 32], sizes = [2, 32], strides = [1, 1]} : vector<2x96xf32> to vector<2x32xf32>
    %281 = vector.extract_strided_slice %271 {offsets = [0, 32], sizes = [2, 32], strides = [1, 1]} : vector<2x96xf32> to vector<2x32xf32>
    %282 = arith.addf %280, %281 : vector<2x32xf32>
    %283 = arith.negf %282 : vector<2x32xf32>
    %284 = math.exp %283 : vector<2x32xf32>
    %cst_88 = arith.constant 1.000000e+00 : f32
    %285 = vector.broadcast %cst_88 : f32 to vector<2x32xf32>
    %286 = arith.addf %285, %284 : vector<2x32xf32>
    %287 = arith.divf %285, %286 : vector<2x32xf32>
    %288 = vector.extract_strided_slice %270 {offsets = [0, 64], sizes = [2, 32], strides = [1, 1]} : vector<2x96xf32> to vector<2x32xf32>
    %289 = vector.extract_strided_slice %271 {offsets = [0, 64], sizes = [2, 32], strides = [1, 1]} : vector<2x96xf32> to vector<2x32xf32>
    %290 = arith.addf %289, %12 : vector<2x32xf32>
    %291 = arith.mulf %279, %290 : vector<2x32xf32>
    %292 = arith.addf %288, %291 : vector<2x32xf32>
    %293 = math.tanh %292 : vector<2x32xf32>
    %cst_89 = arith.constant 1.000000e+00 : f32
    %294 = vector.broadcast %cst_89 : f32 to vector<2x32xf32>
    %295 = arith.subf %294, %287 : vector<2x32xf32>
    %296 = arith.mulf %295, %293 : vector<2x32xf32>
    %297 = arith.mulf %287, %235 : vector<2x32xf32>
    %298 = arith.addf %296, %297 : vector<2x32xf32>
    %cst_90 = arith.constant dense<0.000000e+00> : vector<2x48xf32>
    %299 = tpu.matmul %298, %7, %cst_90 {dimension_numbers = #tpu.dot_dimension_numbers<[1], [0], [0], [1], [0, 0, 1, 1], [], []>} : vector<2x32xf32>, vector<32x48xf32>, vector<2x48xf32> -> vector<2x48xf32>
    %300 = vector.shape_cast %299 : vector<2x48xf32> to vector<2x1x48xf32>
    "tpu.trace_start"() <{level = 10 : i32, message = "bqc,bsc->bqs"}> : () -> ()
    %cst_91 = arith.constant dense<0.000000e+00> : vector<2x1x10xf32>
    %301 = tpu.matmul %300, %4, %cst_91 {dimension_numbers = #tpu.dot_dimension_numbers<[2], [2], [1], [1], [0, 0, 0, 1, 1, 1], [0], [0]>} : vector<2x1x48xf32>, vector<2x10x48xf32>, vector<2x1x10xf32> -> vector<2x1x10xf32>
    "tpu.trace_stop"() : () -> ()
    %302 = vector.shape_cast %301 : vector<2x1x10xf32> to vector<2x10xf32>
    %cst_92 = arith.constant dense<0xFF800000> : vector<2xf32>
    %303 = vector.multi_reduction <maximumf>, %302, %cst_92 [1] : vector<2x10xf32> to vector<2xf32>
    %304 = vector.shape_cast %303 : vector<2xf32> to vector<2x1xf32>
    %305 = vector.broadcast %304 : vector<2x1xf32> to vector<2x10xf32>
    %306 = arith.subf %302, %305 : vector<2x10xf32>
    %307 = math.exp %306 : vector<2x10xf32>
    %cst_93 = arith.constant dense<0.000000e+00> : vector<2xf32>
    %308 = vector.multi_reduction <add>, %307, %cst_93 [1] : vector<2x10xf32> to vector<2xf32>
    %309 = vector.shape_cast %308 : vector<2xf32> to vector<2x1xf32>
    %310 = arith.mulf %307, %5 : vector<2x10xf32>
    %cst_94 = arith.constant dense<0.000000e+00> : vector<2xf32>
    %311 = vector.multi_reduction <add>, %310, %cst_94 [1] : vector<2x10xf32> to vector<2xf32>
    %312 = vector.shape_cast %311 : vector<2xf32> to vector<2x1xf32>
    %cst_95 = arith.constant 9.99999996E-13 : f32
    %313 = vector.broadcast %cst_95 : f32 to vector<2x1xf32>
    %314 = arith.mulf %313, %309 : vector<2x1xf32>
    %315 = arith.addf %312, %314 : vector<2x1xf32>
    %316 = tpu.reciprocal %315 {approx = true} : vector<2x1xf32> -> vector<2x1xf32>
    %317 = arith.mulf %315, %316 : vector<2x1xf32>
    %cst_96 = arith.constant 2.000000e+00 : f32
    %318 = vector.broadcast %cst_96 : f32 to vector<2x1xf32>
    %319 = arith.subf %318, %317 : vector<2x1xf32>
    %320 = arith.mulf %316, %319 : vector<2x1xf32>
    %321 = vector.broadcast %320 : vector<2x1xf32> to vector<2x10xf32>
    %322 = arith.mulf %310, %321 : vector<2x10xf32>
    %323 = vector.shape_cast %322 : vector<2x10xf32> to vector<2x1x10xf32>
    "tpu.trace_start"() <{level = 10 : i32, message = "bqs,bsc->bqc"}> : () -> ()
    %cst_97 = arith.constant dense<0.000000e+00> : vector<2x1x48xf32>
    %324 = tpu.matmul %323, %4, %cst_97 {dimension_numbers = #tpu.dot_dimension_numbers<[2], [1], [1], [2], [0, 0, 0, 1, 1, 2], [0], [0]>} : vector<2x1x10xf32>, vector<2x10x48xf32>, vector<2x1x48xf32> -> vector<2x1x48xf32>
    "tpu.trace_stop"() : () -> ()
    %325 = vector.shape_cast %324 : vector<2x1x48xf32> to vector<2x48xf32>
    %cst_98 = arith.constant dense<0.000000e+00> : vector<2x32xf32>
    %326 = tpu.matmul %298, %8, %cst_98 {dimension_numbers = #tpu.dot_dimension_numbers<[1], [0], [0], [1], [0, 0, 1, 1], [], []>} : vector<2x32xf32>, vector<32x32xf32>, vector<2x32xf32> -> vector<2x32xf32>
    %cst_99 = arith.constant dense<0.000000e+00> : vector<2x32xf32>
    %327 = tpu.matmul %325, %9, %cst_99 {dimension_numbers = #tpu.dot_dimension_numbers<[1], [0], [0], [1], [0, 0, 1, 1], [], []>} : vector<2x48xf32>, vector<48x32xf32>, vector<2x32xf32> -> vector<2x32xf32>
    %328 = arith.addf %326, %327 : vector<2x32xf32>
    %329 = arith.addf %328, %15 : vector<2x32xf32>
    %330 = vector.shape_cast %329 : vector<2x32xf32> to vector<2x1x32xf32>
    %c0_100 = arith.constant 0 : index
    %c4 = arith.constant 4 : index
    %c0_101 = arith.constant 0 : index
    %331 = vector.load %arg10[%c0_100, %c4, %c0_101] : memref<2x8x32xf32, #tpu.memory_space<vmem>>, vector<2x1x32xf32>
    tpu.vector_store %arg10[%c0_100, %c4, %c0_101], %330 {strides = array<i32>} : memref<2x8x32xf32, #tpu.memory_space<vmem>>, vector<2x1x32xf32>,
    %332 = vector.extract_strided_slice %3 {offsets = [0, 5, 0], sizes = [2, 1, 96], strides = [1, 1, 1]} : vector<2x8x96xf32> to vector<2x1x96xf32>
    %333 = vector.shape_cast %332 : vector<2x1x96xf32> to vector<2x96xf32>
    %cst_102 = arith.constant dense<0.000000e+00> : vector<2x96xf32>
    %334 = tpu.matmul %298, %6, %cst_102 {dimension_numbers = #tpu.dot_dimension_numbers<[1], [0], [0], [1], [0, 0, 1, 1], [], []>} : vector<2x32xf32>, vector<32x96xf32>, vector<2x96xf32> -> vector<2x96xf32>
    %335 = vector.extract_strided_slice %333 {offsets = [0, 0], sizes = [2, 32], strides = [1, 1]} : vector<2x96xf32> to vector<2x32xf32>
    %336 = vector.extract_strided_slice %334 {offsets = [0, 0], sizes = [2, 32], strides = [1, 1]} : vector<2x96xf32> to vector<2x32xf32>
    %337 = arith.addf %335, %336 : vector<2x32xf32>
    %338 = arith.negf %337 : vector<2x32xf32>
    %339 = math.exp %338 : vector<2x32xf32>
    %cst_103 = arith.constant 1.000000e+00 : f32
    %340 = vector.broadcast %cst_103 : f32 to vector<2x32xf32>
    %341 = arith.addf %340, %339 : vector<2x32xf32>
    %342 = arith.divf %340, %341 : vector<2x32xf32>
    %343 = vector.extract_strided_slice %333 {offsets = [0, 32], sizes = [2, 32], strides = [1, 1]} : vector<2x96xf32> to vector<2x32xf32>
    %344 = vector.extract_strided_slice %334 {offsets = [0, 32], sizes = [2, 32], strides = [1, 1]} : vector<2x96xf32> to vector<2x32xf32>
    %345 = arith.addf %343, %344 : vector<2x32xf32>
    %346 = arith.negf %345 : vector<2x32xf32>
    %347 = math.exp %346 : vector<2x32xf32>
    %cst_104 = arith.constant 1.000000e+00 : f32
    %348 = vector.broadcast %cst_104 : f32 to vector<2x32xf32>
    %349 = arith.addf %348, %347 : vector<2x32xf32>
    %350 = arith.divf %348, %349 : vector<2x32xf32>
    %351 = vector.extract_strided_slice %333 {offsets = [0, 64], sizes = [2, 32], strides = [1, 1]} : vector<2x96xf32> to vector<2x32xf32>
    %352 = vector.extract_strided_slice %334 {offsets = [0, 64], sizes = [2, 32], strides = [1, 1]} : vector<2x96xf32> to vector<2x32xf32>
    %353 = arith.addf %352, %12 : vector<2x32xf32>
    %354 = arith.mulf %342, %353 : vector<2x32xf32>
    %355 = arith.addf %351, %354 : vector<2x32xf32>
    %356 = math.tanh %355 : vector<2x32xf32>
    %cst_105 = arith.constant 1.000000e+00 : f32
    %357 = vector.broadcast %cst_105 : f32 to vector<2x32xf32>
    %358 = arith.subf %357, %350 : vector<2x32xf32>
    %359 = arith.mulf %358, %356 : vector<2x32xf32>
    %360 = arith.mulf %350, %298 : vector<2x32xf32>
    %361 = arith.addf %359, %360 : vector<2x32xf32>
    %cst_106 = arith.constant dense<0.000000e+00> : vector<2x48xf32>
    %362 = tpu.matmul %361, %7, %cst_106 {dimension_numbers = #tpu.dot_dimension_numbers<[1], [0], [0], [1], [0, 0, 1, 1], [], []>} : vector<2x32xf32>, vector<32x48xf32>, vector<2x48xf32> -> vector<2x48xf32>
    %363 = vector.shape_cast %362 : vector<2x48xf32> to vector<2x1x48xf32>
    "tpu.trace_start"() <{level = 10 : i32, message = "bqc,bsc->bqs"}> : () -> ()
    %cst_107 = arith.constant dense<0.000000e+00> : vector<2x1x10xf32>
    %364 = tpu.matmul %363, %4, %cst_107 {dimension_numbers = #tpu.dot_dimension_numbers<[2], [2], [1], [1], [0, 0, 0, 1, 1, 1], [0], [0]>} : vector<2x1x48xf32>, vector<2x10x48xf32>, vector<2x1x10xf32> -> vector<2x1x10xf32>
    "tpu.trace_stop"() : () -> ()
    %365 = vector.shape_cast %364 : vector<2x1x10xf32> to vector<2x10xf32>
    %cst_108 = arith.constant dense<0xFF800000> : vector<2xf32>
    %366 = vector.multi_reduction <maximumf>, %365, %cst_108 [1] : vector<2x10xf32> to vector<2xf32>
    %367 = vector.shape_cast %366 : vector<2xf32> to vector<2x1xf32>
    %368 = vector.broadcast %367 : vector<2x1xf32> to vector<2x10xf32>
    %369 = arith.subf %365, %368 : vector<2x10xf32>
    %370 = math.exp %369 : vector<2x10xf32>
    %cst_109 = arith.constant dense<0.000000e+00> : vector<2xf32>
    %371 = vector.multi_reduction <add>, %370, %cst_109 [1] : vector<2x10xf32> to vector<2xf32>
    %372 = vector.shape_cast %371 : vector<2xf32> to vector<2x1xf32>
    %373 = arith.mulf %370, %5 : vector<2x10xf32>
    %cst_110 = arith.constant dense<0.000000e+00> : vector<2xf32>
    %374 = vector.multi_reduction <add>, %373, %cst_110 [1] : vector<2x10xf32> to vector<2xf32>
    %375 = vector.shape_cast %374 : vector<2xf32> to vector<2x1xf32>
    %cst_111 = arith.constant 9.99999996E-13 : f32
    %376 = vector.broadcast %cst_111 : f32 to vector<2x1xf32>
    %377 = arith.mulf %376, %372 : vector<2x1xf32>
    %378 = arith.addf %375, %377 : vector<2x1xf32>
    %379 = tpu.reciprocal %378 {approx = true} : vector<2x1xf32> -> vector<2x1xf32>
    %380 = arith.mulf %378, %379 : vector<2x1xf32>
    %cst_112 = arith.constant 2.000000e+00 : f32
    %381 = vector.broadcast %cst_112 : f32 to vector<2x1xf32>
    %382 = arith.subf %381, %380 : vector<2x1xf32>
    %383 = arith.mulf %379, %382 : vector<2x1xf32>
    %384 = vector.broadcast %383 : vector<2x1xf32> to vector<2x10xf32>
    %385 = arith.mulf %373, %384 : vector<2x10xf32>
    %386 = vector.shape_cast %385 : vector<2x10xf32> to vector<2x1x10xf32>
    "tpu.trace_start"() <{level = 10 : i32, message = "bqs,bsc->bqc"}> : () -> ()
    %cst_113 = arith.constant dense<0.000000e+00> : vector<2x1x48xf32>
    %387 = tpu.matmul %386, %4, %cst_113 {dimension_numbers = #tpu.dot_dimension_numbers<[2], [1], [1], [2], [0, 0, 0, 1, 1, 2], [0], [0]>} : vector<2x1x10xf32>, vector<2x10x48xf32>, vector<2x1x48xf32> -> vector<2x1x48xf32>
    "tpu.trace_stop"() : () -> ()
    %388 = vector.shape_cast %387 : vector<2x1x48xf32> to vector<2x48xf32>
    %cst_114 = arith.constant dense<0.000000e+00> : vector<2x32xf32>
    %389 = tpu.matmul %361, %8, %cst_114 {dimension_numbers = #tpu.dot_dimension_numbers<[1], [0], [0], [1], [0, 0, 1, 1], [], []>} : vector<2x32xf32>, vector<32x32xf32>, vector<2x32xf32> -> vector<2x32xf32>
    %cst_115 = arith.constant dense<0.000000e+00> : vector<2x32xf32>
    %390 = tpu.matmul %388, %9, %cst_115 {dimension_numbers = #tpu.dot_dimension_numbers<[1], [0], [0], [1], [0, 0, 1, 1], [], []>} : vector<2x48xf32>, vector<48x32xf32>, vector<2x32xf32> -> vector<2x32xf32>
    %391 = arith.addf %389, %390 : vector<2x32xf32>
    %392 = arith.addf %391, %15 : vector<2x32xf32>
    %393 = vector.shape_cast %392 : vector<2x32xf32> to vector<2x1x32xf32>
    %c0_116 = arith.constant 0 : index
    %c5 = arith.constant 5 : index
    %c0_117 = arith.constant 0 : index
    %394 = vector.load %arg10[%c0_116, %c5, %c0_117] : memref<2x8x32xf32, #tpu.memory_space<vmem>>, vector<2x1x32xf32>
    tpu.vector_store %arg10[%c0_116, %c5, %c0_117], %393 {strides = array<i32>} : memref<2x8x32xf32, #tpu.memory_space<vmem>>, vector<2x1x32xf32>,
    %395 = vector.extract_strided_slice %3 {offsets = [0, 6, 0], sizes = [2, 1, 96], strides = [1, 1, 1]} : vector<2x8x96xf32> to vector<2x1x96xf32>
    %396 = vector.shape_cast %395 : vector<2x1x96xf32> to vector<2x96xf32>
    %cst_118 = arith.constant dense<0.000000e+00> : vector<2x96xf32>
    %397 = tpu.matmul %361, %6, %cst_118 {dimension_numbers = #tpu.dot_dimension_numbers<[1], [0], [0], [1], [0, 0, 1, 1], [], []>} : vector<2x32xf32>, vector<32x96xf32>, vector<2x96xf32> -> vector<2x96xf32>
    %398 = vector.extract_strided_slice %396 {offsets = [0, 0], sizes = [2, 32], strides = [1, 1]} : vector<2x96xf32> to vector<2x32xf32>
    %399 = vector.extract_strided_slice %397 {offsets = [0, 0], sizes = [2, 32], strides = [1, 1]} : vector<2x96xf32> to vector<2x32xf32>
    %400 = arith.addf %398, %399 : vector<2x32xf32>
    %401 = arith.negf %400 : vector<2x32xf32>
    %402 = math.exp %401 : vector<2x32xf32>
    %cst_119 = arith.constant 1.000000e+00 : f32
    %403 = vector.broadcast %cst_119 : f32 to vector<2x32xf32>
    %404 = arith.addf %403, %402 : vector<2x32xf32>
    %405 = arith.divf %403, %404 : vector<2x32xf32>
    %406 = vector.extract_strided_slice %396 {offsets = [0, 32], sizes = [2, 32], strides = [1, 1]} : vector<2x96xf32> to vector<2x32xf32>
    %407 = vector.extract_strided_slice %397 {offsets = [0, 32], sizes = [2, 32], strides = [1, 1]} : vector<2x96xf32> to vector<2x32xf32>
    %408 = arith.addf %406, %407 : vector<2x32xf32>
    %409 = arith.negf %408 : vector<2x32xf32>
    %410 = math.exp %409 : vector<2x32xf32>
    %cst_120 = arith.constant 1.000000e+00 : f32
    %411 = vector.broadcast %cst_120 : f32 to vector<2x32xf32>
    %412 = arith.addf %411, %410 : vector<2x32xf32>
    %413 = arith.divf %411, %412 : vector<2x32xf32>
    %414 = vector.extract_strided_slice %396 {offsets = [0, 64], sizes = [2, 32], strides = [1, 1]} : vector<2x96xf32> to vector<2x32xf32>
    %415 = vector.extract_strided_slice %397 {offsets = [0, 64], sizes = [2, 32], strides = [1, 1]} : vector<2x96xf32> to vector<2x32xf32>
    %416 = arith.addf %415, %12 : vector<2x32xf32>
    %417 = arith.mulf %405, %416 : vector<2x32xf32>
    %418 = arith.addf %414, %417 : vector<2x32xf32>
    %419 = math.tanh %418 : vector<2x32xf32>
    %cst_121 = arith.constant 1.000000e+00 : f32
    %420 = vector.broadcast %cst_121 : f32 to vector<2x32xf32>
    %421 = arith.subf %420, %413 : vector<2x32xf32>
    %422 = arith.mulf %421, %419 : vector<2x32xf32>
    %423 = arith.mulf %413, %361 : vector<2x32xf32>
    %424 = arith.addf %422, %423 : vector<2x32xf32>
    %cst_122 = arith.constant dense<0.000000e+00> : vector<2x48xf32>
    %425 = tpu.matmul %424, %7, %cst_122 {dimension_numbers = #tpu.dot_dimension_numbers<[1], [0], [0], [1], [0, 0, 1, 1], [], []>} : vector<2x32xf32>, vector<32x48xf32>, vector<2x48xf32> -> vector<2x48xf32>
    %426 = vector.shape_cast %425 : vector<2x48xf32> to vector<2x1x48xf32>
    "tpu.trace_start"() <{level = 10 : i32, message = "bqc,bsc->bqs"}> : () -> ()
    %cst_123 = arith.constant dense<0.000000e+00> : vector<2x1x10xf32>
    %427 = tpu.matmul %426, %4, %cst_123 {dimension_numbers = #tpu.dot_dimension_numbers<[2], [2], [1], [1], [0, 0, 0, 1, 1, 1], [0], [0]>} : vector<2x1x48xf32>, vector<2x10x48xf32>, vector<2x1x10xf32> -> vector<2x1x10xf32>
    "tpu.trace_stop"() : () -> ()
    %428 = vector.shape_cast %427 : vector<2x1x10xf32> to vector<2x10xf32>
    %cst_124 = arith.constant dense<0xFF800000> : vector<2xf32>
    %429 = vector.multi_reduction <maximumf>, %428, %cst_124 [1] : vector<2x10xf32> to vector<2xf32>
    %430 = vector.shape_cast %429 : vector<2xf32> to vector<2x1xf32>
    %431 = vector.broadcast %430 : vector<2x1xf32> to vector<2x10xf32>
    %432 = arith.subf %428, %431 : vector<2x10xf32>
    %433 = math.exp %432 : vector<2x10xf32>
    %cst_125 = arith.constant dense<0.000000e+00> : vector<2xf32>
    %434 = vector.multi_reduction <add>, %433, %cst_125 [1] : vector<2x10xf32> to vector<2xf32>
    %435 = vector.shape_cast %434 : vector<2xf32> to vector<2x1xf32>
    %436 = arith.mulf %433, %5 : vector<2x10xf32>
    %cst_126 = arith.constant dense<0.000000e+00> : vector<2xf32>
    %437 = vector.multi_reduction <add>, %436, %cst_126 [1] : vector<2x10xf32> to vector<2xf32>
    %438 = vector.shape_cast %437 : vector<2xf32> to vector<2x1xf32>
    %cst_127 = arith.constant 9.99999996E-13 : f32
    %439 = vector.broadcast %cst_127 : f32 to vector<2x1xf32>
    %440 = arith.mulf %439, %435 : vector<2x1xf32>
    %441 = arith.addf %438, %440 : vector<2x1xf32>
    %442 = tpu.reciprocal %441 {approx = true} : vector<2x1xf32> -> vector<2x1xf32>
    %443 = arith.mulf %441, %442 : vector<2x1xf32>
    %cst_128 = arith.constant 2.000000e+00 : f32
    %444 = vector.broadcast %cst_128 : f32 to vector<2x1xf32>
    %445 = arith.subf %444, %443 : vector<2x1xf32>
    %446 = arith.mulf %442, %445 : vector<2x1xf32>
    %447 = vector.broadcast %446 : vector<2x1xf32> to vector<2x10xf32>
    %448 = arith.mulf %436, %447 : vector<2x10xf32>
    %449 = vector.shape_cast %448 : vector<2x10xf32> to vector<2x1x10xf32>
    "tpu.trace_start"() <{level = 10 : i32, message = "bqs,bsc->bqc"}> : () -> ()
    %cst_129 = arith.constant dense<0.000000e+00> : vector<2x1x48xf32>
    %450 = tpu.matmul %449, %4, %cst_129 {dimension_numbers = #tpu.dot_dimension_numbers<[2], [1], [1], [2], [0, 0, 0, 1, 1, 2], [0], [0]>} : vector<2x1x10xf32>, vector<2x10x48xf32>, vector<2x1x48xf32> -> vector<2x1x48xf32>
    "tpu.trace_stop"() : () -> ()
    %451 = vector.shape_cast %450 : vector<2x1x48xf32> to vector<2x48xf32>
    %cst_130 = arith.constant dense<0.000000e+00> : vector<2x32xf32>
    %452 = tpu.matmul %424, %8, %cst_130 {dimension_numbers = #tpu.dot_dimension_numbers<[1], [0], [0], [1], [0, 0, 1, 1], [], []>} : vector<2x32xf32>, vector<32x32xf32>, vector<2x32xf32> -> vector<2x32xf32>
    %cst_131 = arith.constant dense<0.000000e+00> : vector<2x32xf32>
    %453 = tpu.matmul %451, %9, %cst_131 {dimension_numbers = #tpu.dot_dimension_numbers<[1], [0], [0], [1], [0, 0, 1, 1], [], []>} : vector<2x48xf32>, vector<48x32xf32>, vector<2x32xf32> -> vector<2x32xf32>
    %454 = arith.addf %452, %453 : vector<2x32xf32>
    %455 = arith.addf %454, %15 : vector<2x32xf32>
    %456 = vector.shape_cast %455 : vector<2x32xf32> to vector<2x1x32xf32>
    %c0_132 = arith.constant 0 : index
    %c6 = arith.constant 6 : index
    %c0_133 = arith.constant 0 : index
    %457 = vector.load %arg10[%c0_132, %c6, %c0_133] : memref<2x8x32xf32, #tpu.memory_space<vmem>>, vector<2x1x32xf32>
    tpu.vector_store %arg10[%c0_132, %c6, %c0_133], %456 {strides = array<i32>} : memref<2x8x32xf32, #tpu.memory_space<vmem>>, vector<2x1x32xf32>,
    %458 = vector.extract_strided_slice %3 {offsets = [0, 7, 0], sizes = [2, 1, 96], strides = [1, 1, 1]} : vector<2x8x96xf32> to vector<2x1x96xf32>
    %459 = vector.shape_cast %458 : vector<2x1x96xf32> to vector<2x96xf32>
    %cst_134 = arith.constant dense<0.000000e+00> : vector<2x96xf32>
    %460 = tpu.matmul %424, %6, %cst_134 {dimension_numbers = #tpu.dot_dimension_numbers<[1], [0], [0], [1], [0, 0, 1, 1], [], []>} : vector<2x32xf32>, vector<32x96xf32>, vector<2x96xf32> -> vector<2x96xf32>
    %461 = vector.extract_strided_slice %459 {offsets = [0, 0], sizes = [2, 32], strides = [1, 1]} : vector<2x96xf32> to vector<2x32xf32>
    %462 = vector.extract_strided_slice %460 {offsets = [0, 0], sizes = [2, 32], strides = [1, 1]} : vector<2x96xf32> to vector<2x32xf32>
    %463 = arith.addf %461, %462 : vector<2x32xf32>
    %464 = arith.negf %463 : vector<2x32xf32>
    %465 = math.exp %464 : vector<2x32xf32>
    %cst_135 = arith.constant 1.000000e+00 : f32
    %466 = vector.broadcast %cst_135 : f32 to vector<2x32xf32>
    %467 = arith.addf %466, %465 : vector<2x32xf32>
    %468 = arith.divf %466, %467 : vector<2x32xf32>
    %469 = vector.extract_strided_slice %459 {offsets = [0, 32], sizes = [2, 32], strides = [1, 1]} : vector<2x96xf32> to vector<2x32xf32>
    %470 = vector.extract_strided_slice %460 {offsets = [0, 32], sizes = [2, 32], strides = [1, 1]} : vector<2x96xf32> to vector<2x32xf32>
    %471 = arith.addf %469, %470 : vector<2x32xf32>
    %472 = arith.negf %471 : vector<2x32xf32>
    %473 = math.exp %472 : vector<2x32xf32>
    %cst_136 = arith.constant 1.000000e+00 : f32
    %474 = vector.broadcast %cst_136 : f32 to vector<2x32xf32>
    %475 = arith.addf %474, %473 : vector<2x32xf32>
    %476 = arith.divf %474, %475 : vector<2x32xf32>
    %477 = vector.extract_strided_slice %459 {offsets = [0, 64], sizes = [2, 32], strides = [1, 1]} : vector<2x96xf32> to vector<2x32xf32>
    %478 = vector.extract_strided_slice %460 {offsets = [0, 64], sizes = [2, 32], strides = [1, 1]} : vector<2x96xf32> to vector<2x32xf32>
    %479 = arith.addf %478, %12 : vector<2x32xf32>
    %480 = arith.mulf %468, %479 : vector<2x32xf32>
    %481 = arith.addf %477, %480 : vector<2x32xf32>
    %482 = math.tanh %481 : vector<2x32xf32>
    %cst_137 = arith.constant 1.000000e+00 : f32
    %483 = vector.broadcast %cst_137 : f32 to vector<2x32xf32>
    %484 = arith.subf %483, %476 : vector<2x32xf32>
    %485 = arith.mulf %484, %482 : vector<2x32xf32>
    %486 = arith.mulf %476, %424 : vector<2x32xf32>
    %487 = arith.addf %485, %486 : vector<2x32xf32>
    %cst_138 = arith.constant dense<0.000000e+00> : vector<2x48xf32>
    %488 = tpu.matmul %487, %7, %cst_138 {dimension_numbers = #tpu.dot_dimension_numbers<[1], [0], [0], [1], [0, 0, 1, 1], [], []>} : vector<2x32xf32>, vector<32x48xf32>, vector<2x48xf32> -> vector<2x48xf32>
    %489 = vector.shape_cast %488 : vector<2x48xf32> to vector<2x1x48xf32>
    "tpu.trace_start"() <{level = 10 : i32, message = "bqc,bsc->bqs"}> : () -> ()
    %cst_139 = arith.constant dense<0.000000e+00> : vector<2x1x10xf32>
    %490 = tpu.matmul %489, %4, %cst_139 {dimension_numbers = #tpu.dot_dimension_numbers<[2], [2], [1], [1], [0, 0, 0, 1, 1, 1], [0], [0]>} : vector<2x1x48xf32>, vector<2x10x48xf32>, vector<2x1x10xf32> -> vector<2x1x10xf32>
    "tpu.trace_stop"() : () -> ()
    %491 = vector.shape_cast %490 : vector<2x1x10xf32> to vector<2x10xf32>
    %cst_140 = arith.constant dense<0xFF800000> : vector<2xf32>
    %492 = vector.multi_reduction <maximumf>, %491, %cst_140 [1] : vector<2x10xf32> to vector<2xf32>
    %493 = vector.shape_cast %492 : vector<2xf32> to vector<2x1xf32>
    %494 = vector.broadcast %493 : vector<2x1xf32> to vector<2x10xf32>
    %495 = arith.subf %491, %494 : vector<2x10xf32>
    %496 = math.exp %495 : vector<2x10xf32>
    %cst_141 = arith.constant dense<0.000000e+00> : vector<2xf32>
    %497 = vector.multi_reduction <add>, %496, %cst_141 [1] : vector<2x10xf32> to vector<2xf32>
    %498 = vector.shape_cast %497 : vector<2xf32> to vector<2x1xf32>
    %499 = arith.mulf %496, %5 : vector<2x10xf32>
    %cst_142 = arith.constant dense<0.000000e+00> : vector<2xf32>
    %500 = vector.multi_reduction <add>, %499, %cst_142 [1] : vector<2x10xf32> to vector<2xf32>
    %501 = vector.shape_cast %500 : vector<2xf32> to vector<2x1xf32>
    %cst_143 = arith.constant 9.99999996E-13 : f32
    %502 = vector.broadcast %cst_143 : f32 to vector<2x1xf32>
    %503 = arith.mulf %502, %498 : vector<2x1xf32>
    %504 = arith.addf %501, %503 : vector<2x1xf32>
    %505 = tpu.reciprocal %504 {approx = true} : vector<2x1xf32> -> vector<2x1xf32>
    %506 = arith.mulf %504, %505 : vector<2x1xf32>
    %cst_144 = arith.constant 2.000000e+00 : f32
    %507 = vector.broadcast %cst_144 : f32 to vector<2x1xf32>
    %508 = arith.subf %507, %506 : vector<2x1xf32>
    %509 = arith.mulf %505, %508 : vector<2x1xf32>
    %510 = vector.broadcast %509 : vector<2x1xf32> to vector<2x10xf32>
    %511 = arith.mulf %499, %510 : vector<2x10xf32>
    %512 = vector.shape_cast %511 : vector<2x10xf32> to vector<2x1x10xf32>
    "tpu.trace_start"() <{level = 10 : i32, message = "bqs,bsc->bqc"}> : () -> ()
    %cst_145 = arith.constant dense<0.000000e+00> : vector<2x1x48xf32>
    %513 = tpu.matmul %512, %4, %cst_145 {dimension_numbers = #tpu.dot_dimension_numbers<[2], [1], [1], [2], [0, 0, 0, 1, 1, 2], [0], [0]>} : vector<2x1x10xf32>, vector<2x10x48xf32>, vector<2x1x48xf32> -> vector<2x1x48xf32>
    "tpu.trace_stop"() : () -> ()
    %514 = vector.shape_cast %513 : vector<2x1x48xf32> to vector<2x48xf32>
    %cst_146 = arith.constant dense<0.000000e+00> : vector<2x32xf32>
    %515 = tpu.matmul %487, %8, %cst_146 {dimension_numbers = #tpu.dot_dimension_numbers<[1], [0], [0], [1], [0, 0, 1, 1], [], []>} : vector<2x32xf32>, vector<32x32xf32>, vector<2x32xf32> -> vector<2x32xf32>
    %cst_147 = arith.constant dense<0.000000e+00> : vector<2x32xf32>
    %516 = tpu.matmul %514, %9, %cst_147 {dimension_numbers = #tpu.dot_dimension_numbers<[1], [0], [0], [1], [0, 0, 1, 1], [], []>} : vector<2x48xf32>, vector<48x32xf32>, vector<2x32xf32> -> vector<2x32xf32>
    %517 = arith.addf %515, %516 : vector<2x32xf32>
    %518 = arith.addf %517, %15 : vector<2x32xf32>
    %519 = vector.shape_cast %518 : vector<2x32xf32> to vector<2x1x32xf32>
    %c0_148 = arith.constant 0 : index
    %c7 = arith.constant 7 : index
    %c0_149 = arith.constant 0 : index
    %520 = vector.load %arg10[%c0_148, %c7, %c0_149] : memref<2x8x32xf32, #tpu.memory_space<vmem>>, vector<2x1x32xf32>
    tpu.vector_store %arg10[%c0_148, %c7, %c0_149], %519 {strides = array<i32>} : memref<2x8x32xf32, #tpu.memory_space<vmem>>, vector<2x1x32xf32>,
    %c0_150 = arith.constant 0 : index
    %c0_151 = arith.constant 0 : index
    %521 = vector.load %arg13[%c0_150, %c0_151] : memref<2x32xf32, #tpu.memory_space<vmem>>, vector<2x32xf32>
    tpu.vector_store %arg13[%c0_150, %c0_151], %487 {strides = array<i32>} : memref<2x32xf32, #tpu.memory_space<vmem>>, vector<2x32xf32>,
    %c0_i32_152 = arith.constant 0 : i32
    %522 = arith.cmpi eq, %arg0, %c0_i32_152 : i32
    %523 = arith.extui %522 : i1 to i32
    %c0_i32_153 = arith.constant 0 : i32
    %524 = arith.cmpi ne, %523, %c0_i32_153 : i32
    scf.if %524 {
      %c0_154 = arith.constant 0 : index
      %c0_155 = arith.constant 0 : index
      %525 = vector.load %arg11[%c0_154, %c0_155] : memref<2x32xf32, #tpu.memory_space<vmem>>, vector<2x32xf32>
      tpu.vector_store %arg11[%c0_154, %c0_155], %487 {strides = array<i32>} : memref<2x32xf32, #tpu.memory_space<vmem>>, vector<2x32xf32>,
      %c0_156 = arith.constant 0 : index
      %c0_157 = arith.constant 0 : index
      %526 = vector.load %arg12[%c0_156, %c0_157] : memref<2x10xf32, #tpu.memory_space<vmem>>, vector<2x10xf32>
      tpu.vector_store %arg12[%c0_156, %c0_157], %511 {strides = array<i32>} : memref<2x10xf32, #tpu.memory_space<vmem>>, vector<2x10xf32>,
    } else {
    }
    return
  }
  func.func @transform_0(%arg0: i32) -> (i32, i32, i32) {
    %c0_i32 = arith.constant 0 : i32
    %c0_i32_0 = arith.constant 0 : i32
    %c0_i32_1 = arith.constant 0 : i32
    return %c0_i32, %arg0, %c0_i32_0 : i32, i32, i32
  }
  func.func @transform_1(%arg0: i32) -> (i32, i32, i32) {
    %c0_i32 = arith.constant 0 : i32
    %c0_i32_0 = arith.constant 0 : i32
    %c0_i32_1 = arith.constant 0 : i32
    %c0_i32_2 = arith.constant 0 : i32
    return %c0_i32, %c0_i32_0, %c0_i32_1 : i32, i32, i32
  }
  func.func @transform_2(%arg0: i32) -> (i32, i32) {
    %c0_i32 = arith.constant 0 : i32
    %c0_i32_0 = arith.constant 0 : i32
    %c0_i32_1 = arith.constant 0 : i32
    return %c0_i32, %c0_i32_0 : i32, i32
  }
  func.func @transform_3(%arg0: i32) -> (i32, i32) {
    %c0_i32 = arith.constant 0 : i32
    %c0_i32_0 = arith.constant 0 : i32
    %c0_i32_1 = arith.constant 0 : i32
    return %c0_i32, %c0_i32_0 : i32, i32
  }
  func.func @transform_4(%arg0: i32) -> (i32, i32) {
    %c0_i32 = arith.constant 0 : i32
    %c0_i32_0 = arith.constant 0 : i32
    %c0_i32_1 = arith.constant 0 : i32
    return %c0_i32, %c0_i32_0 : i32, i32
  }
  func.func @transform_5(%arg0: i32) -> (i32, i32) {
    %c0_i32 = arith.constant 0 : i32
    %c0_i32_0 = arith.constant 0 : i32
    %c0_i32_1 = arith.constant 0 : i32
    return %c0_i32, %c0_i32_0 : i32, i32
  }
  func.func @transform_6(%arg0: i32) -> (i32, i32) {
    %c0_i32 = arith.constant 0 : i32
    %c0_i32_0 = arith.constant 0 : i32
    %c0_i32_1 = arith.constant 0 : i32
    return %c0_i32, %c0_i32_0 : i32, i32
  }
  func.func @transform_7(%arg0: i32) -> (i32, i32) {
    %c0_i32 = arith.constant 0 : i32
    %c0_i32_0 = arith.constant 0 : i32
    %c0_i32_1 = arith.constant 0 : i32
    return %c0_i32, %c0_i32_0 : i32, i32
  }
  func.func @transform_8(%arg0: i32) -> (i32, i32) {
    %c0_i32 = arith.constant 0 : i32
    %c0_i32_0 = arith.constant 0 : i32
    %c0_i32_1 = arith.constant 0 : i32
    return %c0_i32, %c0_i32_0 : i32, i32
  }
  func.func @transform_9(%arg0: i32) -> (i32, i32, i32) {
    %c0_i32 = arith.constant 0 : i32
    %c0_i32_0 = arith.constant 0 : i32
    %c0_i32_1 = arith.constant 0 : i32
    return %c0_i32, %arg0, %c0_i32_0 : i32, i32, i32
  }
  func.func @transform_10(%arg0: i32) -> (i32, i32) {
    %c0_i32 = arith.constant 0 : i32
    %c0_i32_0 = arith.constant 0 : i32
    %c0_i32_1 = arith.constant 0 : i32
    return %c0_i32, %c0_i32_0 : i32, i32
  }
  func.func @transform_11(%arg0: i32) -> (i32, i32) {
    %c0_i32 = arith.constant 0 : i32
    %c0_i32_0 = arith.constant 0 : i32
    %c0_i32_1 = arith.constant 0 : i32
    return %c0_i32, %c0_i32_0 : i32, i32
  }
}

</mosaic_0001>

<llo_original>
// kernel: tpu_custom_call.1
$region0: #{tpu_custom_call.1}
  #allocation0 [shape = 'u32[]', space=smem, size = 0x4, offset = 0x4, fixed_abs, tag = 'smem constant byte address 0x4 - core index']
  #allocation1 [shape = 'u32[72,128]{1,0:T(1,128)}', space=vmem, size = 0x9000, scoped, tag = 'internal scratch']
  #allocation2 [shape = 'f32[2,32]{1,0:T(2,128)}', space=vmem, size = 0x400, scoped, tag = 'scratch operand']
  %s0 = inlined_call_operand.hbm [shape: f32[2,8,96], index: 0, kind: input, shape index: {}]
  %s1 = inlined_call_operand.vmem [shape: f32[2,10,48], index: 1, kind: input, shape index: {}]
  %s2 = inlined_call_operand.vmem [shape: f32[2,10], index: 2, kind: input, shape index: {}]
  %s3 = inlined_call_operand.vmem [shape: f32[32,96], index: 3, kind: input, shape index: {}]
  %s4 = inlined_call_operand.vmem [shape: f32[1,32], index: 4, kind: input, shape index: {}]
  %s5 = inlined_call_operand.vmem [shape: f32[32,48], index: 5, kind: input, shape index: {}]
  %s6 = inlined_call_operand.vmem [shape: f32[32,32], index: 6, kind: input, shape index: {}]
  %s7 = inlined_call_operand.vmem [shape: f32[48,32], index: 7, kind: input, shape index: {}]
  %s8 = inlined_call_operand.vmem [shape: f32[1,32], index: 8, kind: input, shape index: {}]
  %s9 = inlined_call_operand.hbm [shape: f32[2,8,32], index: 9, kind: output, shape index: {0}]
  %s10 = inlined_call_operand.hbm [shape: f32[2,32], index: 10, kind: output, shape index: {1}]
  %s11 = inlined_call_operand.hbm [shape: f32[2,10], index: 11, kind: output, shape index: {2}]
  %12 = xla_tuple %s9, %s10, %s11
  %s13 = sld [smem:[#allocation0]]
  $region74: #{tpu_custom_call.1} parent=0
    _
  %s15 = ssub.s32 1, %s13
  %s16 = scalar_select 0, %s15, %s13
  $region1: #{tpu_custom_call.1} parent=0
    #allocation3 [shape = 'u8[8192]{0}', space=vmem, size = 0x2000, scoped, tag = 'input window, operand 0, single buffered']
    #allocation4 [shape = 's32[1]{0}', space=sflag, size = 0x4, scoped, tag = 'scoped memory for tpu_custom_call.1']
    #allocation5 [shape = 's32[1]{0}', space=sflag, size = 0x4, scoped, tag = 'scoped memory for tpu_custom_call.1']
    #allocation6 [shape = 'u8[8192]{0}', space=vmem, size = 0x2000, scoped, tag = 'output window, operand 0, single buffered']
    #allocation7 [shape = 'u8[1024]{0}', space=vmem, size = 0x400, scoped, tag = 'output window, operand 1, single buffered']
    #allocation8 [shape = 's32[1]{0}', space=sflag, size = 0x4, scoped, tag = 'scoped memory for tpu_custom_call.1']
    #allocation9 [shape = 'u8[1024]{0}', space=vmem, size = 0x400, scoped, tag = 'output window, operand 2, single buffered']
    %17 = vsyncpa [#allocation4], 0
    %18 = vsyncpa [#allocation5], 0
    %19 = vsyncpa [#allocation8], 0
    // Predicated region
    $region2: #{tpu_custom_call.1} parent=1 // pred_check
      _
    $region3: #{tpu_custom_call.1} parent=1 // pred_check_branch
      %21 = sbr.rel (0) target = $region5
    $region4: #{tpu_custom_call.1} parent=1 // pred_region
      %23 = vsyncadd [#allocation4], 0
      %s24 = sshll.u32 %s0, 4
      %s25 = int_to_ptr.hbm [resolvable:$true] %s24
      %s26 = sshll.u32 [#allocation3], 4
      %s27 = int_to_ptr.vmem [resolvable:$true] %s26
      %32 = dma.hbm_to_vmem [thread:$0]  %s25, 256, %s27, [#allocation4], 128, 128, 8
    $region5: #{tpu_custom_call.1} parent=1 // pred_fallthru
      _
    // Predicated region
    $region6: #{tpu_custom_call.1} parent=1 // pred_check
      _
    $region7: #{tpu_custom_call.1} parent=1 // pred_check_branch
      %34 = sbr.rel (0) target = $region9
    $region8: #{tpu_custom_call.1} parent=1 // pred_region
      _
    $region9: #{tpu_custom_call.1} parent=1 // pred_fallthru
      _
    // Predicated region
    $region10: #{tpu_custom_call.1} parent=1 // pred_check
      _
    $region11: #{tpu_custom_call.1} parent=1 // pred_check_branch
      %36 = sbr.rel (0) target = $region13
    $region12: #{tpu_custom_call.1} parent=1 // pred_region
      _
    $region13: #{tpu_custom_call.1} parent=1 // pred_fallthru
      _
    // Predicated region
    $region14: #{tpu_custom_call.1} parent=1 // pred_check
      _
    $region15: #{tpu_custom_call.1} parent=1 // pred_check_branch
      %38 = sbr.rel (0) target = $region17
    $region16: #{tpu_custom_call.1} parent=1 // pred_region
      _
    $region17: #{tpu_custom_call.1} parent=1 // pred_fallthru
      _
    // Predicated region
    $region18: #{tpu_custom_call.1} parent=1 // pred_check
      _
    $region19: #{tpu_custom_call.1} parent=1 // pred_check_branch
      %40 = sbr.rel (0) target = $region21
    $region20: #{tpu_custom_call.1} parent=1 // pred_region
      _
    $region21: #{tpu_custom_call.1} parent=1 // pred_fallthru
      _
    // Predicated region
    $region22: #{tpu_custom_call.1} parent=1 // pred_check
      _
    $region23: #{tpu_custom_call.1} parent=1 // pred_check_branch
      %42 = sbr.rel (0) target = $region25
    $region24: #{tpu_custom_call.1} parent=1 // pred_region
      _
    $region25: #{tpu_custom_call.1} parent=1 // pred_fallthru
      _
    // Predicated region
    $region26: #{tpu_custom_call.1} parent=1 // pred_check
      _
    $region27: #{tpu_custom_call.1} parent=1 // pred_check_branch
      %44 = sbr.rel (0) target = $region29
    $region28: #{tpu_custom_call.1} parent=1 // pred_region
      _
    $region29: #{tpu_custom_call.1} parent=1 // pred_fallthru
      _
    // Predicated region
    $region30: #{tpu_custom_call.1} parent=1 // pred_check
      _
    $region31: #{tpu_custom_call.1} parent=1 // pred_check_branch
      %46 = sbr.rel (0) target = $region33
    $region32: #{tpu_custom_call.1} parent=1 // pred_region
      _
    $region33: #{tpu_custom_call.1} parent=1 // pred_fallthru
      _
    // Predicated region
    $region34: #{tpu_custom_call.1} parent=1 // pred_check
      _
    $region35: #{tpu_custom_call.1} parent=1 // pred_check_branch
      %48 = sbr.rel (0) target = $region37
    $region36: #{tpu_custom_call.1} parent=1 // pred_region
      _
    $region37: #{tpu_custom_call.1} parent=1 // pred_fallthru
      _
    // Predicated region
    $region38: #{tpu_custom_call.1} parent=1 // pred_check
      _
    $region39: #{tpu_custom_call.1} parent=1 // pred_check_branch
      %50 = sbr.rel (0) target = $region41
    $region40: #{tpu_custom_call.1} parent=1 // pred_region
      %52 = dma.done [#allocation4], 256
    $region41: #{tpu_custom_call.1} parent=1 // pred_fallthru
      _
    %p53 = scmp.eq.s32.totalorder 0, 0
    // Predicated region
    $region42: #{tpu_custom_call.1} parent=1 // pred_check
      %p54 = pneg %p53
    $region43: #{tpu_custom_call.1} parent=1 // pred_check_branch
      %56 = sbr.rel (%p54) target = $region45
    $region44: #{tpu_custom_call.1} parent=1 // pred_region
      %vm57 = vcmask 254976
      %58 = vst.msk [vmem:[#allocation2] sm:$0x3] %vm57, 0.0
    $region45: #{tpu_custom_call.1} parent=1 // pred_fallthru
      _
    %v59 = vld [vmem:[#allocation3] sm:$0xff]
    %v60 = vld [vmem:[#allocation3 + $0x8] sm:$0xff]
    %v61 = vld [vmem:[%s1] sm:$0xff]
    %v62 = vld [vmem:[%s1 + $0x8] sm:$0x3]
    %v63 = vld [vmem:[%s1 + $0x10] sm:$0xff]
    %v64 = vld [vmem:[%s1 + $0x18] sm:$0x3]
    %v65 = vld [vmem:[%s2] sm:$0x3]
    %v66 = vld [vmem:[%s3] sm:$0xff]
    %v67 = vld [vmem:[%s3 + $0x8] sm:$0xff]
    %v68 = vld [vmem:[%s3 + $0x10] sm:$0xff]
    %v69 = vld [vmem:[%s3 + $0x18] sm:$0xff]
    %v70 = vld [vmem:[%s5] sm:$0xff]
    %v71 = vld [vmem:[%s5 + $0x8] sm:$0xff]
    %v72 = vld [vmem:[%s5 + $0x10] sm:$0xff]
    %v73 = vld [vmem:[%s5 + $0x18] sm:$0xff]
    %v74 = vld [vmem:[%s6] sm:$0xff]
    %v75 = vld [vmem:[%s6 + $0x8] sm:$0xff]
    %v76 = vld [vmem:[%s6 + $0x10] sm:$0xff]
    %v77 = vld [vmem:[%s6 + $0x18] sm:$0xff]
    %v78 = vld [vmem:[%s7] sm:$0xff]
    %v79 = vld [vmem:[%s7 + $0x8] sm:$0xff]
    %v80 = vld [vmem:[%s7 + $0x10] sm:$0xff]
    %v81 = vld [vmem:[%s7 + $0x18] sm:$0xff]
    %v82 = vld [vmem:[%s7 + $0x20] sm:$0xff]
    %v83 = vld [vmem:[%s7 + $0x28] sm:$0xff]
    %v84 = vld [vmem:[%s4] sm:$0x1]
    %v86 = vperm.slane %v84, 0
    %v87 = vld [vmem:[%s8] sm:$0x1]
    %v89 = vperm.slane %v87, 0
    %v91 = vld [vmem:[#allocation2] sm:$0x3]
    %vm92 = vcmask 261120
    %v94 = vsel %vm92, %v91, 0
    %96 = vmatpush.msra.mxu0 0.0
    %97 = vmatpush.msra.mxu0 0.0
    %98 = vmatpush.msra.mxu0 0.0
    %99 = vmatpush.msra.mxu0 0.0
    %100 = vmatpush.msra.mxu0 0.0
    %101 = vmatpush.msra.mxu0 0.0
    %102 = vmatpush.msra.mxu0 0.0
    %103 = vmatpush.msra.mxu0 0.0
    %104 = vmatpush.msra.mxu0 0.0
    %105 = vmatpush.msra.mxu0 0.0
    %106 = vmatpush.msra.mxu0 0.0
    %107 = vmatpush.msra.mxu0 0.0
    %108 = vmatpush.msra.mxu0 %v69
    %109 = vmatpush.msra.mxu0 %v68
    %110 = vmatpush.msra.mxu0 %v67
    %111 = vmatpush.msra.mxu0 %v66
    %112 = vmatmul.f32.gmra.mxu0 %v94
    %v113 = vpop.f32.mrf.mxu0
    %v114 = vadd.f32 0.0, %v113
    %115 = vdwg.mxu0
    %v117 = vrot.slane %v114, 1
    %v120 = vadd.f32 %v59, %v114
    %v121 = vadd.f32 %v60, %v117
    %v122 = vxor.u32 %v120, 2147483648
    %v123 = vxor.u32 %v121, 2147483648
    %v124 = vmul.f32 %v122, 1.442695
    %v125 = vpow.pop %v124
    %v126 = vmul.f32 %v123, 1.442695
    %v127 = vpow.pop %v126
    %v128 = vadd.f32 %v125, 1.0
    %v129 = vadd.f32 %v127, 1.0
    %v130 = vrcp.pop %v128
    %v131 = vmul.f32 %v128, %v130
    %v132 = vsub.f32 1.0, %v131
    %v133 = vmul.f32 %v130, %v132
    %v134 = vadd.f32 %v130, %v133
    %vm135 = vweird.f32 %v128
    %vm136 = vweird.f32 %v130
    %vm137 = vmor %vm135, %vm136
    %v138 = vsel %vm137, %v130, %v134
    %v139 = vand.u32 2147483647, %v128
    %vm140 = vcmp.eq.f32.partialorder %v139, 8.507059e+37
    %v141 = vand.u32 %v128, 2147483648
    %v142 = vor.u32 1.1754944e-38, %v141
    %v143 = vsel %vm140, %v142, %v138
    %v144 = vmul.f32 1.0, %v143
    %v145 = vrcp.pop %v129
    %v146 = vmul.f32 %v129, %v145
    %v147 = vsub.f32 1.0, %v146
    %v148 = vmul.f32 %v145, %v147
    %v149 = vadd.f32 %v145, %v148
    %vm150 = vweird.f32 %v129
    %vm151 = vweird.f32 %v145
    %vm152 = vmor %vm150, %vm151
    %v153 = vsel %vm152, %v145, %v149
    %v154 = vand.u32 2147483647, %v129
    %vm155 = vcmp.eq.f32.partialorder %v154, 8.507059e+37
    %v156 = vand.u32 %v129, 2147483648
    %v157 = vor.u32 1.1754944e-38, %v156
    %v158 = vsel %vm155, %v157, %v153
    %v159 = vmul.f32 1.0, %v158
    %160 = vrot.lane.b32.xlu0 %v86, 64
    %v161 = vpop.permute.xlu0 %160
    %v163 = vadd.f32 %v114, %v161
    %v165 = vrot.slane %v163, 1
    %166 = vrot.lane.b32.xlu0 %v163, 64
    %v167 = vpop.permute.xlu0 %166
    %168 = vrot.lane.b32.xlu0 %v165, 64
    %v169 = vpop.permute.xlu0 %168
    %v172 = vmul.f32 %v144, %v167
    %v173 = vmul.f32 %v159, %v169
    %176 = vrot.lane.b32.xlu0 %v172, 64
    %v177 = vpop.permute.xlu0 %176
    %178 = vrot.lane.b32.xlu0 %v173, 64
    %v179 = vpop.permute.xlu0 %178
    %v182 = vadd.f32 %v59, %v177
    %v183 = vadd.f32 %v60, %v179
    %v184 = vtanh.pop %v182
    %v185 = vtanh.pop %v183
    %v186 = vsub.f32 1.0, %v144
    %v187 = vsub.f32 1.0, %v159
    %190 = vrot.lane.b32.xlu0 %v184, 96
    %v191 = vpop.permute.xlu0 %190
    %192 = vrot.lane.b32.xlu0 %v185, 96
    %v193 = vpop.permute.xlu0 %192
    %v196 = vmul.f32 %v186, %v191
    %v197 = vmul.f32 %v187, %v193
    %v198 = vrot.slane %v91, 1
    %199 = vrot.lane.b32.xlu0 %v91, 32
    %v200 = vpop.permute.xlu0 %199
    %201 = vrot.lane.b32.xlu0 %v198, 32
    %v202 = vpop.permute.xlu0 %201
    %v205 = vmul.f32 %v144, %v200
    %v206 = vmul.f32 %v159, %v202
    %v207 = vadd.f32 %v196, %v205
    %v208 = vadd.f32 %v197, %v206
    %v211 = vrot.slane %v208, 7
    %vm212 = vcmask 1041409
    %v213 = vsel %vm212, %v211, %v207
    %214 = vrot.lane.b32.xlu0 %v213, 96
    %v215 = vpop.permute.xlu0 %214
    %v216 = vsel %vm92, %v215, 0
    %218 = vmatpush.msra.mxu0 0.0
    %219 = vmatpush.msra.mxu0 0.0
    %220 = vmatpush.msra.mxu0 0.0
    %221 = vmatpush.msra.mxu0 0.0
    %222 = vmatpush.msra.mxu0 0.0
    %223 = vmatpush.msra.mxu0 0.0
    %224 = vmatpush.msra.mxu0 0.0
    %225 = vmatpush.msra.mxu0 0.0
    %226 = vmatpush.msra.mxu0 0.0
    %227 = vmatpush.msra.mxu0 0.0
    %228 = vmatpush.msra.mxu0 0.0
    %229 = vmatpush.msra.mxu0 0.0
    %230 = vmatpush.msra.mxu0 %v73
    %231 = vmatpush.msra.mxu0 %v72
    %232 = vmatpush.msra.mxu0 %v71
    %233 = vmatpush.msra.mxu0 %v70
    %234 = vmatmul.f32.gmra.mxu0 %v216
    %v235 = vpop.f32.mrf.mxu0
    %v236 = vadd.f32 0.0, %v235
    %237 = vdwg.mxu0
    %v239 = vrot.slane %v236, 1
    %vm240 = vcmask 392192
    %v241 = vsel %vm240, %v236, 0
    %v244 = vsel %vm240, %v61, 0
    %v247 = vsel %vm240, %v62, 0
    %249 = vmatpush.xpose.msra.mxu0 0.0
    %250 = vmatpush.xpose.msra.mxu0 0.0
    %251 = vmatpush.xpose.msra.mxu0 0.0
    %252 = vmatpush.xpose.msra.mxu0 0.0
    %253 = vmatpush.xpose.msra.mxu0 0.0
    %254 = vmatpush.xpose.msra.mxu0 0.0
    %255 = vmatpush.xpose.msra.mxu0 0.0
    %256 = vmatpush.xpose.msra.mxu0 0.0
    %257 = vmatpush.xpose.msra.mxu0 0.0
    %258 = vmatpush.xpose.msra.mxu0 0.0
    %259 = vmatpush.xpose.msra.mxu0 0.0
    %260 = vmatpush.xpose.msra.mxu0 0.0
    %261 = vmatpush.xpose.msra.mxu0 0.0
    %262 = vmatpush.xpose.msra.mxu0 0.0
    %263 = vmatpush.xpose.msra.mxu0 %v247
    %264 = vmatpush.xpose.msra.mxu0 %v244
    %265 = vmatmul.f32.gmra.mxu0 %v241
    %v266 = vpop.f32.mrf.mxu0
    %v267 = vadd.f32 0.0, %v266
    %268 = vdwg.mxu0
    %v269 = vsel %vm240, %v239, 0
    %v272 = vsel %vm240, %v63, 0
    %v275 = vsel %vm240, %v64, 0
    %277 = vmatpush.xpose.msra.mxu0 0.0
    %278 = vmatpush.xpose.msra.mxu0 0.0
    %279 = vmatpush.xpose.msra.mxu0 0.0
    %280 = vmatpush.xpose.msra.mxu0 0.0
    %281 = vmatpush.xpose.msra.mxu0 0.0
    %282 = vmatpush.xpose.msra.mxu0 0.0
    %283 = vmatpush.xpose.msra.mxu0 0.0
    %284 = vmatpush.xpose.msra.mxu0 0.0
    %285 = vmatpush.xpose.msra.mxu0 0.0
    %286 = vmatpush.xpose.msra.mxu0 0.0
    %287 = vmatpush.xpose.msra.mxu0 0.0
    %288 = vmatpush.xpose.msra.mxu0 0.0
    %289 = vmatpush.xpose.msra.mxu0 0.0
    %290 = vmatpush.xpose.msra.mxu0 0.0
    %291 = vmatpush.xpose.msra.mxu0 %v275
    %292 = vmatpush.xpose.msra.mxu0 %v272
    %293 = vmatmul.f32.gmra.mxu0 %v269
    %v294 = vpop.f32.mrf.mxu0
    %v295 = vadd.f32 0.0, %v294
    %296 = vdwg.mxu0
    %v299 = vrot.slane %v295, 7
    %v300 = vsel %vm212, %v299, %v267
    %vm302 = vcmask 74752
    %v303 = vsel %vm302, %v300, -inf
    %304 = vmax.xlane.f32.xlu0 %v303
    %v305 = vpop.xlane.xlu0 %304
    %v307 = vrot.slane %v305, 1
    %v310 = vsub.f32 %v267, %v305
    %v311 = vsub.f32 %v295, %v307
    %v312 = vmul.f32 %v310, 1.442695
    %v313 = vpow.pop %v312
    %v314 = vmul.f32 %v311, 1.442695
    %v315 = vpow.pop %v314
    %v318 = vrot.slane %v315, 7
    %v319 = vsel %vm212, %v318, %v313
    %v321 = vsel %vm302, %v319, 0.0
    %322 = vadd.xlane.f32.xlu0 %v321
    %v323 = vpop.xlane.xlu0 %322
    %v325 = vrot.slane %v65, 1
    %v328 = vmul.f32 %v313, %v65
    %v329 = vmul.f32 %v315, %v325
    %v332 = vrot.slane %v329, 7
    %v333 = vsel %vm212, %v332, %v328
    %v335 = vsel %vm302, %v333, 0.0
    %336 = vadd.xlane.f32.xlu0 %v335
    %v337 = vpop.xlane.xlu0 %336
    %v338 = vmul.f32 %v323, 1e-12
    %v339 = vadd.f32 %v337, %v338
    %v340 = vrcp.pop %v339
    %v341 = vmul.f32 %v339, %v340
    %v342 = vsub.f32 2.0, %v341
    %v343 = vmul.f32 %v340, %v342
    %v345 = vrot.slane %v343, 1
    %v348 = vmul.f32 %v328, %v343
    %v349 = vmul.f32 %v329, %v345
    %vm350 = vcmask 80896
    %v352 = vsel %vm350, %v348, 0
    %vm354 = vcmask 1041408
    %v355 = vsel %vm354, %v62, 0
    %357 = vmatpush.msra.mxu0 0.0
    %358 = vmatpush.msra.mxu0 0.0
    %359 = vmatpush.msra.mxu0 0.0
    %360 = vmatpush.msra.mxu0 0.0
    %361 = vmatpush.msra.mxu0 0.0
    %362 = vmatpush.msra.mxu0 0.0
    %363 = vmatpush.msra.mxu0 0.0
    %364 = vmatpush.msra.mxu0 0.0
    %365 = vmatpush.msra.mxu0 0.0
    %366 = vmatpush.msra.mxu0 0.0
    %367 = vmatpush.msra.mxu0 0.0
    %368 = vmatpush.msra.mxu0 0.0
    %369 = vmatpush.msra.mxu0 0.0
    %370 = vmatpush.msra.mxu0 0.0
    %371 = vmatpush.msra.mxu0 %v355
    %372 = vmatpush.msra.mxu0 %v61
    %373 = vmatmul.f32.gmra.mxu0 %v352
    %v374 = vpop.f32.mrf.mxu0
    %v375 = vadd.f32 0.0, %v374
    %376 = vdwg.mxu0
    %v378 = vsel %vm350, %v349, 0
    %v380 = vsel %vm354, %v64, 0
    %382 = vmatpush.msra.mxu0 0.0
    %383 = vmatpush.msra.mxu0 0.0
    %384 = vmatpush.msra.mxu0 0.0
    %385 = vmatpush.msra.mxu0 0.0
    %386 = vmatpush.msra.mxu0 0.0
    %387 = vmatpush.msra.mxu0 0.0
    %388 = vmatpush.msra.mxu0 0.0
    %389 = vmatpush.msra.mxu0 0.0
    %390 = vmatpush.msra.mxu0 0.0
    %391 = vmatpush.msra.mxu0 0.0
    %392 = vmatpush.msra.mxu0 0.0
    %393 = vmatpush.msra.mxu0 0.0
    %394 = vmatpush.msra.mxu0 0.0
    %395 = vmatpush.msra.mxu0 0.0
    %396 = vmatpush.msra.mxu0 %v380
    %397 = vmatpush.msra.mxu0 %v63
    %398 = vmatmul.f32.gmra.mxu0 %v378
    %v399 = vpop.f32.mrf.mxu0
    %v400 = vadd.f32 0.0, %v399
    %401 = vdwg.mxu0
    %v404 = vrot.slane %v400, 7
    %v405 = vsel %vm212, %v404, %v375
    %v406 = vsel %vm240, %v405, 0
    %408 = vmatpush.msra.mxu0 0.0
    %409 = vmatpush.msra.mxu0 0.0
    %410 = vmatpush.msra.mxu0 0.0
    %411 = vmatpush.msra.mxu0 0.0
    %412 = vmatpush.msra.mxu0 0.0
    %413 = vmatpush.msra.mxu0 0.0
    %414 = vmatpush.msra.mxu0 0.0
    %415 = vmatpush.msra.mxu0 0.0
    %416 = vmatpush.msra.mxu0 0.0
    %417 = vmatpush.msra.mxu0 0.0
    %418 = vmatpush.msra.mxu0 %v83
    %419 = vmatpush.msra.mxu0 %v82
    %420 = vmatpush.msra.mxu0 %v81
    %421 = vmatpush.msra.mxu0 %v80
    %422 = vmatpush.msra.mxu0 %v79
    %423 = vmatpush.msra.mxu0 %v78
    %424 = vmatmul.f32.gmra.mxu0 %v406
    %v425 = vpop.f32.mrf.mxu0
    %v426 = vadd.f32 0.0, %v425
    %427 = vdwg.mxu0
    %428 = vmatpush.msra.mxu0 0.0
    %429 = vmatpush.msra.mxu0 0.0
    %430 = vmatpush.msra.mxu0 0.0
    %431 = vmatpush.msra.mxu0 0.0
    %432 = vmatpush.msra.mxu0 0.0
    %433 = vmatpush.msra.mxu0 0.0
    %434 = vmatpush.msra.mxu0 0.0
    %435 = vmatpush.msra.mxu0 0.0
    %436 = vmatpush.msra.mxu0 0.0
    %437 = vmatpush.msra.mxu0 0.0
    %438 = vmatpush.msra.mxu0 0.0
    %439 = vmatpush.msra.mxu0 0.0
    %440 = vmatpush.msra.mxu0 %v77
    %441 = vmatpush.msra.mxu0 %v76
    %442 = vmatpush.msra.mxu0 %v75
    %443 = vmatpush.msra.mxu0 %v74
    %444 = vmatmul.f32.gmra.mxu0 %v216
    %v445 = vpop.f32.mrf.mxu0
    %v446 = vadd.f32 %v426, %v445
    %447 = vdwg.mxu0
    %v448 = vadd.f32 %v446, %v89
    %v450 = vrot.slane %v448, 1
    %vm452 = vcmask 253952
    %453 = vst.msk [vmem:[#allocation6] sm:$0x1] %vm452, %v448
    %454 = vst.msk [vmem:[#allocation6 + $0x8] sm:$0x1] %vm452, %v450
    %455 = vmatpush.msra.mxu0 0.0
    %456 = vmatpush.msra.mxu0 0.0
    %457 = vmatpush.msra.mxu0 0.0
    %458 = vmatpush.msra.mxu0 0.0
    %459 = vmatpush.msra.mxu0 0.0
    %460 = vmatpush.msra.mxu0 0.0
    %461 = vmatpush.msra.mxu0 0.0
    %462 = vmatpush.msra.mxu0 0.0
    %463 = vmatpush.msra.mxu0 0.0
    %464 = vmatpush.msra.mxu0 0.0
    %465 = vmatpush.msra.mxu0 0.0
    %466 = vmatpush.msra.mxu0 0.0
    %467 = vmatpush.msra.mxu0 %v69
    %468 = vmatpush.msra.mxu0 %v68
    %469 = vmatpush.msra.mxu0 %v67
    %470 = vmatpush.msra.mxu0 %v66
    %471 = vmatmul.f32.gmra.mxu0 %v216
    %v472 = vpop.f32.mrf.mxu0
    %v473 = vadd.f32 0.0, %v472
    %474 = vdwg.mxu0
    %v476 = vrot.slane %v473, 7
    %v479 = vadd.f32 %v59, %v476
    %v480 = vadd.f32 %v60, %v473
    %v481 = vxor.u32 %v479, 2147483648
    %v482 = vxor.u32 %v480, 2147483648
    %v483 = vmul.f32 %v481, 1.442695
    %v484 = vpow.pop %v483
    %v485 = vmul.f32 %v482, 1.442695
    %v486 = vpow.pop %v485
    %v487 = vadd.f32 %v484, 1.0
    %v488 = vadd.f32 %v486, 1.0
    %v489 = vrcp.pop %v487
    %v490 = vmul.f32 %v487, %v489
    %v491 = vsub.f32 1.0, %v490
    %v492 = vmul.f32 %v489, %v491
    %v493 = vadd.f32 %v489, %v492
    %vm494 = vweird.f32 %v487
    %vm495 = vweird.f32 %v489
    %vm496 = vmor %vm494, %vm495
    %v497 = vsel %vm496, %v489, %v493
    %v498 = vand.u32 2147483647, %v487
    %vm499 = vcmp.eq.f32.partialorder %v498, 8.507059e+37
    %v500 = vand.u32 %v487, 2147483648
    %v501 = vor.u32 1.1754944e-38, %v500
    %v502 = vsel %vm499, %v501, %v497
    %v503 = vmul.f32 1.0, %v502
    %v504 = vrcp.pop %v488
    %v505 = vmul.f32 %v488, %v504
    %v506 = vsub.f32 1.0, %v505
    %v507 = vmul.f32 %v504, %v506
    %v508 = vadd.f32 %v504, %v507
    %vm509 = vweird.f32 %v488
    %vm510 = vweird.f32 %v504
    %vm511 = vmor %vm509, %vm510
    %v512 = vsel %vm511, %v504, %v508
    %v513 = vand.u32 2147483647, %v488
    %vm514 = vcmp.eq.f32.partialorder %v513, 8.507059e+37
    %v515 = vand.u32 %v488, 2147483648
    %v516 = vor.u32 1.1754944e-38, %v515
    %v517 = vsel %vm514, %v516, %v512
    %v518 = vmul.f32 1.0, %v517
    %v519 = vadd.f32 %v473, %v161
    %v521 = vrot.slane %v519, 7
    %522 = vrot.lane.b32.xlu0 %v521, 64
    %v523 = vpop.permute.xlu0 %522
    %524 = vrot.lane.b32.xlu0 %v519, 64
    %v525 = vpop.permute.xlu0 %524
    %v528 = vmul.f32 %v503, %v523
    %v529 = vmul.f32 %v518, %v525
    %532 = vrot.lane.b32.xlu0 %v528, 64
    %v533 = vpop.permute.xlu0 %532
    %534 = vrot.lane.b32.xlu0 %v529, 64
    %v535 = vpop.permute.xlu0 %534
    %v538 = vadd.f32 %v59, %v533
    %v539 = vadd.f32 %v60, %v535
    %v540 = vtanh.pop %v538
    %v541 = vtanh.pop %v539
    %v542 = vsub.f32 1.0, %v503
    %v543 = vsub.f32 1.0, %v518
    %546 = vrot.lane.b32.xlu0 %v540, 96
    %v547 = vpop.permute.xlu0 %546
    %548 = vrot.lane.b32.xlu0 %v541, 96
    %v549 = vpop.permute.xlu0 %548
    %v552 = vmul.f32 %v542, %v547
    %v553 = vmul.f32 %v543, %v549
    %v554 = vrot.slane %v207, 7
    %v557 = vmul.f32 %v503, %v554
    %v558 = vmul.f32 %v518, %v211
    %v559 = vadd.f32 %v552, %v557
    %v560 = vadd.f32 %v553, %v558
    %v563 = vrot.slane %v559, 1
    %v564 = vsel %vm212, %v560, %v563
    %565 = vrot.lane.b32.xlu0 %v564, 96
    %v566 = vpop.permute.xlu0 %565
    %v567 = vsel %vm92, %v566, 0
    %569 = vmatpush.msra.mxu0 0.0
    %570 = vmatpush.msra.mxu0 0.0
    %571 = vmatpush.msra.mxu0 0.0
    %572 = vmatpush.msra.mxu0 0.0
    %573 = vmatpush.msra.mxu0 0.0
    %574 = vmatpush.msra.mxu0 0.0
    %575 = vmatpush.msra.mxu0 0.0
    %576 = vmatpush.msra.mxu0 0.0
    %577 = vmatpush.msra.mxu0 0.0
    %578 = vmatpush.msra.mxu0 0.0
    %579 = vmatpush.msra.mxu0 0.0
    %580 = vmatpush.msra.mxu0 0.0
    %581 = vmatpush.msra.mxu0 %v73
    %582 = vmatpush.msra.mxu0 %v72
    %583 = vmatpush.msra.mxu0 %v71
    %584 = vmatpush.msra.mxu0 %v70
    %585 = vmatmul.f32.gmra.mxu0 %v567
    %v586 = vpop.f32.mrf.mxu0
    %v587 = vadd.f32 0.0, %v586
    %588 = vdwg.mxu0
    %v590 = vrot.slane %v587, 1
    %v591 = vsel %vm240, %v587, 0
    %593 = vmatpush.xpose.msra.mxu0 0.0
    %594 = vmatpush.xpose.msra.mxu0 0.0
    %595 = vmatpush.xpose.msra.mxu0 0.0
    %596 = vmatpush.xpose.msra.mxu0 0.0
    %597 = vmatpush.xpose.msra.mxu0 0.0
    %598 = vmatpush.xpose.msra.mxu0 0.0
    %599 = vmatpush.xpose.msra.mxu0 0.0
    %600 = vmatpush.xpose.msra.mxu0 0.0
    %601 = vmatpush.xpose.msra.mxu0 0.0
    %602 = vmatpush.xpose.msra.mxu0 0.0
    %603 = vmatpush.xpose.msra.mxu0 0.0
    %604 = vmatpush.xpose.msra.mxu0 0.0
    %605 = vmatpush.xpose.msra.mxu0 0.0
    %606 = vmatpush.xpose.msra.mxu0 0.0
    %607 = vmatpush.xpose.msra.mxu0 %v247
    %608 = vmatpush.xpose.msra.mxu0 %v244
    %609 = vmatmul.f32.gmra.mxu0 %v591
    %v610 = vpop.f32.mrf.mxu0
    %v611 = vadd.f32 0.0, %v610
    %612 = vdwg.mxu0
    %v613 = vsel %vm240, %v590, 0
    %615 = vmatpush.xpose.msra.mxu0 0.0
    %616 = vmatpush.xpose.msra.mxu0 0.0
    %617 = vmatpush.xpose.msra.mxu0 0.0
    %618 = vmatpush.xpose.msra.mxu0 0.0
    %619 = vmatpush.xpose.msra.mxu0 0.0
    %620 = vmatpush.xpose.msra.mxu0 0.0
    %621 = vmatpush.xpose.msra.mxu0 0.0
    %622 = vmatpush.xpose.msra.mxu0 0.0
    %623 = vmatpush.xpose.msra.mxu0 0.0
    %624 = vmatpush.xpose.msra.mxu0 0.0
    %625 = vmatpush.xpose.msra.mxu0 0.0
    %626 = vmatpush.xpose.msra.mxu0 0.0
    %627 = vmatpush.xpose.msra.mxu0 0.0
    %628 = vmatpush.xpose.msra.mxu0 0.0
    %629 = vmatpush.xpose.msra.mxu0 %v275
    %630 = vmatpush.xpose.msra.mxu0 %v272
    %631 = vmatmul.f32.gmra.mxu0 %v613
    %v632 = vpop.f32.mrf.mxu0
    %v633 = vadd.f32 0.0, %v632
    %634 = vdwg.mxu0
    %v637 = vrot.slane %v633, 7
    %v638 = vsel %vm212, %v637, %v611
    %v640 = vsel %vm302, %v638, -inf
    %641 = vmax.xlane.f32.xlu0 %v640
    %v642 = vpop.xlane.xlu0 %641
    %v644 = vrot.slane %v642, 1
    %v647 = vsub.f32 %v611, %v642
    %v648 = vsub.f32 %v633, %v644
    %v649 = vmul.f32 %v647, 1.442695
    %v650 = vpow.pop %v649
    %v651 = vmul.f32 %v648, 1.442695
    %v652 = vpow.pop %v651
    %v655 = vrot.slane %v652, 7
    %v656 = vsel %vm212, %v655, %v650
    %v658 = vsel %vm302, %v656, 0.0
    %659 = vadd.xlane.f32.xlu0 %v658
    %v660 = vpop.xlane.xlu0 %659
    %v661 = vmul.f32 %v650, %v65
    %v662 = vmul.f32 %v652, %v325
    %v665 = vrot.slane %v662, 7
    %v666 = vsel %vm212, %v665, %v661
    %v668 = vsel %vm302, %v666, 0.0
    %669 = vadd.xlane.f32.xlu0 %v668
    %v670 = vpop.xlane.xlu0 %669
    %v671 = vmul.f32 %v660, 1e-12
    %v672 = vadd.f32 %v670, %v671
    %v673 = vrcp.pop %v672
    %v674 = vmul.f32 %v672, %v673
    %v675 = vsub.f32 2.0, %v674
    %v676 = vmul.f32 %v673, %v675
    %v678 = vrot.slane %v676, 1
    %v681 = vmul.f32 %v661, %v676
    %v682 = vmul.f32 %v662, %v678
    %v684 = vsel %vm350, %v681, 0
    %686 = vmatpush.msra.mxu0 0.0
    %687 = vmatpush.msra.mxu0 0.0
    %688 = vmatpush.msra.mxu0 0.0
    %689 = vmatpush.msra.mxu0 0.0
    %690 = vmatpush.msra.mxu0 0.0
    %691 = vmatpush.msra.mxu0 0.0
    %692 = vmatpush.msra.mxu0 0.0
    %693 = vmatpush.msra.mxu0 0.0
    %694 = vmatpush.msra.mxu0 0.0
    %695 = vmatpush.msra.mxu0 0.0
    %696 = vmatpush.msra.mxu0 0.0
    %697 = vmatpush.msra.mxu0 0.0
    %698 = vmatpush.msra.mxu0 0.0
    %699 = vmatpush.msra.mxu0 0.0
    %700 = vmatpush.msra.mxu0 %v355
    %701 = vmatpush.msra.mxu0 %v61
    %702 = vmatmul.f32.gmra.mxu0 %v684
    %v703 = vpop.f32.mrf.mxu0
    %v704 = vadd.f32 0.0, %v703
    %705 = vdwg.mxu0
    %v707 = vsel %vm350, %v682, 0
    %709 = vmatpush.msra.mxu0 0.0
    %710 = vmatpush.msra.mxu0 0.0
    %711 = vmatpush.msra.mxu0 0.0
    %712 = vmatpush.msra.mxu0 0.0
    %713 = vmatpush.msra.mxu0 0.0
    %714 = vmatpush.msra.mxu0 0.0
    %715 = vmatpush.msra.mxu0 0.0
    %716 = vmatpush.msra.mxu0 0.0
    %717 = vmatpush.msra.mxu0 0.0
    %718 = vmatpush.msra.mxu0 0.0
    %719 = vmatpush.msra.mxu0 0.0
    %720 = vmatpush.msra.mxu0 0.0
    %721 = vmatpush.msra.mxu0 0.0
    %722 = vmatpush.msra.mxu0 0.0
    %723 = vmatpush.msra.mxu0 %v380
    %724 = vmatpush.msra.mxu0 %v63
    %725 = vmatmul.f32.gmra.mxu0 %v707
    %v726 = vpop.f32.mrf.mxu0
    %v727 = vadd.f32 0.0, %v726
    %728 = vdwg.mxu0
    %v731 = vrot.slane %v727, 7
    %v732 = vsel %vm212, %v731, %v704
    %v733 = vsel %vm240, %v732, 0
    %735 = vmatpush.msra.mxu0 0.0
    %736 = vmatpush.msra.mxu0 0.0
    %737 = vmatpush.msra.mxu0 0.0
    %738 = vmatpush.msra.mxu0 0.0
    %739 = vmatpush.msra.mxu0 0.0
    %740 = vmatpush.msra.mxu0 0.0
    %741 = vmatpush.msra.mxu0 0.0
    %742 = vmatpush.msra.mxu0 0.0
    %743 = vmatpush.msra.mxu0 0.0
    %744 = vmatpush.msra.mxu0 0.0
    %745 = vmatpush.msra.mxu0 %v83
    %746 = vmatpush.msra.mxu0 %v82
    %747 = vmatpush.msra.mxu0 %v81
    %748 = vmatpush.msra.mxu0 %v80
    %749 = vmatpush.msra.mxu0 %v79
    %750 = vmatpush.msra.mxu0 %v78
    %751 = vmatmul.f32.gmra.mxu0 %v733
    %v752 = vpop.f32.mrf.mxu0
    %v753 = vadd.f32 0.0, %v752
    %754 = vdwg.mxu0
    %755 = vmatpush.msra.mxu0 0.0
    %756 = vmatpush.msra.mxu0 0.0
    %757 = vmatpush.msra.mxu0 0.0
    %758 = vmatpush.msra.mxu0 0.0
    %759 = vmatpush.msra.mxu0 0.0
    %760 = vmatpush.msra.mxu0 0.0
    %761 = vmatpush.msra.mxu0 0.0
    %762 = vmatpush.msra.mxu0 0.0
    %763 = vmatpush.msra.mxu0 0.0
    %764 = vmatpush.msra.mxu0 0.0
    %765 = vmatpush.msra.mxu0 0.0
    %766 = vmatpush.msra.mxu0 0.0
    %767 = vmatpush.msra.mxu0 %v77
    %768 = vmatpush.msra.mxu0 %v76
    %769 = vmatpush.msra.mxu0 %v75
    %770 = vmatpush.msra.mxu0 %v74
    %771 = vmatmul.f32.gmra.mxu0 %v567
    %v772 = vpop.f32.mrf.mxu0
    %v773 = vadd.f32 %v753, %v772
    %774 = vdwg.mxu0
    %v775 = vadd.f32 %v773, %v89
    %v777 = vrot.slane %v775, 1
    %779 = vst.msk [vmem:[#allocation6 + $0x1] sm:$0x1] %vm452, %v775
    %780 = vst.msk [vmem:[#allocation6 + $0x9] sm:$0x1] %vm452, %v777
    %781 = vmatpush.msra.mxu0 0.0
    %782 = vmatpush.msra.mxu0 0.0
    %783 = vmatpush.msra.mxu0 0.0
    %784 = vmatpush.msra.mxu0 0.0
    %785 = vmatpush.msra.mxu0 0.0
    %786 = vmatpush.msra.mxu0 0.0
    %787 = vmatpush.msra.mxu0 0.0
    %788 = vmatpush.msra.mxu0 0.0
    %789 = vmatpush.msra.mxu0 0.0
    %790 = vmatpush.msra.mxu0 0.0
    %791 = vmatpush.msra.mxu0 0.0
    %792 = vmatpush.msra.mxu0 0.0
    %793 = vmatpush.msra.mxu0 %v69
    %794 = vmatpush.msra.mxu0 %v68
    %795 = vmatpush.msra.mxu0 %v67
    %796 = vmatpush.msra.mxu0 %v66
    %797 = vmatmul.f32.gmra.mxu0 %v567
    %v798 = vpop.f32.mrf.mxu0
    %v799 = vadd.f32 0.0, %v798
    %800 = vdwg.mxu0
    %v802 = vrot.slane %v799, 6
    %v803 = vrot.slane %v799, 7
    %v806 = vadd.f32 %v59, %v802
    %v807 = vadd.f32 %v60, %v803
    %v808 = vxor.u32 %v806, 2147483648
    %v809 = vxor.u32 %v807, 2147483648
    %v810 = vmul.f32 %v808, 1.442695
    %v811 = vpow.pop %v810
    %v812 = vmul.f32 %v809, 1.442695
    %v813 = vpow.pop %v812
    %v814 = vadd.f32 %v811, 1.0
    %v815 = vadd.f32 %v813, 1.0
    %v816 = vrcp.pop %v814
    %v817 = vmul.f32 %v814, %v816
    %v818 = vsub.f32 1.0, %v817
    %v819 = vmul.f32 %v816, %v818
    %v820 = vadd.f32 %v816, %v819
    %vm821 = vweird.f32 %v814
    %vm822 = vweird.f32 %v816
    %vm823 = vmor %vm821, %vm822
    %v824 = vsel %vm823, %v816, %v820
    %v825 = vand.u32 2147483647, %v814
    %vm826 = vcmp.eq.f32.partialorder %v825, 8.507059e+37
    %v827 = vand.u32 %v814, 2147483648
    %v828 = vor.u32 1.1754944e-38, %v827
    %v829 = vsel %vm826, %v828, %v824
    %v830 = vmul.f32 1.0, %v829
    %v831 = vrcp.pop %v815
    %v832 = vmul.f32 %v815, %v831
    %v833 = vsub.f32 1.0, %v832
    %v834 = vmul.f32 %v831, %v833
    %v835 = vadd.f32 %v831, %v834
    %vm836 = vweird.f32 %v815
    %vm837 = vweird.f32 %v831
    %vm838 = vmor %vm836, %vm837
    %v839 = vsel %vm838, %v831, %v835
    %v840 = vand.u32 2147483647, %v815
    %vm841 = vcmp.eq.f32.partialorder %v840, 8.507059e+37
    %v842 = vand.u32 %v815, 2147483648
    %v843 = vor.u32 1.1754944e-38, %v842
    %v844 = vsel %vm841, %v843, %v839
    %v845 = vmul.f32 1.0, %v844
    %v846 = vadd.f32 %v799, %v161
    %v848 = vrot.slane %v846, 6
    %v849 = vrot.slane %v846, 7
    %850 = vrot.lane.b32.xlu0 %v848, 64
    %v851 = vpop.permute.xlu0 %850
    %852 = vrot.lane.b32.xlu0 %v849, 64
    %v853 = vpop.permute.xlu0 %852
    %v856 = vmul.f32 %v830, %v851
    %v857 = vmul.f32 %v845, %v853
    %860 = vrot.lane.b32.xlu0 %v856, 64
    %v861 = vpop.permute.xlu0 %860
    %862 = vrot.lane.b32.xlu0 %v857, 64
    %v863 = vpop.permute.xlu0 %862
    %v866 = vadd.f32 %v59, %v861
    %v867 = vadd.f32 %v60, %v863
    %v868 = vtanh.pop %v866
    %v869 = vtanh.pop %v867
    %v870 = vsub.f32 1.0, %v830
    %v871 = vsub.f32 1.0, %v845
    %874 = vrot.lane.b32.xlu0 %v868, 96
    %v875 = vpop.permute.xlu0 %874
    %876 = vrot.lane.b32.xlu0 %v869, 96
    %v877 = vpop.permute.xlu0 %876
    %v880 = vmul.f32 %v870, %v875
    %v881 = vmul.f32 %v871, %v877
    %v882 = vrot.slane %v559, 7
    %v883 = vrot.slane %v560, 7
    %v886 = vmul.f32 %v830, %v882
    %v887 = vmul.f32 %v845, %v883
    %v888 = vadd.f32 %v880, %v886
    %v889 = vadd.f32 %v881, %v887
    %v892 = vrot.slane %v888, 2
    %v893 = vrot.slane %v889, 1
    %v894 = vsel %vm212, %v893, %v892
    %895 = vrot.lane.b32.xlu0 %v894, 96
    %v896 = vpop.permute.xlu0 %895
    %v897 = vsel %vm92, %v896, 0
    %899 = vmatpush.msra.mxu0 0.0
    %900 = vmatpush.msra.mxu0 0.0
    %901 = vmatpush.msra.mxu0 0.0
    %902 = vmatpush.msra.mxu0 0.0
    %903 = vmatpush.msra.mxu0 0.0
    %904 = vmatpush.msra.mxu0 0.0
    %905 = vmatpush.msra.mxu0 0.0
    %906 = vmatpush.msra.mxu0 0.0
    %907 = vmatpush.msra.mxu0 0.0
    %908 = vmatpush.msra.mxu0 0.0
    %909 = vmatpush.msra.mxu0 0.0
    %910 = vmatpush.msra.mxu0 0.0
    %911 = vmatpush.msra.mxu0 %v73
    %912 = vmatpush.msra.mxu0 %v72
    %913 = vmatpush.msra.mxu0 %v71
    %914 = vmatpush.msra.mxu0 %v70
    %915 = vmatmul.f32.gmra.mxu0 %v897
    %v916 = vpop.f32.mrf.mxu0
    %v917 = vadd.f32 0.0, %v916
    %918 = vdwg.mxu0
    %v920 = vrot.slane %v917, 1
    %v921 = vsel %vm240, %v917, 0
    %923 = vmatpush.xpose.msra.mxu0 0.0
    %924 = vmatpush.xpose.msra.mxu0 0.0
    %925 = vmatpush.xpose.msra.mxu0 0.0
    %926 = vmatpush.xpose.msra.mxu0 0.0
    %927 = vmatpush.xpose.msra.mxu0 0.0
    %928 = vmatpush.xpose.msra.mxu0 0.0
    %929 = vmatpush.xpose.msra.mxu0 0.0
    %930 = vmatpush.xpose.msra.mxu0 0.0
    %931 = vmatpush.xpose.msra.mxu0 0.0
    %932 = vmatpush.xpose.msra.mxu0 0.0
    %933 = vmatpush.xpose.msra.mxu0 0.0
    %934 = vmatpush.xpose.msra.mxu0 0.0
    %935 = vmatpush.xpose.msra.mxu0 0.0
    %936 = vmatpush.xpose.msra.mxu0 0.0
    %937 = vmatpush.xpose.msra.mxu0 %v247
    %938 = vmatpush.xpose.msra.mxu0 %v244
    %939 = vmatmul.f32.gmra.mxu0 %v921
    %v940 = vpop.f32.mrf.mxu0
    %v941 = vadd.f32 0.0, %v940
    %942 = vdwg.mxu0
    %v943 = vsel %vm240, %v920, 0
    %945 = vmatpush.xpose.msra.mxu0 0.0
    %946 = vmatpush.xpose.msra.mxu0 0.0
    %947 = vmatpush.xpose.msra.mxu0 0.0
    %948 = vmatpush.xpose.msra.mxu0 0.0
    %949 = vmatpush.xpose.msra.mxu0 0.0
    %950 = vmatpush.xpose.msra.mxu0 0.0
    %951 = vmatpush.xpose.msra.mxu0 0.0
    %952 = vmatpush.xpose.msra.mxu0 0.0
    %953 = vmatpush.xpose.msra.mxu0 0.0
    %954 = vmatpush.xpose.msra.mxu0 0.0
    %955 = vmatpush.xpose.msra.mxu0 0.0
    %956 = vmatpush.xpose.msra.mxu0 0.0
    %957 = vmatpush.xpose.msra.mxu0 0.0
    %958 = vmatpush.xpose.msra.mxu0 0.0
    %959 = vmatpush.xpose.msra.mxu0 %v275
    %960 = vmatpush.xpose.msra.mxu0 %v272
    %961 = vmatmul.f32.gmra.mxu0 %v943
    %v962 = vpop.f32.mrf.mxu0
    %v963 = vadd.f32 0.0, %v962
    %964 = vdwg.mxu0
    %v967 = vrot.slane %v963, 7
    %v968 = vsel %vm212, %v967, %v941
    %v970 = vsel %vm302, %v968, -inf
    %971 = vmax.xlane.f32.xlu0 %v970
    %v972 = vpop.xlane.xlu0 %971
    %v974 = vrot.slane %v972, 1
    %v977 = vsub.f32 %v941, %v972
    %v978 = vsub.f32 %v963, %v974
    %v979 = vmul.f32 %v977, 1.442695
    %v980 = vpow.pop %v979
    %v981 = vmul.f32 %v978, 1.442695
    %v982 = vpow.pop %v981
    %v985 = vrot.slane %v982, 7
    %v986 = vsel %vm212, %v985, %v980
    %v988 = vsel %vm302, %v986, 0.0
    %989 = vadd.xlane.f32.xlu0 %v988
    %v990 = vpop.xlane.xlu0 %989
    %v991 = vmul.f32 %v980, %v65
    %v992 = vmul.f32 %v982, %v325
    %v995 = vrot.slane %v992, 7
    %v996 = vsel %vm212, %v995, %v991
    %v998 = vsel %vm302, %v996, 0.0
    %999 = vadd.xlane.f32.xlu0 %v998
    %v1000 = vpop.xlane.xlu0 %999
    %v1001 = vmul.f32 %v990, 1e-12
    %v1002 = vadd.f32 %v1000, %v1001
    %v1003 = vrcp.pop %v1002
    %v1004 = vmul.f32 %v1002, %v1003
    %v1005 = vsub.f32 2.0, %v1004
    %v1006 = vmul.f32 %v1003, %v1005
    %v1008 = vrot.slane %v1006, 1
    %v1011 = vmul.f32 %v991, %v1006
    %v1012 = vmul.f32 %v992, %v1008
    %v1014 = vsel %vm350, %v1011, 0
    %1016 = vmatpush.msra.mxu0 0.0
    %1017 = vmatpush.msra.mxu0 0.0
    %1018 = vmatpush.msra.mxu0 0.0
    %1019 = vmatpush.msra.mxu0 0.0
    %1020 = vmatpush.msra.mxu0 0.0
    %1021 = vmatpush.msra.mxu0 0.0
    %1022 = vmatpush.msra.mxu0 0.0
    %1023 = vmatpush.msra.mxu0 0.0
    %1024 = vmatpush.msra.mxu0 0.0
    %1025 = vmatpush.msra.mxu0 0.0
    %1026 = vmatpush.msra.mxu0 0.0
    %1027 = vmatpush.msra.mxu0 0.0
    %1028 = vmatpush.msra.mxu0 0.0
    %1029 = vmatpush.msra.mxu0 0.0
    %1030 = vmatpush.msra.mxu0 %v355
    %1031 = vmatpush.msra.mxu0 %v61
    %1032 = vmatmul.f32.gmra.mxu0 %v1014
    %v1033 = vpop.f32.mrf.mxu0
    %v1034 = vadd.f32 0.0, %v1033
    %1035 = vdwg.mxu0
    %v1037 = vsel %vm350, %v1012, 0
    %1039 = vmatpush.msra.mxu0 0.0
    %1040 = vmatpush.msra.mxu0 0.0
    %1041 = vmatpush.msra.mxu0 0.0
    %1042 = vmatpush.msra.mxu0 0.0
    %1043 = vmatpush.msra.mxu0 0.0
    %1044 = vmatpush.msra.mxu0 0.0
    %1045 = vmatpush.msra.mxu0 0.0
    %1046 = vmatpush.msra.mxu0 0.0
    %1047 = vmatpush.msra.mxu0 0.0
    %1048 = vmatpush.msra.mxu0 0.0
    %1049 = vmatpush.msra.mxu0 0.0
    %1050 = vmatpush.msra.mxu0 0.0
    %1051 = vmatpush.msra.mxu0 0.0
    %1052 = vmatpush.msra.mxu0 0.0
    %1053 = vmatpush.msra.mxu0 %v380
    %1054 = vmatpush.msra.mxu0 %v63
    %1055 = vmatmul.f32.gmra.mxu0 %v1037
    %v1056 = vpop.f32.mrf.mxu0
    %v1057 = vadd.f32 0.0, %v1056
    %1058 = vdwg.mxu0
    %v1061 = vrot.slane %v1057, 7
    %v1062 = vsel %vm212, %v1061, %v1034
    %v1063 = vsel %vm240, %v1062, 0
    %1065 = vmatpush.msra.mxu0 0.0
    %1066 = vmatpush.msra.mxu0 0.0
    %1067 = vmatpush.msra.mxu0 0.0
    %1068 = vmatpush.msra.mxu0 0.0
    %1069 = vmatpush.msra.mxu0 0.0
    %1070 = vmatpush.msra.mxu0 0.0
    %1071 = vmatpush.msra.mxu0 0.0
    %1072 = vmatpush.msra.mxu0 0.0
    %1073 = vmatpush.msra.mxu0 0.0
    %1074 = vmatpush.msra.mxu0 0.0
    %1075 = vmatpush.msra.mxu0 %v83
    %1076 = vmatpush.msra.mxu0 %v82
    %1077 = vmatpush.msra.mxu0 %v81
    %1078 = vmatpush.msra.mxu0 %v80
    %1079 = vmatpush.msra.mxu0 %v79
    %1080 = vmatpush.msra.mxu0 %v78
    %1081 = vmatmul.f32.gmra.mxu0 %v1063
    %v1082 = vpop.f32.mrf.mxu0
    %v1083 = vadd.f32 0.0, %v1082
    %1084 = vdwg.mxu0
    %1085 = vmatpush.msra.mxu0 0.0
    %1086 = vmatpush.msra.mxu0 0.0
    %1087 = vmatpush.msra.mxu0 0.0
    %1088 = vmatpush.msra.mxu0 0.0
    %1089 = vmatpush.msra.mxu0 0.0
    %1090 = vmatpush.msra.mxu0 0.0
    %1091 = vmatpush.msra.mxu0 0.0
    %1092 = vmatpush.msra.mxu0 0.0
    %1093 = vmatpush.msra.mxu0 0.0
    %1094 = vmatpush.msra.mxu0 0.0
    %1095 = vmatpush.msra.mxu0 0.0
    %1096 = vmatpush.msra.mxu0 0.0
    %1097 = vmatpush.msra.mxu0 %v77
    %1098 = vmatpush.msra.mxu0 %v76
    %1099 = vmatpush.msra.mxu0 %v75
    %1100 = vmatpush.msra.mxu0 %v74
    %1101 = vmatmul.f32.gmra.mxu0 %v897
    %v1102 = vpop.f32.mrf.mxu0
    %v1103 = vadd.f32 %v1083, %v1102
    %1104 = vdwg.mxu0
    %v1105 = vadd.f32 %v1103, %v89
    %v1107 = vrot.slane %v1105, 1
    %1109 = vst.msk [vmem:[#allocation6 + $0x2] sm:$0x1] %vm452, %v1105
    %1110 = vst.msk [vmem:[#allocation6 + $0xa] sm:$0x1] %vm452, %v1107
    %1111 = vmatpush.msra.mxu0 0.0
    %1112 = vmatpush.msra.mxu0 0.0
    %1113 = vmatpush.msra.mxu0 0.0
    %1114 = vmatpush.msra.mxu0 0.0
    %1115 = vmatpush.msra.mxu0 0.0
    %1116 = vmatpush.msra.mxu0 0.0
    %1117 = vmatpush.msra.mxu0 0.0
    %1118 = vmatpush.msra.mxu0 0.0
    %1119 = vmatpush.msra.mxu0 0.0
    %1120 = vmatpush.msra.mxu0 0.0
    %1121 = vmatpush.msra.mxu0 0.0
    %1122 = vmatpush.msra.mxu0 0.0
    %1123 = vmatpush.msra.mxu0 %v69
    %1124 = vmatpush.msra.mxu0 %v68
    %1125 = vmatpush.msra.mxu0 %v67
    %1126 = vmatpush.msra.mxu0 %v66
    %1127 = vmatmul.f32.gmra.mxu0 %v897
    %v1128 = vpop.f32.mrf.mxu0
    %v1129 = vadd.f32 0.0, %v1128
    %1130 = vdwg.mxu0
    %v1132 = vrot.slane %v1129, 5
    %v1133 = vrot.slane %v1129, 6
    %v1136 = vadd.f32 %v59, %v1132
    %v1137 = vadd.f32 %v60, %v1133
    %v1138 = vxor.u32 %v1136, 2147483648
    %v1139 = vxor.u32 %v1137, 2147483648
    %v1140 = vmul.f32 %v1138, 1.442695
    %v1141 = vpow.pop %v1140
    %v1142 = vmul.f32 %v1139, 1.442695
    %v1143 = vpow.pop %v1142
    %v1144 = vadd.f32 %v1141, 1.0
    %v1145 = vadd.f32 %v1143, 1.0
    %v1146 = vrcp.pop %v1144
    %v1147 = vmul.f32 %v1144, %v1146
    %v1148 = vsub.f32 1.0, %v1147
    %v1149 = vmul.f32 %v1146, %v1148
    %v1150 = vadd.f32 %v1146, %v1149
    %vm1151 = vweird.f32 %v1144
    %vm1152 = vweird.f32 %v1146
    %vm1153 = vmor %vm1151, %vm1152
    %v1154 = vsel %vm1153, %v1146, %v1150
    %v1155 = vand.u32 2147483647, %v1144
    %vm1156 = vcmp.eq.f32.partialorder %v1155, 8.507059e+37
    %v1157 = vand.u32 %v1144, 2147483648
    %v1158 = vor.u32 1.1754944e-38, %v1157
    %v1159 = vsel %vm1156, %v1158, %v1154
    %v1160 = vmul.f32 1.0, %v1159
    %v1161 = vrcp.pop %v1145
    %v1162 = vmul.f32 %v1145, %v1161
    %v1163 = vsub.f32 1.0, %v1162
    %v1164 = vmul.f32 %v1161, %v1163
    %v1165 = vadd.f32 %v1161, %v1164
    %vm1166 = vweird.f32 %v1145
    %vm1167 = vweird.f32 %v1161
    %vm1168 = vmor %vm1166, %vm1167
    %v1169 = vsel %vm1168, %v1161, %v1165
    %v1170 = vand.u32 2147483647, %v1145
    %vm1171 = vcmp.eq.f32.partialorder %v1170, 8.507059e+37
    %v1172 = vand.u32 %v1145, 2147483648
    %v1173 = vor.u32 1.1754944e-38, %v1172
    %v1174 = vsel %vm1171, %v1173, %v1169
    %v1175 = vmul.f32 1.0, %v1174
    %v1176 = vadd.f32 %v1129, %v161
    %v1178 = vrot.slane %v1176, 5
    %v1179 = vrot.slane %v1176, 6
    %1180 = vrot.lane.b32.xlu0 %v1178, 64
    %v1181 = vpop.permute.xlu0 %1180
    %1182 = vrot.lane.b32.xlu0 %v1179, 64
    %v1183 = vpop.permute.xlu0 %1182
    %v1186 = vmul.f32 %v1160, %v1181
    %v1187 = vmul.f32 %v1175, %v1183
    %1190 = vrot.lane.b32.xlu0 %v1186, 64
    %v1191 = vpop.permute.xlu0 %1190
    %1192 = vrot.lane.b32.xlu0 %v1187, 64
    %v1193 = vpop.permute.xlu0 %1192
    %v1196 = vadd.f32 %v59, %v1191
    %v1197 = vadd.f32 %v60, %v1193
    %v1198 = vtanh.pop %v1196
    %v1199 = vtanh.pop %v1197
    %v1200 = vsub.f32 1.0, %v1160
    %v1201 = vsub.f32 1.0, %v1175
    %1204 = vrot.lane.b32.xlu0 %v1198, 96
    %v1205 = vpop.permute.xlu0 %1204
    %1206 = vrot.lane.b32.xlu0 %v1199, 96
    %v1207 = vpop.permute.xlu0 %1206
    %v1210 = vmul.f32 %v1200, %v1205
    %v1211 = vmul.f32 %v1201, %v1207
    %v1212 = vrot.slane %v888, 7
    %v1213 = vrot.slane %v889, 7
    %v1216 = vmul.f32 %v1160, %v1212
    %v1217 = vmul.f32 %v1175, %v1213
    %v1218 = vadd.f32 %v1210, %v1216
    %v1219 = vadd.f32 %v1211, %v1217
    %v1222 = vrot.slane %v1218, 3
    %v1223 = vrot.slane %v1219, 2
    %v1224 = vsel %vm212, %v1223, %v1222
    %1225 = vrot.lane.b32.xlu0 %v1224, 96
    %v1226 = vpop.permute.xlu0 %1225
    %v1227 = vsel %vm92, %v1226, 0
    %1229 = vmatpush.msra.mxu0 0.0
    %1230 = vmatpush.msra.mxu0 0.0
    %1231 = vmatpush.msra.mxu0 0.0
    %1232 = vmatpush.msra.mxu0 0.0
    %1233 = vmatpush.msra.mxu0 0.0
    %1234 = vmatpush.msra.mxu0 0.0
    %1235 = vmatpush.msra.mxu0 0.0
    %1236 = vmatpush.msra.mxu0 0.0
    %1237 = vmatpush.msra.mxu0 0.0
    %1238 = vmatpush.msra.mxu0 0.0
    %1239 = vmatpush.msra.mxu0 0.0
    %1240 = vmatpush.msra.mxu0 0.0
    %1241 = vmatpush.msra.mxu0 %v73
    %1242 = vmatpush.msra.mxu0 %v72
    %1243 = vmatpush.msra.mxu0 %v71
    %1244 = vmatpush.msra.mxu0 %v70
    %1245 = vmatmul.f32.gmra.mxu0 %v1227
    %v1246 = vpop.f32.mrf.mxu0
    %v1247 = vadd.f32 0.0, %v1246
    %1248 = vdwg.mxu0
    %v1250 = vrot.slane %v1247, 1
    %v1251 = vsel %vm240, %v1247, 0
    %1253 = vmatpush.xpose.msra.mxu0 0.0
    %1254 = vmatpush.xpose.msra.mxu0 0.0
    %1255 = vmatpush.xpose.msra.mxu0 0.0
    %1256 = vmatpush.xpose.msra.mxu0 0.0
    %1257 = vmatpush.xpose.msra.mxu0 0.0
    %1258 = vmatpush.xpose.msra.mxu0 0.0
    %1259 = vmatpush.xpose.msra.mxu0 0.0
    %1260 = vmatpush.xpose.msra.mxu0 0.0
    %1261 = vmatpush.xpose.msra.mxu0 0.0
    %1262 = vmatpush.xpose.msra.mxu0 0.0
    %1263 = vmatpush.xpose.msra.mxu0 0.0
    %1264 = vmatpush.xpose.msra.mxu0 0.0
    %1265 = vmatpush.xpose.msra.mxu0 0.0
    %1266 = vmatpush.xpose.msra.mxu0 0.0
    %1267 = vmatpush.xpose.msra.mxu0 %v247
    %1268 = vmatpush.xpose.msra.mxu0 %v244
    %1269 = vmatmul.f32.gmra.mxu0 %v1251
    %v1270 = vpop.f32.mrf.mxu0
    %v1271 = vadd.f32 0.0, %v1270
    %1272 = vdwg.mxu0
    %v1273 = vsel %vm240, %v1250, 0
    %1275 = vmatpush.xpose.msra.mxu0 0.0
    %1276 = vmatpush.xpose.msra.mxu0 0.0
    %1277 = vmatpush.xpose.msra.mxu0 0.0
    %1278 = vmatpush.xpose.msra.mxu0 0.0
    %1279 = vmatpush.xpose.msra.mxu0 0.0
    %1280 = vmatpush.xpose.msra.mxu0 0.0
    %1281 = vmatpush.xpose.msra.mxu0 0.0
    %1282 = vmatpush.xpose.msra.mxu0 0.0
    %1283 = vmatpush.xpose.msra.mxu0 0.0
    %1284 = vmatpush.xpose.msra.mxu0 0.0
    %1285 = vmatpush.xpose.msra.mxu0 0.0
    %1286 = vmatpush.xpose.msra.mxu0 0.0
    %1287 = vmatpush.xpose.msra.mxu0 0.0
    %1288 = vmatpush.xpose.msra.mxu0 0.0
    %1289 = vmatpush.xpose.msra.mxu0 %v275
    %1290 = vmatpush.xpose.msra.mxu0 %v272
    %1291 = vmatmul.f32.gmra.mxu0 %v1273
    %v1292 = vpop.f32.mrf.mxu0
    %v1293 = vadd.f32 0.0, %v1292
    %1294 = vdwg.mxu0
    %v1297 = vrot.slane %v1293, 7
    %v1298 = vsel %vm212, %v1297, %v1271
    %v1300 = vsel %vm302, %v1298, -inf
    %1301 = vmax.xlane.f32.xlu0 %v1300
    %v1302 = vpop.xlane.xlu0 %1301
    %v1304 = vrot.slane %v1302, 1
    %v1307 = vsub.f32 %v1271, %v1302
    %v1308 = vsub.f32 %v1293, %v1304
    %v1309 = vmul.f32 %v1307, 1.442695
    %v1310 = vpow.pop %v1309
    %v1311 = vmul.f32 %v1308, 1.442695
    %v1312 = vpow.pop %v1311
    %v1315 = vrot.slane %v1312, 7
    %v1316 = vsel %vm212, %v1315, %v1310
    %v1318 = vsel %vm302, %v1316, 0.0
    %1319 = vadd.xlane.f32.xlu0 %v1318
    %v1320 = vpop.xlane.xlu0 %1319
    %v1321 = vmul.f32 %v1310, %v65
    %v1322 = vmul.f32 %v1312, %v325
    %v1325 = vrot.slane %v1322, 7
    %v1326 = vsel %vm212, %v1325, %v1321
    %v1328 = vsel %vm302, %v1326, 0.0
    %1329 = vadd.xlane.f32.xlu0 %v1328
    %v1330 = vpop.xlane.xlu0 %1329
    %v1331 = vmul.f32 %v1320, 1e-12
    %v1332 = vadd.f32 %v1330, %v1331
    %v1333 = vrcp.pop %v1332
    %v1334 = vmul.f32 %v1332, %v1333
    %v1335 = vsub.f32 2.0, %v1334
    %v1336 = vmul.f32 %v1333, %v1335
    %v1338 = vrot.slane %v1336, 1
    %v1341 = vmul.f32 %v1321, %v1336
    %v1342 = vmul.f32 %v1322, %v1338
    %v1344 = vsel %vm350, %v1341, 0
    %1346 = vmatpush.msra.mxu0 0.0
    %1347 = vmatpush.msra.mxu0 0.0
    %1348 = vmatpush.msra.mxu0 0.0
    %1349 = vmatpush.msra.mxu0 0.0
    %1350 = vmatpush.msra.mxu0 0.0
    %1351 = vmatpush.msra.mxu0 0.0
    %1352 = vmatpush.msra.mxu0 0.0
    %1353 = vmatpush.msra.mxu0 0.0
    %1354 = vmatpush.msra.mxu0 0.0
    %1355 = vmatpush.msra.mxu0 0.0
    %1356 = vmatpush.msra.mxu0 0.0
    %1357 = vmatpush.msra.mxu0 0.0
    %1358 = vmatpush.msra.mxu0 0.0
    %1359 = vmatpush.msra.mxu0 0.0
    %1360 = vmatpush.msra.mxu0 %v355
    %1361 = vmatpush.msra.mxu0 %v61
    %1362 = vmatmul.f32.gmra.mxu0 %v1344
    %v1363 = vpop.f32.mrf.mxu0
    %v1364 = vadd.f32 0.0, %v1363
    %1365 = vdwg.mxu0
    %v1367 = vsel %vm350, %v1342, 0
    %1369 = vmatpush.msra.mxu0 0.0
    %1370 = vmatpush.msra.mxu0 0.0
    %1371 = vmatpush.msra.mxu0 0.0
    %1372 = vmatpush.msra.mxu0 0.0
    %1373 = vmatpush.msra.mxu0 0.0
    %1374 = vmatpush.msra.mxu0 0.0
    %1375 = vmatpush.msra.mxu0 0.0
    %1376 = vmatpush.msra.mxu0 0.0
    %1377 = vmatpush.msra.mxu0 0.0
    %1378 = vmatpush.msra.mxu0 0.0
    %1379 = vmatpush.msra.mxu0 0.0
    %1380 = vmatpush.msra.mxu0 0.0
    %1381 = vmatpush.msra.mxu0 0.0
    %1382 = vmatpush.msra.mxu0 0.0
    %1383 = vmatpush.msra.mxu0 %v380
    %1384 = vmatpush.msra.mxu0 %v63
    %1385 = vmatmul.f32.gmra.mxu0 %v1367
    %v1386 = vpop.f32.mrf.mxu0
    %v1387 = vadd.f32 0.0, %v1386
    %1388 = vdwg.mxu0
    %v1391 = vrot.slane %v1387, 7
    %v1392 = vsel %vm212, %v1391, %v1364
    %v1393 = vsel %vm240, %v1392, 0
    %1395 = vmatpush.msra.mxu0 0.0
    %1396 = vmatpush.msra.mxu0 0.0
    %1397 = vmatpush.msra.mxu0 0.0
    %1398 = vmatpush.msra.mxu0 0.0
    %1399 = vmatpush.msra.mxu0 0.0
    %1400 = vmatpush.msra.mxu0 0.0
    %1401 = vmatpush.msra.mxu0 0.0
    %1402 = vmatpush.msra.mxu0 0.0
    %1403 = vmatpush.msra.mxu0 0.0
    %1404 = vmatpush.msra.mxu0 0.0
    %1405 = vmatpush.msra.mxu0 %v83
    %1406 = vmatpush.msra.mxu0 %v82
    %1407 = vmatpush.msra.mxu0 %v81
    %1408 = vmatpush.msra.mxu0 %v80
    %1409 = vmatpush.msra.mxu0 %v79
    %1410 = vmatpush.msra.mxu0 %v78
    %1411 = vmatmul.f32.gmra.mxu0 %v1393
    %v1412 = vpop.f32.mrf.mxu0
    %v1413 = vadd.f32 0.0, %v1412
    %1414 = vdwg.mxu0
    %1415 = vmatpush.msra.mxu0 0.0
    %1416 = vmatpush.msra.mxu0 0.0
    %1417 = vmatpush.msra.mxu0 0.0
    %1418 = vmatpush.msra.mxu0 0.0
    %1419 = vmatpush.msra.mxu0 0.0
    %1420 = vmatpush.msra.mxu0 0.0
    %1421 = vmatpush.msra.mxu0 0.0
    %1422 = vmatpush.msra.mxu0 0.0
    %1423 = vmatpush.msra.mxu0 0.0
    %1424 = vmatpush.msra.mxu0 0.0
    %1425 = vmatpush.msra.mxu0 0.0
    %1426 = vmatpush.msra.mxu0 0.0
    %1427 = vmatpush.msra.mxu0 %v77
    %1428 = vmatpush.msra.mxu0 %v76
    %1429 = vmatpush.msra.mxu0 %v75
    %1430 = vmatpush.msra.mxu0 %v74
    %1431 = vmatmul.f32.gmra.mxu0 %v1227
    %v1432 = vpop.f32.mrf.mxu0
    %v1433 = vadd.f32 %v1413, %v1432
    %1434 = vdwg.mxu0
    %v1435 = vadd.f32 %v1433, %v89
    %v1437 = vrot.slane %v1435, 1
    %1439 = vst.msk [vmem:[#allocation6 + $0x3] sm:$0x1] %vm452, %v1435
    %1440 = vst.msk [vmem:[#allocation6 + $0xb] sm:$0x1] %vm452, %v1437
    %1441 = vmatpush.msra.mxu0 0.0
    %1442 = vmatpush.msra.mxu0 0.0
    %1443 = vmatpush.msra.mxu0 0.0
    %1444 = vmatpush.msra.mxu0 0.0
    %1445 = vmatpush.msra.mxu0 0.0
    %1446 = vmatpush.msra.mxu0 0.0
    %1447 = vmatpush.msra.mxu0 0.0
    %1448 = vmatpush.msra.mxu0 0.0
    %1449 = vmatpush.msra.mxu0 0.0
    %1450 = vmatpush.msra.mxu0 0.0
    %1451 = vmatpush.msra.mxu0 0.0
    %1452 = vmatpush.msra.mxu0 0.0
    %1453 = vmatpush.msra.mxu0 %v69
    %1454 = vmatpush.msra.mxu0 %v68
    %1455 = vmatpush.msra.mxu0 %v67
    %1456 = vmatpush.msra.mxu0 %v66
    %1457 = vmatmul.f32.gmra.mxu0 %v1227
    %v1458 = vpop.f32.mrf.mxu0
    %v1459 = vadd.f32 0.0, %v1458
    %1460 = vdwg.mxu0
    %v1462 = vrot.slane %v1459, 4
    %v1463 = vrot.slane %v1459, 5
    %v1466 = vadd.f32 %v59, %v1462
    %v1467 = vadd.f32 %v60, %v1463
    %v1468 = vxor.u32 %v1466, 2147483648
    %v1469 = vxor.u32 %v1467, 2147483648
    %v1470 = vmul.f32 %v1468, 1.442695
    %v1471 = vpow.pop %v1470
    %v1472 = vmul.f32 %v1469, 1.442695
    %v1473 = vpow.pop %v1472
    %v1474 = vadd.f32 %v1471, 1.0
    %v1475 = vadd.f32 %v1473, 1.0
    %v1476 = vrcp.pop %v1474
    %v1477 = vmul.f32 %v1474, %v1476
    %v1478 = vsub.f32 1.0, %v1477
    %v1479 = vmul.f32 %v1476, %v1478
    %v1480 = vadd.f32 %v1476, %v1479
    %vm1481 = vweird.f32 %v1474
    %vm1482 = vweird.f32 %v1476
    %vm1483 = vmor %vm1481, %vm1482
    %v1484 = vsel %vm1483, %v1476, %v1480
    %v1485 = vand.u32 2147483647, %v1474
    %vm1486 = vcmp.eq.f32.partialorder %v1485, 8.507059e+37
    %v1487 = vand.u32 %v1474, 2147483648
    %v1488 = vor.u32 1.1754944e-38, %v1487
    %v1489 = vsel %vm1486, %v1488, %v1484
    %v1490 = vmul.f32 1.0, %v1489
    %v1491 = vrcp.pop %v1475
    %v1492 = vmul.f32 %v1475, %v1491
    %v1493 = vsub.f32 1.0, %v1492
    %v1494 = vmul.f32 %v1491, %v1493
    %v1495 = vadd.f32 %v1491, %v1494
    %vm1496 = vweird.f32 %v1475
    %vm1497 = vweird.f32 %v1491
    %vm1498 = vmor %vm1496, %vm1497
    %v1499 = vsel %vm1498, %v1491, %v1495
    %v1500 = vand.u32 2147483647, %v1475
    %vm1501 = vcmp.eq.f32.partialorder %v1500, 8.507059e+37
    %v1502 = vand.u32 %v1475, 2147483648
    %v1503 = vor.u32 1.1754944e-38, %v1502
    %v1504 = vsel %vm1501, %v1503, %v1499
    %v1505 = vmul.f32 1.0, %v1504
    %v1506 = vadd.f32 %v1459, %v161
    %v1508 = vrot.slane %v1506, 4
    %v1509 = vrot.slane %v1506, 5
    %1510 = vrot.lane.b32.xlu0 %v1508, 64
    %v1511 = vpop.permute.xlu0 %1510
    %1512 = vrot.lane.b32.xlu0 %v1509, 64
    %v1513 = vpop.permute.xlu0 %1512
    %v1516 = vmul.f32 %v1490, %v1511
    %v1517 = vmul.f32 %v1505, %v1513
    %1520 = vrot.lane.b32.xlu0 %v1516, 64
    %v1521 = vpop.permute.xlu0 %1520
    %1522 = vrot.lane.b32.xlu0 %v1517, 64
    %v1523 = vpop.permute.xlu0 %1522
    %v1526 = vadd.f32 %v59, %v1521
    %v1527 = vadd.f32 %v60, %v1523
    %v1528 = vtanh.pop %v1526
    %v1529 = vtanh.pop %v1527
    %v1530 = vsub.f32 1.0, %v1490
    %v1531 = vsub.f32 1.0, %v1505
    %1534 = vrot.lane.b32.xlu0 %v1528, 96
    %v1535 = vpop.permute.xlu0 %1534
    %1536 = vrot.lane.b32.xlu0 %v1529, 96
    %v1537 = vpop.permute.xlu0 %1536
    %v1540 = vmul.f32 %v1530, %v1535
    %v1541 = vmul.f32 %v1531, %v1537
    %v1542 = vrot.slane %v1218, 7
    %v1543 = vrot.slane %v1219, 7
    %v1546 = vmul.f32 %v1490, %v1542
    %v1547 = vmul.f32 %v1505, %v1543
    %v1548 = vadd.f32 %v1540, %v1546
    %v1549 = vadd.f32 %v1541, %v1547
    %v1552 = vrot.slane %v1548, 4
    %v1553 = vrot.slane %v1549, 3
    %v1554 = vsel %vm212, %v1553, %v1552
    %1555 = vrot.lane.b32.xlu0 %v1554, 96
    %v1556 = vpop.permute.xlu0 %1555
    %v1557 = vsel %vm92, %v1556, 0
    %1559 = vmatpush.msra.mxu0 0.0
    %1560 = vmatpush.msra.mxu0 0.0
    %1561 = vmatpush.msra.mxu0 0.0
    %1562 = vmatpush.msra.mxu0 0.0
    %1563 = vmatpush.msra.mxu0 0.0
    %1564 = vmatpush.msra.mxu0 0.0
    %1565 = vmatpush.msra.mxu0 0.0
    %1566 = vmatpush.msra.mxu0 0.0
    %1567 = vmatpush.msra.mxu0 0.0
    %1568 = vmatpush.msra.mxu0 0.0
    %1569 = vmatpush.msra.mxu0 0.0
    %1570 = vmatpush.msra.mxu0 0.0
    %1571 = vmatpush.msra.mxu0 %v73
    %1572 = vmatpush.msra.mxu0 %v72
    %1573 = vmatpush.msra.mxu0 %v71
    %1574 = vmatpush.msra.mxu0 %v70
    %1575 = vmatmul.f32.gmra.mxu0 %v1557
    %v1576 = vpop.f32.mrf.mxu0
    %v1577 = vadd.f32 0.0, %v1576
    %1578 = vdwg.mxu0
    %v1580 = vrot.slane %v1577, 1
    %v1581 = vsel %vm240, %v1577, 0
    %1583 = vmatpush.xpose.msra.mxu0 0.0
    %1584 = vmatpush.xpose.msra.mxu0 0.0
    %1585 = vmatpush.xpose.msra.mxu0 0.0
    %1586 = vmatpush.xpose.msra.mxu0 0.0
    %1587 = vmatpush.xpose.msra.mxu0 0.0
    %1588 = vmatpush.xpose.msra.mxu0 0.0
    %1589 = vmatpush.xpose.msra.mxu0 0.0
    %1590 = vmatpush.xpose.msra.mxu0 0.0
    %1591 = vmatpush.xpose.msra.mxu0 0.0
    %1592 = vmatpush.xpose.msra.mxu0 0.0
    %1593 = vmatpush.xpose.msra.mxu0 0.0
    %1594 = vmatpush.xpose.msra.mxu0 0.0
    %1595 = vmatpush.xpose.msra.mxu0 0.0
    %1596 = vmatpush.xpose.msra.mxu0 0.0
    %1597 = vmatpush.xpose.msra.mxu0 %v247
    %1598 = vmatpush.xpose.msra.mxu0 %v244
    %1599 = vmatmul.f32.gmra.mxu0 %v1581
    %v1600 = vpop.f32.mrf.mxu0
    %v1601 = vadd.f32 0.0, %v1600
    %1602 = vdwg.mxu0
    %v1603 = vsel %vm240, %v1580, 0
    %1605 = vmatpush.xpose.msra.mxu0 0.0
    %1606 = vmatpush.xpose.msra.mxu0 0.0
    %1607 = vmatpush.xpose.msra.mxu0 0.0
    %1608 = vmatpush.xpose.msra.mxu0 0.0
    %1609 = vmatpush.xpose.msra.mxu0 0.0
    %1610 = vmatpush.xpose.msra.mxu0 0.0
    %1611 = vmatpush.xpose.msra.mxu0 0.0
    %1612 = vmatpush.xpose.msra.mxu0 0.0
    %1613 = vmatpush.xpose.msra.mxu0 0.0
    %1614 = vmatpush.xpose.msra.mxu0 0.0
    %1615 = vmatpush.xpose.msra.mxu0 0.0
    %1616 = vmatpush.xpose.msra.mxu0 0.0
    %1617 = vmatpush.xpose.msra.mxu0 0.0
    %1618 = vmatpush.xpose.msra.mxu0 0.0
    %1619 = vmatpush.xpose.msra.mxu0 %v275
    %1620 = vmatpush.xpose.msra.mxu0 %v272
    %1621 = vmatmul.f32.gmra.mxu0 %v1603
    %v1622 = vpop.f32.mrf.mxu0
    %v1623 = vadd.f32 0.0, %v1622
    %1624 = vdwg.mxu0
    %v1627 = vrot.slane %v1623, 7
    %v1628 = vsel %vm212, %v1627, %v1601
    %v1630 = vsel %vm302, %v1628, -inf
    %1631 = vmax.xlane.f32.xlu0 %v1630
    %v1632 = vpop.xlane.xlu0 %1631
    %v1634 = vrot.slane %v1632, 1
    %v1637 = vsub.f32 %v1601, %v1632
    %v1638 = vsub.f32 %v1623, %v1634
    %v1639 = vmul.f32 %v1637, 1.442695
    %v1640 = vpow.pop %v1639
    %v1641 = vmul.f32 %v1638, 1.442695
    %v1642 = vpow.pop %v1641
    %v1645 = vrot.slane %v1642, 7
    %v1646 = vsel %vm212, %v1645, %v1640
    %v1648 = vsel %vm302, %v1646, 0.0
    %1649 = vadd.xlane.f32.xlu0 %v1648
    %v1650 = vpop.xlane.xlu0 %1649
    %v1651 = vmul.f32 %v1640, %v65
    %v1652 = vmul.f32 %v1642, %v325
    %v1655 = vrot.slane %v1652, 7
    %v1656 = vsel %vm212, %v1655, %v1651
    %v1658 = vsel %vm302, %v1656, 0.0
    %1659 = vadd.xlane.f32.xlu0 %v1658
    %v1660 = vpop.xlane.xlu0 %1659
    %v1661 = vmul.f32 %v1650, 1e-12
    %v1662 = vadd.f32 %v1660, %v1661
    %v1663 = vrcp.pop %v1662
    %v1664 = vmul.f32 %v1662, %v1663
    %v1665 = vsub.f32 2.0, %v1664
    %v1666 = vmul.f32 %v1663, %v1665
    %v1668 = vrot.slane %v1666, 1
    %v1671 = vmul.f32 %v1651, %v1666
    %v1672 = vmul.f32 %v1652, %v1668
    %v1674 = vsel %vm350, %v1671, 0
    %1676 = vmatpush.msra.mxu0 0.0
    %1677 = vmatpush.msra.mxu0 0.0
    %1678 = vmatpush.msra.mxu0 0.0
    %1679 = vmatpush.msra.mxu0 0.0
    %1680 = vmatpush.msra.mxu0 0.0
    %1681 = vmatpush.msra.mxu0 0.0
    %1682 = vmatpush.msra.mxu0 0.0
    %1683 = vmatpush.msra.mxu0 0.0
    %1684 = vmatpush.msra.mxu0 0.0
    %1685 = vmatpush.msra.mxu0 0.0
    %1686 = vmatpush.msra.mxu0 0.0
    %1687 = vmatpush.msra.mxu0 0.0
    %1688 = vmatpush.msra.mxu0 0.0
    %1689 = vmatpush.msra.mxu0 0.0
    %1690 = vmatpush.msra.mxu0 %v355
    %1691 = vmatpush.msra.mxu0 %v61
    %1692 = vmatmul.f32.gmra.mxu0 %v1674
    %v1693 = vpop.f32.mrf.mxu0
    %v1694 = vadd.f32 0.0, %v1693
    %1695 = vdwg.mxu0
    %v1697 = vsel %vm350, %v1672, 0
    %1699 = vmatpush.msra.mxu0 0.0
    %1700 = vmatpush.msra.mxu0 0.0
    %1701 = vmatpush.msra.mxu0 0.0
    %1702 = vmatpush.msra.mxu0 0.0
    %1703 = vmatpush.msra.mxu0 0.0
    %1704 = vmatpush.msra.mxu0 0.0
    %1705 = vmatpush.msra.mxu0 0.0
    %1706 = vmatpush.msra.mxu0 0.0
    %1707 = vmatpush.msra.mxu0 0.0
    %1708 = vmatpush.msra.mxu0 0.0
    %1709 = vmatpush.msra.mxu0 0.0
    %1710 = vmatpush.msra.mxu0 0.0
    %1711 = vmatpush.msra.mxu0 0.0
    %1712 = vmatpush.msra.mxu0 0.0
    %1713 = vmatpush.msra.mxu0 %v380
    %1714 = vmatpush.msra.mxu0 %v63
    %1715 = vmatmul.f32.gmra.mxu0 %v1697
    %v1716 = vpop.f32.mrf.mxu0
    %v1717 = vadd.f32 0.0, %v1716
    %1718 = vdwg.mxu0
    %v1721 = vrot.slane %v1717, 7
    %v1722 = vsel %vm212, %v1721, %v1694
    %v1723 = vsel %vm240, %v1722, 0
    %1725 = vmatpush.msra.mxu0 0.0
    %1726 = vmatpush.msra.mxu0 0.0
    %1727 = vmatpush.msra.mxu0 0.0
    %1728 = vmatpush.msra.mxu0 0.0
    %1729 = vmatpush.msra.mxu0 0.0
    %1730 = vmatpush.msra.mxu0 0.0
    %1731 = vmatpush.msra.mxu0 0.0
    %1732 = vmatpush.msra.mxu0 0.0
    %1733 = vmatpush.msra.mxu0 0.0
    %1734 = vmatpush.msra.mxu0 0.0
    %1735 = vmatpush.msra.mxu0 %v83
    %1736 = vmatpush.msra.mxu0 %v82
    %1737 = vmatpush.msra.mxu0 %v81
    %1738 = vmatpush.msra.mxu0 %v80
    %1739 = vmatpush.msra.mxu0 %v79
    %1740 = vmatpush.msra.mxu0 %v78
    %1741 = vmatmul.f32.gmra.mxu0 %v1723
    %v1742 = vpop.f32.mrf.mxu0
    %v1743 = vadd.f32 0.0, %v1742
    %1744 = vdwg.mxu0
    %1745 = vmatpush.msra.mxu0 0.0
    %1746 = vmatpush.msra.mxu0 0.0
    %1747 = vmatpush.msra.mxu0 0.0
    %1748 = vmatpush.msra.mxu0 0.0
    %1749 = vmatpush.msra.mxu0 0.0
    %1750 = vmatpush.msra.mxu0 0.0
    %1751 = vmatpush.msra.mxu0 0.0
    %1752 = vmatpush.msra.mxu0 0.0
    %1753 = vmatpush.msra.mxu0 0.0
    %1754 = vmatpush.msra.mxu0 0.0
    %1755 = vmatpush.msra.mxu0 0.0
    %1756 = vmatpush.msra.mxu0 0.0
    %1757 = vmatpush.msra.mxu0 %v77
    %1758 = vmatpush.msra.mxu0 %v76
    %1759 = vmatpush.msra.mxu0 %v75
    %1760 = vmatpush.msra.mxu0 %v74
    %1761 = vmatmul.f32.gmra.mxu0 %v1557
    %v1762 = vpop.f32.mrf.mxu0
    %v1763 = vadd.f32 %v1743, %v1762
    %1764 = vdwg.mxu0
    %v1765 = vadd.f32 %v1763, %v89
    %v1767 = vrot.slane %v1765, 1
    %1769 = vst.msk [vmem:[#allocation6 + $0x4] sm:$0x1] %vm452, %v1765
    %1770 = vst.msk [vmem:[#allocation6 + $0xc] sm:$0x1] %vm452, %v1767
    %1771 = vmatpush.msra.mxu0 0.0
    %1772 = vmatpush.msra.mxu0 0.0
    %1773 = vmatpush.msra.mxu0 0.0
    %1774 = vmatpush.msra.mxu0 0.0
    %1775 = vmatpush.msra.mxu0 0.0
    %1776 = vmatpush.msra.mxu0 0.0
    %1777 = vmatpush.msra.mxu0 0.0
    %1778 = vmatpush.msra.mxu0 0.0
    %1779 = vmatpush.msra.mxu0 0.0
    %1780 = vmatpush.msra.mxu0 0.0
    %1781 = vmatpush.msra.mxu0 0.0
    %1782 = vmatpush.msra.mxu0 0.0
    %1783 = vmatpush.msra.mxu0 %v69
    %1784 = vmatpush.msra.mxu0 %v68
    %1785 = vmatpush.msra.mxu0 %v67
    %1786 = vmatpush.msra.mxu0 %v66
    %1787 = vmatmul.f32.gmra.mxu0 %v1557
    %v1788 = vpop.f32.mrf.mxu0
    %v1789 = vadd.f32 0.0, %v1788
    %1790 = vdwg.mxu0
    %v1792 = vrot.slane %v1789, 3
    %v1793 = vrot.slane %v1789, 4
    %v1796 = vadd.f32 %v59, %v1792
    %v1797 = vadd.f32 %v60, %v1793
    %v1798 = vxor.u32 %v1796, 2147483648
    %v1799 = vxor.u32 %v1797, 2147483648
    %v1800 = vmul.f32 %v1798, 1.442695
    %v1801 = vpow.pop %v1800
    %v1802 = vmul.f32 %v1799, 1.442695
    %v1803 = vpow.pop %v1802
    %v1804 = vadd.f32 %v1801, 1.0
    %v1805 = vadd.f32 %v1803, 1.0
    %v1806 = vrcp.pop %v1804
    %v1807 = vmul.f32 %v1804, %v1806
    %v1808 = vsub.f32 1.0, %v1807
    %v1809 = vmul.f32 %v1806, %v1808
    %v1810 = vadd.f32 %v1806, %v1809
    %vm1811 = vweird.f32 %v1804
    %vm1812 = vweird.f32 %v1806
    %vm1813 = vmor %vm1811, %vm1812
    %v1814 = vsel %vm1813, %v1806, %v1810
    %v1815 = vand.u32 2147483647, %v1804
    %vm1816 = vcmp.eq.f32.partialorder %v1815, 8.507059e+37
    %v1817 = vand.u32 %v1804, 2147483648
    %v1818 = vor.u32 1.1754944e-38, %v1817
    %v1819 = vsel %vm1816, %v1818, %v1814
    %v1820 = vmul.f32 1.0, %v1819
    %v1821 = vrcp.pop %v1805
    %v1822 = vmul.f32 %v1805, %v1821
    %v1823 = vsub.f32 1.0, %v1822
    %v1824 = vmul.f32 %v1821, %v1823
    %v1825 = vadd.f32 %v1821, %v1824
    %vm1826 = vweird.f32 %v1805
    %vm1827 = vweird.f32 %v1821
    %vm1828 = vmor %vm1826, %vm1827
    %v1829 = vsel %vm1828, %v1821, %v1825
    %v1830 = vand.u32 2147483647, %v1805
    %vm1831 = vcmp.eq.f32.partialorder %v1830, 8.507059e+37
    %v1832 = vand.u32 %v1805, 2147483648
    %v1833 = vor.u32 1.1754944e-38, %v1832
    %v1834 = vsel %vm1831, %v1833, %v1829
    %v1835 = vmul.f32 1.0, %v1834
    %v1836 = vadd.f32 %v1789, %v161
    %v1838 = vrot.slane %v1836, 3
    %v1839 = vrot.slane %v1836, 4
    %1840 = vrot.lane.b32.xlu0 %v1838, 64
    %v1841 = vpop.permute.xlu0 %1840
    %1842 = vrot.lane.b32.xlu0 %v1839, 64
    %v1843 = vpop.permute.xlu0 %1842
    %v1846 = vmul.f32 %v1820, %v1841
    %v1847 = vmul.f32 %v1835, %v1843
    %1850 = vrot.lane.b32.xlu0 %v1846, 64
    %v1851 = vpop.permute.xlu0 %1850
    %1852 = vrot.lane.b32.xlu0 %v1847, 64
    %v1853 = vpop.permute.xlu0 %1852
    %v1856 = vadd.f32 %v59, %v1851
    %v1857 = vadd.f32 %v60, %v1853
    %v1858 = vtanh.pop %v1856
    %v1859 = vtanh.pop %v1857
    %v1860 = vsub.f32 1.0, %v1820
    %v1861 = vsub.f32 1.0, %v1835
    %1864 = vrot.lane.b32.xlu0 %v1858, 96
    %v1865 = vpop.permute.xlu0 %1864
    %1866 = vrot.lane.b32.xlu0 %v1859, 96
    %v1867 = vpop.permute.xlu0 %1866
    %v1870 = vmul.f32 %v1860, %v1865
    %v1871 = vmul.f32 %v1861, %v1867
    %v1872 = vrot.slane %v1548, 7
    %v1873 = vrot.slane %v1549, 7
    %v1876 = vmul.f32 %v1820, %v1872
    %v1877 = vmul.f32 %v1835, %v1873
    %v1878 = vadd.f32 %v1870, %v1876
    %v1879 = vadd.f32 %v1871, %v1877
    %v1882 = vrot.slane %v1878, 5
    %v1883 = vrot.slane %v1879, 4
    %v1884 = vsel %vm212, %v1883, %v1882
    %1885 = vrot.lane.b32.xlu0 %v1884, 96
    %v1886 = vpop.permute.xlu0 %1885
    %v1887 = vsel %vm92, %v1886, 0
    %1889 = vmatpush.msra.mxu0 0.0
    %1890 = vmatpush.msra.mxu0 0.0
    %1891 = vmatpush.msra.mxu0 0.0
    %1892 = vmatpush.msra.mxu0 0.0
    %1893 = vmatpush.msra.mxu0 0.0
    %1894 = vmatpush.msra.mxu0 0.0
    %1895 = vmatpush.msra.mxu0 0.0
    %1896 = vmatpush.msra.mxu0 0.0
    %1897 = vmatpush.msra.mxu0 0.0
    %1898 = vmatpush.msra.mxu0 0.0
    %1899 = vmatpush.msra.mxu0 0.0
    %1900 = vmatpush.msra.mxu0 0.0
    %1901 = vmatpush.msra.mxu0 %v73
    %1902 = vmatpush.msra.mxu0 %v72
    %1903 = vmatpush.msra.mxu0 %v71
    %1904 = vmatpush.msra.mxu0 %v70
    %1905 = vmatmul.f32.gmra.mxu0 %v1887
    %v1906 = vpop.f32.mrf.mxu0
    %v1907 = vadd.f32 0.0, %v1906
    %1908 = vdwg.mxu0
    %v1910 = vrot.slane %v1907, 1
    %v1911 = vsel %vm240, %v1907, 0
    %1913 = vmatpush.xpose.msra.mxu0 0.0
    %1914 = vmatpush.xpose.msra.mxu0 0.0
    %1915 = vmatpush.xpose.msra.mxu0 0.0
    %1916 = vmatpush.xpose.msra.mxu0 0.0
    %1917 = vmatpush.xpose.msra.mxu0 0.0
    %1918 = vmatpush.xpose.msra.mxu0 0.0
    %1919 = vmatpush.xpose.msra.mxu0 0.0
    %1920 = vmatpush.xpose.msra.mxu0 0.0
    %1921 = vmatpush.xpose.msra.mxu0 0.0
    %1922 = vmatpush.xpose.msra.mxu0 0.0
    %1923 = vmatpush.xpose.msra.mxu0 0.0
    %1924 = vmatpush.xpose.msra.mxu0 0.0
    %1925 = vmatpush.xpose.msra.mxu0 0.0
    %1926 = vmatpush.xpose.msra.mxu0 0.0
    %1927 = vmatpush.xpose.msra.mxu0 %v247
    %1928 = vmatpush.xpose.msra.mxu0 %v244
    %1929 = vmatmul.f32.gmra.mxu0 %v1911
    %v1930 = vpop.f32.mrf.mxu0
    %v1931 = vadd.f32 0.0, %v1930
    %1932 = vdwg.mxu0
    %v1933 = vsel %vm240, %v1910, 0
    %1935 = vmatpush.xpose.msra.mxu0 0.0
    %1936 = vmatpush.xpose.msra.mxu0 0.0
    %1937 = vmatpush.xpose.msra.mxu0 0.0
    %1938 = vmatpush.xpose.msra.mxu0 0.0
    %1939 = vmatpush.xpose.msra.mxu0 0.0
    %1940 = vmatpush.xpose.msra.mxu0 0.0
    %1941 = vmatpush.xpose.msra.mxu0 0.0
    %1942 = vmatpush.xpose.msra.mxu0 0.0
    %1943 = vmatpush.xpose.msra.mxu0 0.0
    %1944 = vmatpush.xpose.msra.mxu0 0.0
    %1945 = vmatpush.xpose.msra.mxu0 0.0
    %1946 = vmatpush.xpose.msra.mxu0 0.0
    %1947 = vmatpush.xpose.msra.mxu0 0.0
    %1948 = vmatpush.xpose.msra.mxu0 0.0
    %1949 = vmatpush.xpose.msra.mxu0 %v275
    %1950 = vmatpush.xpose.msra.mxu0 %v272
    %1951 = vmatmul.f32.gmra.mxu0 %v1933
    %v1952 = vpop.f32.mrf.mxu0
    %v1953 = vadd.f32 0.0, %v1952
    %1954 = vdwg.mxu0
    %v1957 = vrot.slane %v1953, 7
    %v1958 = vsel %vm212, %v1957, %v1931
    %v1960 = vsel %vm302, %v1958, -inf
    %1961 = vmax.xlane.f32.xlu0 %v1960
    %v1962 = vpop.xlane.xlu0 %1961
    %v1964 = vrot.slane %v1962, 1
    %v1967 = vsub.f32 %v1931, %v1962
    %v1968 = vsub.f32 %v1953, %v1964
    %v1969 = vmul.f32 %v1967, 1.442695
    %v1970 = vpow.pop %v1969
    %v1971 = vmul.f32 %v1968, 1.442695
    %v1972 = vpow.pop %v1971
    %v1975 = vrot.slane %v1972, 7
    %v1976 = vsel %vm212, %v1975, %v1970
    %v1978 = vsel %vm302, %v1976, 0.0
    %1979 = vadd.xlane.f32.xlu0 %v1978
    %v1980 = vpop.xlane.xlu0 %1979
    %v1981 = vmul.f32 %v1970, %v65
    %v1982 = vmul.f32 %v1972, %v325
    %v1985 = vrot.slane %v1982, 7
    %v1986 = vsel %vm212, %v1985, %v1981
    %v1988 = vsel %vm302, %v1986, 0.0
    %1989 = vadd.xlane.f32.xlu0 %v1988
    %v1990 = vpop.xlane.xlu0 %1989
    %v1991 = vmul.f32 %v1980, 1e-12
    %v1992 = vadd.f32 %v1990, %v1991
    %v1993 = vrcp.pop %v1992
    %v1994 = vmul.f32 %v1992, %v1993
    %v1995 = vsub.f32 2.0, %v1994
    %v1996 = vmul.f32 %v1993, %v1995
    %v1998 = vrot.slane %v1996, 1
    %v2001 = vmul.f32 %v1981, %v1996
    %v2002 = vmul.f32 %v1982, %v1998
    %v2004 = vsel %vm350, %v2001, 0
    %2006 = vmatpush.msra.mxu0 0.0
    %2007 = vmatpush.msra.mxu0 0.0
    %2008 = vmatpush.msra.mxu0 0.0
    %2009 = vmatpush.msra.mxu0 0.0
    %2010 = vmatpush.msra.mxu0 0.0
    %2011 = vmatpush.msra.mxu0 0.0
    %2012 = vmatpush.msra.mxu0 0.0
    %2013 = vmatpush.msra.mxu0 0.0
    %2014 = vmatpush.msra.mxu0 0.0
    %2015 = vmatpush.msra.mxu0 0.0
    %2016 = vmatpush.msra.mxu0 0.0
    %2017 = vmatpush.msra.mxu0 0.0
    %2018 = vmatpush.msra.mxu0 0.0
    %2019 = vmatpush.msra.mxu0 0.0
    %2020 = vmatpush.msra.mxu0 %v355
    %2021 = vmatpush.msra.mxu0 %v61
    %2022 = vmatmul.f32.gmra.mxu0 %v2004
    %v2023 = vpop.f32.mrf.mxu0
    %v2024 = vadd.f32 0.0, %v2023
    %2025 = vdwg.mxu0
    %v2027 = vsel %vm350, %v2002, 0
    %2029 = vmatpush.msra.mxu0 0.0
    %2030 = vmatpush.msra.mxu0 0.0
    %2031 = vmatpush.msra.mxu0 0.0
    %2032 = vmatpush.msra.mxu0 0.0
    %2033 = vmatpush.msra.mxu0 0.0
    %2034 = vmatpush.msra.mxu0 0.0
    %2035 = vmatpush.msra.mxu0 0.0
    %2036 = vmatpush.msra.mxu0 0.0
    %2037 = vmatpush.msra.mxu0 0.0
    %2038 = vmatpush.msra.mxu0 0.0
    %2039 = vmatpush.msra.mxu0 0.0
    %2040 = vmatpush.msra.mxu0 0.0
    %2041 = vmatpush.msra.mxu0 0.0
    %2042 = vmatpush.msra.mxu0 0.0
    %2043 = vmatpush.msra.mxu0 %v380
    %2044 = vmatpush.msra.mxu0 %v63
    %2045 = vmatmul.f32.gmra.mxu0 %v2027
    %v2046 = vpop.f32.mrf.mxu0
    %v2047 = vadd.f32 0.0, %v2046
    %2048 = vdwg.mxu0
    %v2051 = vrot.slane %v2047, 7
    %v2052 = vsel %vm212, %v2051, %v2024
    %v2053 = vsel %vm240, %v2052, 0
    %2055 = vmatpush.msra.mxu0 0.0
    %2056 = vmatpush.msra.mxu0 0.0
    %2057 = vmatpush.msra.mxu0 0.0
    %2058 = vmatpush.msra.mxu0 0.0
    %2059 = vmatpush.msra.mxu0 0.0
    %2060 = vmatpush.msra.mxu0 0.0
    %2061 = vmatpush.msra.mxu0 0.0
    %2062 = vmatpush.msra.mxu0 0.0
    %2063 = vmatpush.msra.mxu0 0.0
    %2064 = vmatpush.msra.mxu0 0.0
    %2065 = vmatpush.msra.mxu0 %v83
    %2066 = vmatpush.msra.mxu0 %v82
    %2067 = vmatpush.msra.mxu0 %v81
    %2068 = vmatpush.msra.mxu0 %v80
    %2069 = vmatpush.msra.mxu0 %v79
    %2070 = vmatpush.msra.mxu0 %v78
    %2071 = vmatmul.f32.gmra.mxu0 %v2053
    %v2072 = vpop.f32.mrf.mxu0
    %v2073 = vadd.f32 0.0, %v2072
    %2074 = vdwg.mxu0
    %2075 = vmatpush.msra.mxu0 0.0
    %2076 = vmatpush.msra.mxu0 0.0
    %2077 = vmatpush.msra.mxu0 0.0
    %2078 = vmatpush.msra.mxu0 0.0
    %2079 = vmatpush.msra.mxu0 0.0
    %2080 = vmatpush.msra.mxu0 0.0
    %2081 = vmatpush.msra.mxu0 0.0
    %2082 = vmatpush.msra.mxu0 0.0
    %2083 = vmatpush.msra.mxu0 0.0
    %2084 = vmatpush.msra.mxu0 0.0
    %2085 = vmatpush.msra.mxu0 0.0
    %2086 = vmatpush.msra.mxu0 0.0
    %2087 = vmatpush.msra.mxu0 %v77
    %2088 = vmatpush.msra.mxu0 %v76
    %2089 = vmatpush.msra.mxu0 %v75
    %2090 = vmatpush.msra.mxu0 %v74
    %2091 = vmatmul.f32.gmra.mxu0 %v1887
    %v2092 = vpop.f32.mrf.mxu0
    %v2093 = vadd.f32 %v2073, %v2092
    %2094 = vdwg.mxu0
    %v2095 = vadd.f32 %v2093, %v89
    %v2097 = vrot.slane %v2095, 1
    %2099 = vst.msk [vmem:[#allocation6 + $0x5] sm:$0x1] %vm452, %v2095
    %2100 = vst.msk [vmem:[#allocation6 + $0xd] sm:$0x1] %vm452, %v2097
    %2101 = vmatpush.msra.mxu0 0.0
    %2102 = vmatpush.msra.mxu0 0.0
    %2103 = vmatpush.msra.mxu0 0.0
    %2104 = vmatpush.msra.mxu0 0.0
    %2105 = vmatpush.msra.mxu0 0.0
    %2106 = vmatpush.msra.mxu0 0.0
    %2107 = vmatpush.msra.mxu0 0.0
    %2108 = vmatpush.msra.mxu0 0.0
    %2109 = vmatpush.msra.mxu0 0.0
    %2110 = vmatpush.msra.mxu0 0.0
    %2111 = vmatpush.msra.mxu0 0.0
    %2112 = vmatpush.msra.mxu0 0.0
    %2113 = vmatpush.msra.mxu0 %v69
    %2114 = vmatpush.msra.mxu0 %v68
    %2115 = vmatpush.msra.mxu0 %v67
    %2116 = vmatpush.msra.mxu0 %v66
    %2117 = vmatmul.f32.gmra.mxu0 %v1887
    %v2118 = vpop.f32.mrf.mxu0
    %v2119 = vadd.f32 0.0, %v2118
    %2120 = vdwg.mxu0
    %v2122 = vrot.slane %v2119, 2
    %v2123 = vrot.slane %v2119, 3
    %v2126 = vadd.f32 %v59, %v2122
    %v2127 = vadd.f32 %v60, %v2123
    %v2128 = vxor.u32 %v2126, 2147483648
    %v2129 = vxor.u32 %v2127, 2147483648
    %v2130 = vmul.f32 %v2128, 1.442695
    %v2131 = vpow.pop %v2130
    %v2132 = vmul.f32 %v2129, 1.442695
    %v2133 = vpow.pop %v2132
    %v2134 = vadd.f32 %v2131, 1.0
    %v2135 = vadd.f32 %v2133, 1.0
    %v2136 = vrcp.pop %v2134
    %v2137 = vmul.f32 %v2134, %v2136
    %v2138 = vsub.f32 1.0, %v2137
    %v2139 = vmul.f32 %v2136, %v2138
    %v2140 = vadd.f32 %v2136, %v2139
    %vm2141 = vweird.f32 %v2134
    %vm2142 = vweird.f32 %v2136
    %vm2143 = vmor %vm2141, %vm2142
    %v2144 = vsel %vm2143, %v2136, %v2140
    %v2145 = vand.u32 2147483647, %v2134
    %vm2146 = vcmp.eq.f32.partialorder %v2145, 8.507059e+37
    %v2147 = vand.u32 %v2134, 2147483648
    %v2148 = vor.u32 1.1754944e-38, %v2147
    %v2149 = vsel %vm2146, %v2148, %v2144
    %v2150 = vmul.f32 1.0, %v2149
    %v2151 = vrcp.pop %v2135
    %v2152 = vmul.f32 %v2135, %v2151
    %v2153 = vsub.f32 1.0, %v2152
    %v2154 = vmul.f32 %v2151, %v2153
    %v2155 = vadd.f32 %v2151, %v2154
    %vm2156 = vweird.f32 %v2135
    %vm2157 = vweird.f32 %v2151
    %vm2158 = vmor %vm2156, %vm2157
    %v2159 = vsel %vm2158, %v2151, %v2155
    %v2160 = vand.u32 2147483647, %v2135
    %vm2161 = vcmp.eq.f32.partialorder %v2160, 8.507059e+37
    %v2162 = vand.u32 %v2135, 2147483648
    %v2163 = vor.u32 1.1754944e-38, %v2162
    %v2164 = vsel %vm2161, %v2163, %v2159
    %v2165 = vmul.f32 1.0, %v2164
    %v2166 = vadd.f32 %v2119, %v161
    %v2168 = vrot.slane %v2166, 2
    %v2169 = vrot.slane %v2166, 3
    %2170 = vrot.lane.b32.xlu0 %v2168, 64
    %v2171 = vpop.permute.xlu0 %2170
    %2172 = vrot.lane.b32.xlu0 %v2169, 64
    %v2173 = vpop.permute.xlu0 %2172
    %v2176 = vmul.f32 %v2150, %v2171
    %v2177 = vmul.f32 %v2165, %v2173
    %2180 = vrot.lane.b32.xlu0 %v2176, 64
    %v2181 = vpop.permute.xlu0 %2180
    %2182 = vrot.lane.b32.xlu0 %v2177, 64
    %v2183 = vpop.permute.xlu0 %2182
    %v2186 = vadd.f32 %v59, %v2181
    %v2187 = vadd.f32 %v60, %v2183
    %v2188 = vtanh.pop %v2186
    %v2189 = vtanh.pop %v2187
    %v2190 = vsub.f32 1.0, %v2150
    %v2191 = vsub.f32 1.0, %v2165
    %2194 = vrot.lane.b32.xlu0 %v2188, 96
    %v2195 = vpop.permute.xlu0 %2194
    %2196 = vrot.lane.b32.xlu0 %v2189, 96
    %v2197 = vpop.permute.xlu0 %2196
    %v2200 = vmul.f32 %v2190, %v2195
    %v2201 = vmul.f32 %v2191, %v2197
    %v2202 = vrot.slane %v1878, 7
    %v2203 = vrot.slane %v1879, 7
    %v2206 = vmul.f32 %v2150, %v2202
    %v2207 = vmul.f32 %v2165, %v2203
    %v2208 = vadd.f32 %v2200, %v2206
    %v2209 = vadd.f32 %v2201, %v2207
    %v2212 = vrot.slane %v2208, 6
    %v2213 = vrot.slane %v2209, 5
    %v2214 = vsel %vm212, %v2213, %v2212
    %2215 = vrot.lane.b32.xlu0 %v2214, 96
    %v2216 = vpop.permute.xlu0 %2215
    %v2217 = vsel %vm92, %v2216, 0
    %2219 = vmatpush.msra.mxu0 0.0
    %2220 = vmatpush.msra.mxu0 0.0
    %2221 = vmatpush.msra.mxu0 0.0
    %2222 = vmatpush.msra.mxu0 0.0
    %2223 = vmatpush.msra.mxu0 0.0
    %2224 = vmatpush.msra.mxu0 0.0
    %2225 = vmatpush.msra.mxu0 0.0
    %2226 = vmatpush.msra.mxu0 0.0
    %2227 = vmatpush.msra.mxu0 0.0
    %2228 = vmatpush.msra.mxu0 0.0
    %2229 = vmatpush.msra.mxu0 0.0
    %2230 = vmatpush.msra.mxu0 0.0
    %2231 = vmatpush.msra.mxu0 %v73
    %2232 = vmatpush.msra.mxu0 %v72
    %2233 = vmatpush.msra.mxu0 %v71
    %2234 = vmatpush.msra.mxu0 %v70
    %2235 = vmatmul.f32.gmra.mxu0 %v2217
    %v2236 = vpop.f32.mrf.mxu0
    %v2237 = vadd.f32 0.0, %v2236
    %2238 = vdwg.mxu0
    %v2240 = vrot.slane %v2237, 1
    %v2241 = vsel %vm240, %v2237, 0
    %2243 = vmatpush.xpose.msra.mxu0 0.0
    %2244 = vmatpush.xpose.msra.mxu0 0.0
    %2245 = vmatpush.xpose.msra.mxu0 0.0
    %2246 = vmatpush.xpose.msra.mxu0 0.0
    %2247 = vmatpush.xpose.msra.mxu0 0.0
    %2248 = vmatpush.xpose.msra.mxu0 0.0
    %2249 = vmatpush.xpose.msra.mxu0 0.0
    %2250 = vmatpush.xpose.msra.mxu0 0.0
    %2251 = vmatpush.xpose.msra.mxu0 0.0
    %2252 = vmatpush.xpose.msra.mxu0 0.0
    %2253 = vmatpush.xpose.msra.mxu0 0.0
    %2254 = vmatpush.xpose.msra.mxu0 0.0
    %2255 = vmatpush.xpose.msra.mxu0 0.0
    %2256 = vmatpush.xpose.msra.mxu0 0.0
    %2257 = vmatpush.xpose.msra.mxu0 %v247
    %2258 = vmatpush.xpose.msra.mxu0 %v244
    %2259 = vmatmul.f32.gmra.mxu0 %v2241
    %v2260 = vpop.f32.mrf.mxu0
    %v2261 = vadd.f32 0.0, %v2260
    %2262 = vdwg.mxu0
    %v2263 = vsel %vm240, %v2240, 0
    %2265 = vmatpush.xpose.msra.mxu0 0.0
    %2266 = vmatpush.xpose.msra.mxu0 0.0
    %2267 = vmatpush.xpose.msra.mxu0 0.0
    %2268 = vmatpush.xpose.msra.mxu0 0.0
    %2269 = vmatpush.xpose.msra.mxu0 0.0
    %2270 = vmatpush.xpose.msra.mxu0 0.0
    %2271 = vmatpush.xpose.msra.mxu0 0.0
    %2272 = vmatpush.xpose.msra.mxu0 0.0
    %2273 = vmatpush.xpose.msra.mxu0 0.0
    %2274 = vmatpush.xpose.msra.mxu0 0.0
    %2275 = vmatpush.xpose.msra.mxu0 0.0
    %2276 = vmatpush.xpose.msra.mxu0 0.0
    %2277 = vmatpush.xpose.msra.mxu0 0.0
    %2278 = vmatpush.xpose.msra.mxu0 0.0
    %2279 = vmatpush.xpose.msra.mxu0 %v275
    %2280 = vmatpush.xpose.msra.mxu0 %v272
    %2281 = vmatmul.f32.gmra.mxu0 %v2263
    %v2282 = vpop.f32.mrf.mxu0
    %v2283 = vadd.f32 0.0, %v2282
    %2284 = vdwg.mxu0
    %v2287 = vrot.slane %v2283, 7
    %v2288 = vsel %vm212, %v2287, %v2261
    %v2290 = vsel %vm302, %v2288, -inf
    %2291 = vmax.xlane.f32.xlu0 %v2290
    %v2292 = vpop.xlane.xlu0 %2291
    %v2294 = vrot.slane %v2292, 1
    %v2297 = vsub.f32 %v2261, %v2292
    %v2298 = vsub.f32 %v2283, %v2294
    %v2299 = vmul.f32 %v2297, 1.442695
    %v2300 = vpow.pop %v2299
    %v2301 = vmul.f32 %v2298, 1.442695
    %v2302 = vpow.pop %v2301
    %v2305 = vrot.slane %v2302, 7
    %v2306 = vsel %vm212, %v2305, %v2300
    %v2308 = vsel %vm302, %v2306, 0.0
    %2309 = vadd.xlane.f32.xlu0 %v2308
    %v2310 = vpop.xlane.xlu0 %2309
    %v2311 = vmul.f32 %v2300, %v65
    %v2312 = vmul.f32 %v2302, %v325
    %v2315 = vrot.slane %v2312, 7
    %v2316 = vsel %vm212, %v2315, %v2311
    %v2318 = vsel %vm302, %v2316, 0.0
    %2319 = vadd.xlane.f32.xlu0 %v2318
    %v2320 = vpop.xlane.xlu0 %2319
    %v2321 = vmul.f32 %v2310, 1e-12
    %v2322 = vadd.f32 %v2320, %v2321
    %v2323 = vrcp.pop %v2322
    %v2324 = vmul.f32 %v2322, %v2323
    %v2325 = vsub.f32 2.0, %v2324
    %v2326 = vmul.f32 %v2323, %v2325
    %v2328 = vrot.slane %v2326, 1
    %v2331 = vmul.f32 %v2311, %v2326
    %v2332 = vmul.f32 %v2312, %v2328
    %v2334 = vsel %vm350, %v2331, 0
    %2336 = vmatpush.msra.mxu0 0.0
    %2337 = vmatpush.msra.mxu0 0.0
    %2338 = vmatpush.msra.mxu0 0.0
    %2339 = vmatpush.msra.mxu0 0.0
    %2340 = vmatpush.msra.mxu0 0.0
    %2341 = vmatpush.msra.mxu0 0.0
    %2342 = vmatpush.msra.mxu0 0.0
    %2343 = vmatpush.msra.mxu0 0.0
    %2344 = vmatpush.msra.mxu0 0.0
    %2345 = vmatpush.msra.mxu0 0.0
    %2346 = vmatpush.msra.mxu0 0.0
    %2347 = vmatpush.msra.mxu0 0.0
    %2348 = vmatpush.msra.mxu0 0.0
    %2349 = vmatpush.msra.mxu0 0.0
    %2350 = vmatpush.msra.mxu0 %v355
    %2351 = vmatpush.msra.mxu0 %v61
    %2352 = vmatmul.f32.gmra.mxu0 %v2334
    %v2353 = vpop.f32.mrf.mxu0
    %v2354 = vadd.f32 0.0, %v2353
    %2355 = vdwg.mxu0
    %v2357 = vsel %vm350, %v2332, 0
    %2359 = vmatpush.msra.mxu0 0.0
    %2360 = vmatpush.msra.mxu0 0.0
    %2361 = vmatpush.msra.mxu0 0.0
    %2362 = vmatpush.msra.mxu0 0.0
    %2363 = vmatpush.msra.mxu0 0.0
    %2364 = vmatpush.msra.mxu0 0.0
    %2365 = vmatpush.msra.mxu0 0.0
    %2366 = vmatpush.msra.mxu0 0.0
    %2367 = vmatpush.msra.mxu0 0.0
    %2368 = vmatpush.msra.mxu0 0.0
    %2369 = vmatpush.msra.mxu0 0.0
    %2370 = vmatpush.msra.mxu0 0.0
    %2371 = vmatpush.msra.mxu0 0.0
    %2372 = vmatpush.msra.mxu0 0.0
    %2373 = vmatpush.msra.mxu0 %v380
    %2374 = vmatpush.msra.mxu0 %v63
    %2375 = vmatmul.f32.gmra.mxu0 %v2357
    %v2376 = vpop.f32.mrf.mxu0
    %v2377 = vadd.f32 0.0, %v2376
    %2378 = vdwg.mxu0
    %v2381 = vrot.slane %v2377, 7
    %v2382 = vsel %vm212, %v2381, %v2354
    %v2383 = vsel %vm240, %v2382, 0
    %2385 = vmatpush.msra.mxu0 0.0
    %2386 = vmatpush.msra.mxu0 0.0
    %2387 = vmatpush.msra.mxu0 0.0
    %2388 = vmatpush.msra.mxu0 0.0
    %2389 = vmatpush.msra.mxu0 0.0
    %2390 = vmatpush.msra.mxu0 0.0
    %2391 = vmatpush.msra.mxu0 0.0
    %2392 = vmatpush.msra.mxu0 0.0
    %2393 = vmatpush.msra.mxu0 0.0
    %2394 = vmatpush.msra.mxu0 0.0
    %2395 = vmatpush.msra.mxu0 %v83
    %2396 = vmatpush.msra.mxu0 %v82
    %2397 = vmatpush.msra.mxu0 %v81
    %2398 = vmatpush.msra.mxu0 %v80
    %2399 = vmatpush.msra.mxu0 %v79
    %2400 = vmatpush.msra.mxu0 %v78
    %2401 = vmatmul.f32.gmra.mxu0 %v2383
    %v2402 = vpop.f32.mrf.mxu0
    %v2403 = vadd.f32 0.0, %v2402
    %2404 = vdwg.mxu0
    %2405 = vmatpush.msra.mxu0 0.0
    %2406 = vmatpush.msra.mxu0 0.0
    %2407 = vmatpush.msra.mxu0 0.0
    %2408 = vmatpush.msra.mxu0 0.0
    %2409 = vmatpush.msra.mxu0 0.0
    %2410 = vmatpush.msra.mxu0 0.0
    %2411 = vmatpush.msra.mxu0 0.0
    %2412 = vmatpush.msra.mxu0 0.0
    %2413 = vmatpush.msra.mxu0 0.0
    %2414 = vmatpush.msra.mxu0 0.0
    %2415 = vmatpush.msra.mxu0 0.0
    %2416 = vmatpush.msra.mxu0 0.0
    %2417 = vmatpush.msra.mxu0 %v77
    %2418 = vmatpush.msra.mxu0 %v76
    %2419 = vmatpush.msra.mxu0 %v75
    %2420 = vmatpush.msra.mxu0 %v74
    %2421 = vmatmul.f32.gmra.mxu0 %v2217
    %v2422 = vpop.f32.mrf.mxu0
    %v2423 = vadd.f32 %v2403, %v2422
    %2424 = vdwg.mxu0
    %v2425 = vadd.f32 %v2423, %v89
    %v2427 = vrot.slane %v2425, 1
    %2429 = vst.msk [vmem:[#allocation6 + $0x6] sm:$0x1] %vm452, %v2425
    %2430 = vst.msk [vmem:[#allocation6 + $0xe] sm:$0x1] %vm452, %v2427
    %2431 = vmatpush.msra.mxu0 0.0
    %2432 = vmatpush.msra.mxu0 0.0
    %2433 = vmatpush.msra.mxu0 0.0
    %2434 = vmatpush.msra.mxu0 0.0
    %2435 = vmatpush.msra.mxu0 0.0
    %2436 = vmatpush.msra.mxu0 0.0
    %2437 = vmatpush.msra.mxu0 0.0
    %2438 = vmatpush.msra.mxu0 0.0
    %2439 = vmatpush.msra.mxu0 0.0
    %2440 = vmatpush.msra.mxu0 0.0
    %2441 = vmatpush.msra.mxu0 0.0
    %2442 = vmatpush.msra.mxu0 0.0
    %2443 = vmatpush.msra.mxu0 %v69
    %2444 = vmatpush.msra.mxu0 %v68
    %2445 = vmatpush.msra.mxu0 %v67
    %2446 = vmatpush.msra.mxu0 %v66
    %2447 = vmatmul.f32.gmra.mxu0 %v2217
    %v2448 = vpop.f32.mrf.mxu0
    %v2449 = vadd.f32 0.0, %v2448
    %2450 = vdwg.mxu0
    %v2452 = vrot.slane %v2449, 1
    %v2453 = vrot.slane %v2449, 2
    %v2456 = vadd.f32 %v59, %v2452
    %v2457 = vadd.f32 %v60, %v2453
    %v2458 = vxor.u32 %v2456, 2147483648
    %v2459 = vxor.u32 %v2457, 2147483648
    %v2460 = vmul.f32 %v2458, 1.442695
    %v2461 = vpow.pop %v2460
    %v2462 = vmul.f32 %v2459, 1.442695
    %v2463 = vpow.pop %v2462
    %v2464 = vadd.f32 %v2461, 1.0
    %v2465 = vadd.f32 %v2463, 1.0
    %v2466 = vrcp.pop %v2464
    %v2467 = vmul.f32 %v2464, %v2466
    %v2468 = vsub.f32 1.0, %v2467
    %v2469 = vmul.f32 %v2466, %v2468
    %v2470 = vadd.f32 %v2466, %v2469
    %vm2471 = vweird.f32 %v2464
    %vm2472 = vweird.f32 %v2466
    %vm2473 = vmor %vm2471, %vm2472
    %v2474 = vsel %vm2473, %v2466, %v2470
    %v2475 = vand.u32 2147483647, %v2464
    %vm2476 = vcmp.eq.f32.partialorder %v2475, 8.507059e+37
    %v2477 = vand.u32 %v2464, 2147483648
    %v2478 = vor.u32 1.1754944e-38, %v2477
    %v2479 = vsel %vm2476, %v2478, %v2474
    %v2480 = vmul.f32 1.0, %v2479
    %v2481 = vrcp.pop %v2465
    %v2482 = vmul.f32 %v2465, %v2481
    %v2483 = vsub.f32 1.0, %v2482
    %v2484 = vmul.f32 %v2481, %v2483
    %v2485 = vadd.f32 %v2481, %v2484
    %vm2486 = vweird.f32 %v2465
    %vm2487 = vweird.f32 %v2481
    %vm2488 = vmor %vm2486, %vm2487
    %v2489 = vsel %vm2488, %v2481, %v2485
    %v2490 = vand.u32 2147483647, %v2465
    %vm2491 = vcmp.eq.f32.partialorder %v2490, 8.507059e+37
    %v2492 = vand.u32 %v2465, 2147483648
    %v2493 = vor.u32 1.1754944e-38, %v2492
    %v2494 = vsel %vm2491, %v2493, %v2489
    %v2495 = vmul.f32 1.0, %v2494
    %v2496 = vadd.f32 %v2449, %v161
    %v2498 = vrot.slane %v2496, 1
    %v2499 = vrot.slane %v2496, 2
    %2500 = vrot.lane.b32.xlu0 %v2498, 64
    %v2501 = vpop.permute.xlu0 %2500
    %2502 = vrot.lane.b32.xlu0 %v2499, 64
    %v2503 = vpop.permute.xlu0 %2502
    %v2506 = vmul.f32 %v2480, %v2501
    %v2507 = vmul.f32 %v2495, %v2503
    %2510 = vrot.lane.b32.xlu0 %v2506, 64
    %v2511 = vpop.permute.xlu0 %2510
    %2512 = vrot.lane.b32.xlu0 %v2507, 64
    %v2513 = vpop.permute.xlu0 %2512
    %v2516 = vadd.f32 %v59, %v2511
    %v2517 = vadd.f32 %v60, %v2513
    %v2518 = vtanh.pop %v2516
    %v2519 = vtanh.pop %v2517
    %v2520 = vsub.f32 1.0, %v2480
    %v2521 = vsub.f32 1.0, %v2495
    %2524 = vrot.lane.b32.xlu0 %v2518, 96
    %v2525 = vpop.permute.xlu0 %2524
    %2526 = vrot.lane.b32.xlu0 %v2519, 96
    %v2527 = vpop.permute.xlu0 %2526
    %v2530 = vmul.f32 %v2520, %v2525
    %v2531 = vmul.f32 %v2521, %v2527
    %v2532 = vrot.slane %v2208, 7
    %v2533 = vrot.slane %v2209, 7
    %v2536 = vmul.f32 %v2480, %v2532
    %v2537 = vmul.f32 %v2495, %v2533
    %v2538 = vadd.f32 %v2530, %v2536
    %v2539 = vadd.f32 %v2531, %v2537
    %v2542 = vrot.slane %v2538, 7
    %v2543 = vrot.slane %v2539, 6
    %v2544 = vsel %vm212, %v2543, %v2542
    %2545 = vrot.lane.b32.xlu0 %v2544, 96
    %v2546 = vpop.permute.xlu0 %2545
    %v2547 = vsel %vm92, %v2546, 0
    %2549 = vmatpush.msra.mxu0 0.0
    %2550 = vmatpush.msra.mxu0 0.0
    %2551 = vmatpush.msra.mxu0 0.0
    %2552 = vmatpush.msra.mxu0 0.0
    %2553 = vmatpush.msra.mxu0 0.0
    %2554 = vmatpush.msra.mxu0 0.0
    %2555 = vmatpush.msra.mxu0 0.0
    %2556 = vmatpush.msra.mxu0 0.0
    %2557 = vmatpush.msra.mxu0 0.0
    %2558 = vmatpush.msra.mxu0 0.0
    %2559 = vmatpush.msra.mxu0 0.0
    %2560 = vmatpush.msra.mxu0 0.0
    %2561 = vmatpush.msra.mxu0 %v73
    %2562 = vmatpush.msra.mxu0 %v72
    %2563 = vmatpush.msra.mxu0 %v71
    %2564 = vmatpush.msra.mxu0 %v70
    %2565 = vmatmul.f32.gmra.mxu0 %v2547
    %v2566 = vpop.f32.mrf.mxu0
    %v2567 = vadd.f32 0.0, %v2566
    %2568 = vdwg.mxu0
    %v2570 = vrot.slane %v2567, 1
    %v2571 = vsel %vm240, %v2567, 0
    %2573 = vmatpush.xpose.msra.mxu0 0.0
    %2574 = vmatpush.xpose.msra.mxu0 0.0
    %2575 = vmatpush.xpose.msra.mxu0 0.0
    %2576 = vmatpush.xpose.msra.mxu0 0.0
    %2577 = vmatpush.xpose.msra.mxu0 0.0
    %2578 = vmatpush.xpose.msra.mxu0 0.0
    %2579 = vmatpush.xpose.msra.mxu0 0.0
    %2580 = vmatpush.xpose.msra.mxu0 0.0
    %2581 = vmatpush.xpose.msra.mxu0 0.0
    %2582 = vmatpush.xpose.msra.mxu0 0.0
    %2583 = vmatpush.xpose.msra.mxu0 0.0
    %2584 = vmatpush.xpose.msra.mxu0 0.0
    %2585 = vmatpush.xpose.msra.mxu0 0.0
    %2586 = vmatpush.xpose.msra.mxu0 0.0
    %2587 = vmatpush.xpose.msra.mxu0 %v247
    %2588 = vmatpush.xpose.msra.mxu0 %v244
    %2589 = vmatmul.f32.gmra.mxu0 %v2571
    %v2590 = vpop.f32.mrf.mxu0
    %v2591 = vadd.f32 0.0, %v2590
    %2592 = vdwg.mxu0
    %v2593 = vsel %vm240, %v2570, 0
    %2595 = vmatpush.xpose.msra.mxu0 0.0
    %2596 = vmatpush.xpose.msra.mxu0 0.0
    %2597 = vmatpush.xpose.msra.mxu0 0.0
    %2598 = vmatpush.xpose.msra.mxu0 0.0
    %2599 = vmatpush.xpose.msra.mxu0 0.0
    %2600 = vmatpush.xpose.msra.mxu0 0.0
    %2601 = vmatpush.xpose.msra.mxu0 0.0
    %2602 = vmatpush.xpose.msra.mxu0 0.0
    %2603 = vmatpush.xpose.msra.mxu0 0.0
    %2604 = vmatpush.xpose.msra.mxu0 0.0
    %2605 = vmatpush.xpose.msra.mxu0 0.0
    %2606 = vmatpush.xpose.msra.mxu0 0.0
    %2607 = vmatpush.xpose.msra.mxu0 0.0
    %2608 = vmatpush.xpose.msra.mxu0 0.0
    %2609 = vmatpush.xpose.msra.mxu0 %v275
    %2610 = vmatpush.xpose.msra.mxu0 %v272
    %2611 = vmatmul.f32.gmra.mxu0 %v2593
    %v2612 = vpop.f32.mrf.mxu0
    %v2613 = vadd.f32 0.0, %v2612
    %2614 = vdwg.mxu0
    %v2617 = vrot.slane %v2613, 7
    %v2618 = vsel %vm212, %v2617, %v2591
    %v2620 = vsel %vm302, %v2618, -inf
    %2621 = vmax.xlane.f32.xlu0 %v2620
    %v2622 = vpop.xlane.xlu0 %2621
    %v2624 = vrot.slane %v2622, 1
    %v2627 = vsub.f32 %v2591, %v2622
    %v2628 = vsub.f32 %v2613, %v2624
    %v2629 = vmul.f32 %v2627, 1.442695
    %v2630 = vpow.pop %v2629
    %v2631 = vmul.f32 %v2628, 1.442695
    %v2632 = vpow.pop %v2631
    %v2635 = vrot.slane %v2632, 7
    %v2636 = vsel %vm212, %v2635, %v2630
    %v2638 = vsel %vm302, %v2636, 0.0
    %2639 = vadd.xlane.f32.xlu0 %v2638
    %v2640 = vpop.xlane.xlu0 %2639
    %v2641 = vmul.f32 %v2630, %v65
    %v2642 = vmul.f32 %v2632, %v325
    %v2645 = vrot.slane %v2642, 7
    %v2646 = vsel %vm212, %v2645, %v2641
    %v2648 = vsel %vm302, %v2646, 0.0
    %2649 = vadd.xlane.f32.xlu0 %v2648
    %v2650 = vpop.xlane.xlu0 %2649
    %v2651 = vmul.f32 %v2640, 1e-12
    %v2652 = vadd.f32 %v2650, %v2651
    %v2653 = vrcp.pop %v2652
    %v2654 = vmul.f32 %v2652, %v2653
    %v2655 = vsub.f32 2.0, %v2654
    %v2656 = vmul.f32 %v2653, %v2655
    %v2658 = vrot.slane %v2656, 1
    %v2661 = vmul.f32 %v2641, %v2656
    %v2662 = vmul.f32 %v2642, %v2658
    %v2664 = vsel %vm350, %v2661, 0
    %2666 = vmatpush.msra.mxu0 0.0
    %2667 = vmatpush.msra.mxu0 0.0
    %2668 = vmatpush.msra.mxu0 0.0
    %2669 = vmatpush.msra.mxu0 0.0
    %2670 = vmatpush.msra.mxu0 0.0
    %2671 = vmatpush.msra.mxu0 0.0
    %2672 = vmatpush.msra.mxu0 0.0
    %2673 = vmatpush.msra.mxu0 0.0
    %2674 = vmatpush.msra.mxu0 0.0
    %2675 = vmatpush.msra.mxu0 0.0
    %2676 = vmatpush.msra.mxu0 0.0
    %2677 = vmatpush.msra.mxu0 0.0
    %2678 = vmatpush.msra.mxu0 0.0
    %2679 = vmatpush.msra.mxu0 0.0
    %2680 = vmatpush.msra.mxu0 %v355
    %2681 = vmatpush.msra.mxu0 %v61
    %2682 = vmatmul.f32.gmra.mxu0 %v2664
    %v2683 = vpop.f32.mrf.mxu0
    %v2684 = vadd.f32 0.0, %v2683
    %2685 = vdwg.mxu0
    %v2687 = vsel %vm350, %v2662, 0
    %2689 = vmatpush.msra.mxu0 0.0
    %2690 = vmatpush.msra.mxu0 0.0
    %2691 = vmatpush.msra.mxu0 0.0
    %2692 = vmatpush.msra.mxu0 0.0
    %2693 = vmatpush.msra.mxu0 0.0
    %2694 = vmatpush.msra.mxu0 0.0
    %2695 = vmatpush.msra.mxu0 0.0
    %2696 = vmatpush.msra.mxu0 0.0
    %2697 = vmatpush.msra.mxu0 0.0
    %2698 = vmatpush.msra.mxu0 0.0
    %2699 = vmatpush.msra.mxu0 0.0
    %2700 = vmatpush.msra.mxu0 0.0
    %2701 = vmatpush.msra.mxu0 0.0
    %2702 = vmatpush.msra.mxu0 0.0
    %2703 = vmatpush.msra.mxu0 %v380
    %2704 = vmatpush.msra.mxu0 %v63
    %2705 = vmatmul.f32.gmra.mxu0 %v2687
    %v2706 = vpop.f32.mrf.mxu0
    %v2707 = vadd.f32 0.0, %v2706
    %2708 = vdwg.mxu0
    %v2711 = vrot.slane %v2707, 7
    %v2712 = vsel %vm212, %v2711, %v2684
    %v2713 = vsel %vm240, %v2712, 0
    %2715 = vmatpush.msra.mxu0 0.0
    %2716 = vmatpush.msra.mxu0 0.0
    %2717 = vmatpush.msra.mxu0 0.0
    %2718 = vmatpush.msra.mxu0 0.0
    %2719 = vmatpush.msra.mxu0 0.0
    %2720 = vmatpush.msra.mxu0 0.0
    %2721 = vmatpush.msra.mxu0 0.0
    %2722 = vmatpush.msra.mxu0 0.0
    %2723 = vmatpush.msra.mxu0 0.0
    %2724 = vmatpush.msra.mxu0 0.0
    %2725 = vmatpush.msra.mxu0 %v83
    %2726 = vmatpush.msra.mxu0 %v82
    %2727 = vmatpush.msra.mxu0 %v81
    %2728 = vmatpush.msra.mxu0 %v80
    %2729 = vmatpush.msra.mxu0 %v79
    %2730 = vmatpush.msra.mxu0 %v78
    %2731 = vmatmul.f32.gmra.mxu0 %v2713
    %v2732 = vpop.f32.mrf.mxu0
    %v2733 = vadd.f32 0.0, %v2732
    %2734 = vdwg.mxu0
    %2735 = vmatpush.msra.mxu0 0.0
    %2736 = vmatpush.msra.mxu0 0.0
    %2737 = vmatpush.msra.mxu0 0.0
    %2738 = vmatpush.msra.mxu0 0.0
    %2739 = vmatpush.msra.mxu0 0.0
    %2740 = vmatpush.msra.mxu0 0.0
    %2741 = vmatpush.msra.mxu0 0.0
    %2742 = vmatpush.msra.mxu0 0.0
    %2743 = vmatpush.msra.mxu0 0.0
    %2744 = vmatpush.msra.mxu0 0.0
    %2745 = vmatpush.msra.mxu0 0.0
    %2746 = vmatpush.msra.mxu0 0.0
    %2747 = vmatpush.msra.mxu0 %v77
    %2748 = vmatpush.msra.mxu0 %v76
    %2749 = vmatpush.msra.mxu0 %v75
    %2750 = vmatpush.msra.mxu0 %v74
    %2751 = vmatmul.f32.gmra.mxu0 %v2547
    %v2752 = vpop.f32.mrf.mxu0
    %v2753 = vadd.f32 %v2733, %v2752
    %2754 = vdwg.mxu0
    %v2755 = vadd.f32 %v2753, %v89
    %v2757 = vrot.slane %v2755, 1
    %2759 = vst.msk [vmem:[#allocation6 + $0x7] sm:$0x1] %vm452, %v2755
    %2760 = vst.msk [vmem:[#allocation6 + $0xf] sm:$0x1] %vm452, %v2757
    %v2761 = vrot.slane %v2539, 7
    %2762 = vrot.lane.b32.xlu0 %v2538, 96
    %v2763 = vpop.permute.xlu0 %2762
    %2764 = vrot.lane.b32.xlu0 %v2761, 96
    %v2765 = vpop.permute.xlu0 %2764
    %vm2768 = vcmask 261127
    %2769 = vst.msk [vmem:[#allocation2 - $0x7] sm:$0x80] %vm2768, %v2763
    %2770 = vst.msk [vmem:[#allocation2 + $0x1] sm:$0x1] %vm452, %v2765
    // Predicated region
    $region46: #{tpu_custom_call.1} parent=1 // pred_check
      %p2771 = pneg %p53
    $region47: #{tpu_custom_call.1} parent=1 // pred_check_branch
      %2773 = sbr.rel (%p2771) target = $region49
    $region48: #{tpu_custom_call.1} parent=1 // pred_region
      %2774 = vst.msk [vmem:[#allocation7 - $0x7] sm:$0x80] %vm2768, %v2763
      %2775 = vst.msk [vmem:[#allocation7 + $0x1] sm:$0x1] %vm452, %v2765
      %v2776 = vrot.slane %v2662, 7
      %v2777 = vsel %vm212, %v2776, %v2661
      %2779 = vst.msk [vmem:[#allocation9] sm:$0x3] %vm302, %v2777
    $region49: #{tpu_custom_call.1} parent=1 // pred_fallthru
      _
    // Predicated region
    $region50: #{tpu_custom_call.1} parent=1 // pred_check
      _
    $region51: #{tpu_custom_call.1} parent=1 // pred_check_branch
      %2781 = sbr.rel (0) target = $region53
    $region52: #{tpu_custom_call.1} parent=1 // pred_region
      %2783 = vsyncadd [#allocation5], 0
      %s2784 = sshll.u32 [#allocation6], 4
      %s2785 = int_to_ptr.vmem [resolvable:$true] %s2784
      %s2786 = sshll.u32 %s9, 4
      %s2787 = int_to_ptr.hbm [resolvable:$true] %s2786
      %2792 = dma.vmem_to_hbm [thread:$0]  %s2785, 256, %s2787, [#allocation5], 128, 128, 8
    $region53: #{tpu_custom_call.1} parent=1 // pred_fallthru
      _
    // Predicated region
    $region54: #{tpu_custom_call.1} parent=1 // pred_check
      _
    $region55: #{tpu_custom_call.1} parent=1 // pred_check_branch
      %2794 = sbr.rel (0) target = $region57
    $region56: #{tpu_custom_call.1} parent=1 // pred_region
      %2796 = vsyncadd [#allocation8], 0
      %s2798 = sshll.u32 [#allocation7], 4
      %s2799 = int_to_ptr.vmem [resolvable:$true] %s2798
      %s2800 = sshll.u32 %s10, 4
      %s2801 = int_to_ptr.hbm [resolvable:$true] %s2800
      %2803 = dma.vmem_to_hbm [thread:$0]  %s2799, 32, %s2801, [#allocation8]
    $region57: #{tpu_custom_call.1} parent=1 // pred_fallthru
      _
    // Predicated region
    $region58: #{tpu_custom_call.1} parent=1 // pred_check
      _
    $region59: #{tpu_custom_call.1} parent=1 // pred_check_branch
      %2805 = sbr.rel (0) target = $region61
    $region60: #{tpu_custom_call.1} parent=1 // pred_region
      %2807 = vsyncadd [#allocation8], 0
      %s2809 = sshll.u32 [#allocation9], 4
      %s2810 = int_to_ptr.vmem [resolvable:$true] %s2809
      %s2811 = sshll.u32 %s11, 4
      %s2812 = int_to_ptr.hbm [resolvable:$true] %s2811
      %2814 = dma.vmem_to_hbm [thread:$0]  %s2810, 32, %s2812, [#allocation8]
    $region61: #{tpu_custom_call.1} parent=1 // pred_fallthru
      _
    // Predicated region
    $region62: #{tpu_custom_call.1} parent=1 // pred_check
      _
    $region63: #{tpu_custom_call.1} parent=1 // pred_check_branch
      %2816 = sbr.rel (0) target = $region65
    $region64: #{tpu_custom_call.1} parent=1 // pred_region
      %2818 = dma.done [#allocation5], 256
    $region65: #{tpu_custom_call.1} parent=1 // pred_fallthru
      _
    // Predicated region
    $region66: #{tpu_custom_call.1} parent=1 // pred_check
      _
    $region67: #{tpu_custom_call.1} parent=1 // pred_check_branch
      %2820 = sbr.rel (0) target = $region69
    $region68: #{tpu_custom_call.1} parent=1 // pred_region
      %2822 = dma.done [#allocation8], 32
    $region69: #{tpu_custom_call.1} parent=1 // pred_fallthru
      _
    // Predicated region
    $region70: #{tpu_custom_call.1} parent=1 // pred_check
      _
    $region71: #{tpu_custom_call.1} parent=1 // pred_check_branch
      %2824 = sbr.rel (0) target = $region73
    $region72: #{tpu_custom_call.1} parent=1 // pred_region
      %2826 = dma.done [#allocation8], 32
    $region73: #{tpu_custom_call.1} parent=1 // pred_fallthru
      _
    %2827 = vsyncpa [#allocation4], 1
    %2828 = vsyncpa [#allocation5], 1
    %2829 = vsyncpa [#allocation8], 1

</llo_original>
